<compile_context>
chip_gen: v6e
topology: v6e:2x2x1
jax: 0.10.0
libtpu: 0.0.40
codegen_flags: <defaults>
</compile_context>

<pallas_src>
import jax
import jax.numpy as jnp
from jax.experimental import pallas as pl
from jax.experimental.pallas import tpu as pltpu


def _banded_w(w, W):
    """HWIO conv weight (kh, kw, cin, cout) -> (kh, W*cin, W*cout) banded-over-W.

    band[ky, w_in*cin + ci, w_out*cout + co] = w[ky, w_in - w_out + kw//2, ci, co]
    (zero when the horizontal tap falls outside the kernel, which also encodes
    the 'same' zero padding along W).
    """
    kh, kw, cin, cout = w.shape
    p = kw // 2
    w_in = jnp.arange(W)[:, None]
    w_out = jnp.arange(W)[None, :]
    kx = w_in - w_out + p                                   # (W, W)
    valid = ((kx >= 0) & (kx < kw)).astype(w.dtype)
    sel = w[:, jnp.clip(kx, 0, kw - 1)]                     # (kh, W, W, cin, cout)
    sel = sel * valid[None, :, :, None, None]
    # -> (kh, w_in, ci, w_out, co) -> (kh, W*cin, W*cout)
    return jnp.transpose(sel, (0, 1, 3, 2, 4)).reshape(kh, W * cin, W * cout)


def _pick_b_blk(n, h, target_m):
    """Images per grid step: fill ~target_m MXU rows, divide N evenly, and keep
    >=2 grid steps (v7x megacore) when that still half-fills target_m."""
    b = max(1, min(n, max(1, target_m // max(h, 1))))
    while n % b:
        b -= 1
    if n // b < 2 and n > 1:
        half = max(1, n // 2)
        while n % half:
            half -= 1
        if half * h * 2 >= target_m:
            b = half
    return b


def _make_kernel(*, B, H, maxpool, residual):
    f32, bf16 = jnp.float32, jnp.bfloat16
    M = B * H

    def kernel(*refs):
        refs = list(refs)
        o_ref = refs.pop()                                   # single output
        it = iter(refs)
        x_ref, h_ref = next(it), next(it)
        band1, b1 = next(it), next(it)
        band2, b2 = next(it), next(it)
        band3, band4, band5 = next(it), next(it), next(it)
        wfc, wfnc, bf = next(it), next(it), next(it)
        proj = next(it) if residual else None
        rowsel = next(it) if maxpool else None
        cpool = next(it) if maxpool else None

        x = x_ref[...].reshape(M, x_ref.shape[-1])           # (B*H, W*cin) f32
        h_col = h_ref[...]                                   # (B*H, 1) int32

        def vshift(a, d):
            # rows: out[i] = a[i + d] within its own image, 0 outside (XLU + VPU).
            if d == 0:
                return a
            r = pltpu.roll(a, (-d) % M, axis=0)
            ok = jnp.logical_and(h_col + d >= 0, h_col + d < H)
            return jnp.where(ok, r, 0.0)

        def band_conv(a, band_ref, kh, bias_ref=None):
            # a: (M, W*Cin) f32; band_ref: (kh, W*Cin, W*Cout) bf16; f32 acc.
            p = kh // 2
            acc = None
            for ky in range(kh):
                sh = vshift(a, ky - p).astype(bf16)
                t = jnp.dot(sh, band_ref[ky], preferred_element_type=f32)
                acc = t if acc is None else acc + t
            if bias_ref is not None:
                acc = acc + bias_ref[...]
            return acc

        # ---- classical: Conv3x3(+bias) -> Conv3x3(+bias) ----
        c = band_conv(x, band1, 3, b1)
        c = band_conv(c, band2, 3, b2)

        # ---- nonclassical: three bias-free Conv5x5 ----
        nc = band_conv(c, band3, 5)
        nc = band_conv(nc, band4, 5)
        nc = band_conv(nc, band5, 5)

        # ---- 1x1 fusion on concat(classical, nonclassical): 2 block-diag matmuls
        fusion = (jnp.dot(c.astype(bf16), wfc[...], preferred_element_type=f32)
                  + jnp.dot(nc.astype(bf16), wfnc[...], preferred_element_type=f32)
                  + bf[...])

        # ---- residual: repeat_interleave(x) as a 0/1 banded matmul ----
        if residual:
            fusion = fusion + jnp.dot(x.astype(bf16), proj[...],
                                      preferred_element_type=f32)

        # ---- maxpool 2x2 stride 2 ----
        if maxpool:
            # row-max on the VPU (valid at even in-image rows), then one 0/1
            # even-row selection matmul + two 0/1 column selection matmuls.
            rm = jnp.maximum(fusion, vshift(fusion, 1))
            rs = jnp.dot(rowsel[...], rm.astype(bf16), preferred_element_type=f32)
            rsb = rs.astype(bf16)
            out = jnp.maximum(
                jnp.dot(rsb, cpool[0], preferred_element_type=f32),
                jnp.dot(rsb, cpool[1], preferred_element_type=f32))
        else:
            out = fusion

        out = jnp.maximum(out, 0.0)                          # ReLU in f32
        o_ref[...] = out.reshape(o_ref.shape).astype(o_ref.dtype)

    return kernel


def base_receptive_block(x_nhwc, params, *, maxpool=True, residual=True,
                         b_blk=None, target_m=128):
    """x_nhwc: (N, H, W, Cin) float32. Returns (N, H', W', Cout) float32.

    target_m ~ MXU rows per grid step: 128 suits v5e; pass 256 on v6e/v7x.
    """
    N, H, W, cin = x_nhwc.shape
    cout = params["w1"].shape[-1]
    if maxpool:
        assert H % 2 == 0 and W % 2 == 0, "2x2/2 maxpool requires even H and W"
    f32, bf16 = jnp.float32, jnp.bfloat16
    wc_in, wc_out = W * cin, W * cout
    Ho, Wo = (H // 2, W // 2) if maxpool else (H, W)

    B = b_blk if b_blk is not None else _pick_b_blk(N, H, target_m)
    assert N % B == 0
    M = B * H

    # "width on lanes" activation layout: (N, H, W*Cin), kept f32 (operands are
    # cast to bf16 inside the kernel, after each row shift).
    x2 = x_nhwc.reshape(N, H, wc_in).astype(f32)

    # Banded (along W) conv weights, pre-cast to bf16 (f32 accumulation in-kernel).
    band1 = _banded_w(params["w1"], W).astype(bf16)           # (3, W*cin, W*cout)
    band2 = _banded_w(params["w2"], W).astype(bf16)           # (3, W*cout, W*cout)
    band3 = _banded_w(params["w3"], W).astype(bf16)           # (5, W*cout, W*cout)
    band4 = _banded_w(params["w4"], W).astype(bf16)
    band5 = _banded_w(params["w5"], W).astype(bf16)
    wfc = _banded_w(params["wf"][:cout][None, None], W)[0].astype(bf16)
    wfnc = _banded_w(params["wf"][cout:][None, None], W)[0].astype(bf16)

    # Biases stay f32 (added on the VPU).
    b1row = jnp.tile(params["b1"].reshape(-1), W).reshape(1, wc_out).astype(f32)
    b2row = jnp.tile(params["b2"].reshape(-1), W).reshape(1, wc_out).astype(f32)
    bfrow = jnp.tile(params["bf"].reshape(-1), W).reshape(1, wc_out).astype(f32)

    # Row index within its image, for the roll boundary masks.
    h_col = jnp.tile(jnp.arange(H, dtype=jnp.int32), B).reshape(M, 1)

    weight_args = [h_col, band1, b1row, band2, b2row, band3, band4, band5,
                   wfc, wfnc, bfrow]

    if residual:
        assert cout % cin == 0
        r = cout // cin
        projmat = (jnp.arange(cout)[None, :] // r
                   == jnp.arange(cin)[:, None]).astype(f32)
        weight_args.append(_banded_w(projmat[None, None], W)[0].astype(bf16))

    if maxpool:
        # 0/1 even-row selection, block-diagonal over the B images per step.
        ro = jnp.arange(B * Ho)
        ri = jnp.arange(B * H)
        src = (ro // Ho) * H + 2 * (ro % Ho)
        rowsel = (ri[None, :] == src[:, None]).astype(bf16)   # (B*Ho, B*H)
        # 0/1 width-pair selection: lanes W*cout -> Wo*cout.
        wcol = jnp.arange(wc_out)
        w2col = jnp.arange(Wo * cout)
        cpool = jnp.stack([
            ((wcol[:, None] // cout == 2 * (w2col[None, :] // cout) + dx)
             & (wcol[:, None] % cout == w2col[None, :] % cout)).astype(bf16)
            for dx in (0, 1)])                                # (2, W*cout, Wo*cout)
        weight_args += [rowsel, cpool]

    def _rep_spec(a):
        nd = a.ndim
        return pl.BlockSpec(a.shape, lambda n, _nd=nd: (0,) * _nd)

    # B images per grid step; weights use constant index maps (DMAs reused
    # across steps) and "parallel" lets v7x split the batch over 2 TCs.
    in_specs = [pl.BlockSpec((B, H, wc_in), lambda n: (n, 0, 0))]
    in_specs += [_rep_spec(a) for a in weight_args]

    kernel = _make_kernel(B=B, H=H, maxpool=maxpool, residual=residual)

    out2 = pl.pallas_call(
        kernel,
        out_shape=jax.ShapeDtypeStruct((N, Ho, Wo * cout), f32),
        grid_spec=pltpu.PrefetchScalarGridSpec(
            num_scalar_prefetch=0,
            grid=(N // B,),
            in_specs=in_specs,
            out_specs=pl.BlockSpec((B, Ho, Wo * cout), lambda n: (n, 0, 0)),
        ),
        compiler_params=pltpu.CompilerParams(
            dimension_semantics=("parallel",),
            vmem_limit_bytes=32 * 1024 * 1024),
    )(x2, *weight_args)

    return out2.reshape(N, Ho, Wo, cout)


def init_params(key, cin, cout):
    ks = jax.random.split(key, 8)
    s = 0.1
    return {
        "w1": jax.random.normal(ks[0], (3, 3, cin, cout), jnp.float32) * s,
        "b1": jax.random.normal(ks[1], (1, cout), jnp.float32) * s,
        "w2": jax.random.normal(ks[2], (3, 3, cout, cout), jnp.float32) * s,
        "b2": jax.random.normal(ks[3], (1, cout), jnp.float32) * s,
        "w3": jax.random.normal(ks[4], (5, 5, cout, cout), jnp.float32) * s,
        "w4": jax.random.normal(ks[5], (5, 5, cout, cout), jnp.float32) * s,
        "w5": jax.random.normal(ks[6], (5, 5, cout, cout), jnp.float32) * s,
        "wf": jax.random.normal(ks[7], (2 * cout, cout), jnp.float32) * s,
        "bf": jnp.zeros((1, cout), jnp.float32) + 0.01,
    }


def reference(x, p, *, maxpool=True, residual=True):
    """Pure-JAX (XLA) reference of the PyTorch forward, in NHWC, f32/HIGHEST."""
    def conv(a, w, b=None, pad=0):
        o = jax.lax.conv_general_dilated(
            a, w, (1, 1), [(pad, pad), (pad, pad)],
            dimension_numbers=("NHWC", "HWIO", "NHWC"),
            precision=jax.lax.Precision.HIGHEST)
        if b is not None:
            o = o + b[0]
        return o

    c = conv(conv(x, p["w1"], p["b1"], 1), p["w2"], p["b2"], 1)
    nc = conv(conv(conv(c, p["w3"], pad=2), p["w4"], pad=2), p["w5"], pad=2)
    cout = c.shape[-1]
    wf4 = p["wf"].reshape(1, 1, 2 * cout, cout)
    f = conv(jnp.concatenate([c, nc], axis=-1), wf4, p["bf"], 0)
    if residual:
        r = cout // x.shape[-1]
        f = f + jnp.repeat(x, r, axis=-1)
    if maxpool:
        f = jax.lax.reduce_window(f, -jnp.inf, jax.lax.max,
                                  (1, 2, 2, 1), (1, 2, 2, 1), "VALID")
    return jnp.maximum(f, 0.0)


if __name__ == "__main__":
    N, cin, cout, H, W = 2, 4, 8, 16, 16
    key = jax.random.PRNGKey(0)
    kx, kp = jax.random.split(key)

    # PyTorch-style NCHW input, transposed to NHWC for the kernel.
    x_nchw = jax.random.normal(kx, (N, cin, H, W), jnp.float32)
    x = jnp.transpose(x_nchw, (0, 2, 3, 1))

    params = init_params(kp, cin, cout)

    out = base_receptive_block(x, params, maxpool=True, residual=True)
    out = jax.block_until_ready(out)

    ref = reference(x, params, maxpool=True, residual=True)
    assert out.shape == (N, H // 2, W // 2, cout), out.shape
    err = float(jnp.max(jnp.abs(out - ref)))
    # Conv / selection matmuls run with bf16 operands (f32 accumulation);
    # compare against the f32 HIGHEST reference with bf16-level tolerances.
    assert bool(jnp.allclose(out, ref, rtol=5e-2, atol=5e-2)), err
    print("KERNEL_OK")
</pallas_src>

<mosaic_0001>
module attributes {stable_mosaic.version = 11 : i64} {
  func.func @kernel(%arg0: i32, %arg1: memref<2x16x64xf32, #tpu.memory_space<vmem>>, %arg2: memref<32x1xi32, #tpu.memory_space<vmem>>, %arg3: memref<3x64x128xbf16, #tpu.memory_space<vmem>>, %arg4: memref<1x128xf32, #tpu.memory_space<vmem>>, %arg5: memref<3x128x128xbf16, #tpu.memory_space<vmem>>, %arg6: memref<1x128xf32, #tpu.memory_space<vmem>>, %arg7: memref<5x128x128xbf16, #tpu.memory_space<vmem>>, %arg8: memref<5x128x128xbf16, #tpu.memory_space<vmem>>, %arg9: memref<5x128x128xbf16, #tpu.memory_space<vmem>>, %arg10: memref<128x128xbf16, #tpu.memory_space<vmem>>, %arg11: memref<128x128xbf16, #tpu.memory_space<vmem>>, %arg12: memref<1x128xf32, #tpu.memory_space<vmem>>, %arg13: memref<64x128xbf16, #tpu.memory_space<vmem>>, %arg14: memref<16x32xbf16, #tpu.memory_space<vmem>>, %arg15: memref<2x128x64xbf16, #tpu.memory_space<vmem>>, %arg16: memref<2x8x64xf32, #tpu.memory_space<vmem>>) attributes {dimension_semantics = [#tpu.dimension_semantics<parallel>], iteration_bounds = array<i64: 1>, scalar_prefetch = 0 : i64, scratch_operands = 0 : i64, tpu.core_type = #tpu.core_type<tc>, window_params = [{transform_indices = @transform_0, window_bounds = array<i64: 2, 16, 64>}, {pipeline_mode = #tpu.pipeline_mode<synchronous>, transform_indices = @transform_1, window_bounds = array<i64: 32, 1>}, {pipeline_mode = #tpu.pipeline_mode<synchronous>, transform_indices = @transform_2, window_bounds = array<i64: 3, 64, 128>}, {pipeline_mode = #tpu.pipeline_mode<synchronous>, transform_indices = @transform_3, window_bounds = array<i64: 1, 128>}, {pipeline_mode = #tpu.pipeline_mode<synchronous>, transform_indices = @transform_4, window_bounds = array<i64: 3, 128, 128>}, {pipeline_mode = #tpu.pipeline_mode<synchronous>, transform_indices = @transform_5, window_bounds = array<i64: 1, 128>}, {pipeline_mode = #tpu.pipeline_mode<synchronous>, transform_indices = @transform_6, window_bounds = array<i64: 5, 128, 128>}, {pipeline_mode = #tpu.pipeline_mode<synchronous>, transform_indices = @transform_7, window_bounds = array<i64: 5, 128, 128>}, {pipeline_mode = #tpu.pipeline_mode<synchronous>, transform_indices = @transform_8, window_bounds = array<i64: 5, 128, 128>}, {pipeline_mode = #tpu.pipeline_mode<synchronous>, transform_indices = @transform_9, window_bounds = array<i64: 128, 128>}, {pipeline_mode = #tpu.pipeline_mode<synchronous>, transform_indices = @transform_10, window_bounds = array<i64: 128, 128>}, {pipeline_mode = #tpu.pipeline_mode<synchronous>, transform_indices = @transform_11, window_bounds = array<i64: 1, 128>}, {pipeline_mode = #tpu.pipeline_mode<synchronous>, transform_indices = @transform_12, window_bounds = array<i64: 64, 128>}, {pipeline_mode = #tpu.pipeline_mode<synchronous>, transform_indices = @transform_13, window_bounds = array<i64: 16, 32>}, {pipeline_mode = #tpu.pipeline_mode<synchronous>, transform_indices = @transform_14, window_bounds = array<i64: 2, 128, 64>}, {transform_indices = @transform_15, window_bounds = array<i64: 2, 8, 64>}]} {
    %c0 = arith.constant 0 : index
    %c0_0 = arith.constant 0 : index
    %c0_1 = arith.constant 0 : index
    %0 = vector.load %arg1[%c0, %c0_0, %c0_1] : memref<2x16x64xf32, #tpu.memory_space<vmem>>, vector<2x16x64xf32>
    %1 = vector.shape_cast %0 : vector<2x16x64xf32> to vector<32x64xf32>
    %c0_2 = arith.constant 0 : index
    %c0_3 = arith.constant 0 : index
    %2 = vector.load %arg2[%c0_2, %c0_3] : memref<32x1xi32, #tpu.memory_space<vmem>>, vector<32x1xi32>
    %c1_i32 = arith.constant 1 : i32
    %3 = tpu.dynamic_rotate %1 by %c1_i32 dim 0 : vector<32x64xf32>, i32 -> vector<32x64xf32>
    %c-1_i32 = arith.constant -1 : i32
    %4 = vector.broadcast %c-1_i32 : i32 to vector<32x1xi32>
    %5 = arith.addi %2, %4 : vector<32x1xi32>
    %c0_i32 = arith.constant 0 : i32
    %6 = vector.broadcast %c0_i32 : i32 to vector<32x1xi32>
    %7 = arith.cmpi sge, %5, %6 : vector<32x1xi32>
    %c-1_i32_4 = arith.constant -1 : i32
    %8 = vector.broadcast %c-1_i32_4 : i32 to vector<32x1xi32>
    %9 = arith.addi %2, %8 : vector<32x1xi32>
    %c16_i32 = arith.constant 16 : i32
    %10 = vector.broadcast %c16_i32 : i32 to vector<32x1xi32>
    %11 = arith.cmpi slt, %9, %10 : vector<32x1xi32>
    %12 = arith.andi %7, %11 : vector<32x1xi1>
    %cst = arith.constant 0.000000e+00 : f32
    %13 = vector.shape_cast %12 : vector<32x1xi1> to vector<32x1xi1>
    %14 = vector.broadcast %13 : vector<32x1xi1> to vector<32x64xi1>
    %15 = vector.broadcast %cst : f32 to vector<32x64xf32>
    %16 = arith.select %14, %3, %15 : vector<32x64xi1>, vector<32x64xf32>
    %17 = arith.truncf %16 : vector<32x64xf32> to vector<32x64xbf16>
    %c0_5 = arith.constant 0 : index
    %c0_6 = arith.constant 0 : index
    %c0_7 = arith.constant 0 : index
    %18 = vector.load %arg3[%c0_5, %c0_6, %c0_7] : memref<3x64x128xbf16, #tpu.memory_space<vmem>>, vector<1x64x128xbf16>
    %19 = vector.shape_cast %18 : vector<1x64x128xbf16> to vector<64x128xbf16>
    %cst_8 = arith.constant dense<0.000000e+00> : vector<32x128xf32>
    %20 = tpu.matmul %17, %19, %cst_8 {dimension_numbers = #tpu.dot_dimension_numbers<[1], [0], [0], [1], [0, 0, 1, 1], [], []>} : vector<32x64xbf16>, vector<64x128xbf16>, vector<32x128xf32> -> vector<32x128xf32>
    %21 = arith.truncf %1 : vector<32x64xf32> to vector<32x64xbf16>
    %c1 = arith.constant 1 : index
    %c0_9 = arith.constant 0 : index
    %c0_10 = arith.constant 0 : index
    %22 = vector.load %arg3[%c1, %c0_9, %c0_10] : memref<3x64x128xbf16, #tpu.memory_space<vmem>>, vector<1x64x128xbf16>
    %23 = vector.shape_cast %22 : vector<1x64x128xbf16> to vector<64x128xbf16>
    %cst_11 = arith.constant dense<0.000000e+00> : vector<32x128xf32>
    %24 = tpu.matmul %21, %23, %cst_11 {dimension_numbers = #tpu.dot_dimension_numbers<[1], [0], [0], [1], [0, 0, 1, 1], [], []>} : vector<32x64xbf16>, vector<64x128xbf16>, vector<32x128xf32> -> vector<32x128xf32>
    %25 = arith.addf %20, %24 : vector<32x128xf32>
    %c31_i32 = arith.constant 31 : i32
    %26 = tpu.dynamic_rotate %1 by %c31_i32 dim 0 : vector<32x64xf32>, i32 -> vector<32x64xf32>
    %c1_i32_12 = arith.constant 1 : i32
    %27 = vector.broadcast %c1_i32_12 : i32 to vector<32x1xi32>
    %28 = arith.addi %2, %27 : vector<32x1xi32>
    %c0_i32_13 = arith.constant 0 : i32
    %29 = vector.broadcast %c0_i32_13 : i32 to vector<32x1xi32>
    %30 = arith.cmpi sge, %28, %29 : vector<32x1xi32>
    %c1_i32_14 = arith.constant 1 : i32
    %31 = vector.broadcast %c1_i32_14 : i32 to vector<32x1xi32>
    %32 = arith.addi %2, %31 : vector<32x1xi32>
    %c16_i32_15 = arith.constant 16 : i32
    %33 = vector.broadcast %c16_i32_15 : i32 to vector<32x1xi32>
    %34 = arith.cmpi slt, %32, %33 : vector<32x1xi32>
    %35 = arith.andi %30, %34 : vector<32x1xi1>
    %cst_16 = arith.constant 0.000000e+00 : f32
    %36 = vector.shape_cast %35 : vector<32x1xi1> to vector<32x1xi1>
    %37 = vector.broadcast %36 : vector<32x1xi1> to vector<32x64xi1>
    %38 = vector.broadcast %cst_16 : f32 to vector<32x64xf32>
    %39 = arith.select %37, %26, %38 : vector<32x64xi1>, vector<32x64xf32>
    %40 = arith.truncf %39 : vector<32x64xf32> to vector<32x64xbf16>
    %c2 = arith.constant 2 : index
    %c0_17 = arith.constant 0 : index
    %c0_18 = arith.constant 0 : index
    %41 = vector.load %arg3[%c2, %c0_17, %c0_18] : memref<3x64x128xbf16, #tpu.memory_space<vmem>>, vector<1x64x128xbf16>
    %42 = vector.shape_cast %41 : vector<1x64x128xbf16> to vector<64x128xbf16>
    %cst_19 = arith.constant dense<0.000000e+00> : vector<32x128xf32>
    %43 = tpu.matmul %40, %42, %cst_19 {dimension_numbers = #tpu.dot_dimension_numbers<[1], [0], [0], [1], [0, 0, 1, 1], [], []>} : vector<32x64xbf16>, vector<64x128xbf16>, vector<32x128xf32> -> vector<32x128xf32>
    %44 = arith.addf %25, %43 : vector<32x128xf32>
    %c0_20 = arith.constant 0 : index
    %c0_21 = arith.constant 0 : index
    %45 = vector.load %arg4[%c0_20, %c0_21] : memref<1x128xf32, #tpu.memory_space<vmem>>, vector<1x128xf32>
    %46 = vector.broadcast %45 : vector<1x128xf32> to vector<32x128xf32>
    %47 = arith.addf %44, %46 : vector<32x128xf32>
    %c1_i32_22 = arith.constant 1 : i32
    %48 = tpu.dynamic_rotate %47 by %c1_i32_22 dim 0 : vector<32x128xf32>, i32 -> vector<32x128xf32>
    %c-1_i32_23 = arith.constant -1 : i32
    %49 = vector.broadcast %c-1_i32_23 : i32 to vector<32x1xi32>
    %50 = arith.addi %2, %49 : vector<32x1xi32>
    %c0_i32_24 = arith.constant 0 : i32
    %51 = vector.broadcast %c0_i32_24 : i32 to vector<32x1xi32>
    %52 = arith.cmpi sge, %50, %51 : vector<32x1xi32>
    %c-1_i32_25 = arith.constant -1 : i32
    %53 = vector.broadcast %c-1_i32_25 : i32 to vector<32x1xi32>
    %54 = arith.addi %2, %53 : vector<32x1xi32>
    %c16_i32_26 = arith.constant 16 : i32
    %55 = vector.broadcast %c16_i32_26 : i32 to vector<32x1xi32>
    %56 = arith.cmpi slt, %54, %55 : vector<32x1xi32>
    %57 = arith.andi %52, %56 : vector<32x1xi1>
    %cst_27 = arith.constant 0.000000e+00 : f32
    %58 = vector.shape_cast %57 : vector<32x1xi1> to vector<32x1xi1>
    %59 = vector.broadcast %58 : vector<32x1xi1> to vector<32x128xi1>
    %60 = vector.broadcast %cst_27 : f32 to vector<32x128xf32>
    %61 = arith.select %59, %48, %60 : vector<32x128xi1>, vector<32x128xf32>
    %62 = arith.truncf %61 : vector<32x128xf32> to vector<32x128xbf16>
    %c0_28 = arith.constant 0 : index
    %c0_29 = arith.constant 0 : index
    %c0_30 = arith.constant 0 : index
    %63 = vector.load %arg5[%c0_28, %c0_29, %c0_30] : memref<3x128x128xbf16, #tpu.memory_space<vmem>>, vector<1x128x128xbf16>
    %64 = vector.shape_cast %63 : vector<1x128x128xbf16> to vector<128x128xbf16>
    %cst_31 = arith.constant dense<0.000000e+00> : vector<32x128xf32>
    %65 = tpu.matmul %62, %64, %cst_31 {dimension_numbers = #tpu.dot_dimension_numbers<[1], [0], [0], [1], [0, 0, 1, 1], [], []>} : vector<32x128xbf16>, vector<128x128xbf16>, vector<32x128xf32> -> vector<32x128xf32>
    %66 = arith.truncf %47 : vector<32x128xf32> to vector<32x128xbf16>
    %c1_32 = arith.constant 1 : index
    %c0_33 = arith.constant 0 : index
    %c0_34 = arith.constant 0 : index
    %67 = vector.load %arg5[%c1_32, %c0_33, %c0_34] : memref<3x128x128xbf16, #tpu.memory_space<vmem>>, vector<1x128x128xbf16>
    %68 = vector.shape_cast %67 : vector<1x128x128xbf16> to vector<128x128xbf16>
    %cst_35 = arith.constant dense<0.000000e+00> : vector<32x128xf32>
    %69 = tpu.matmul %66, %68, %cst_35 {dimension_numbers = #tpu.dot_dimension_numbers<[1], [0], [0], [1], [0, 0, 1, 1], [], []>} : vector<32x128xbf16>, vector<128x128xbf16>, vector<32x128xf32> -> vector<32x128xf32>
    %70 = arith.addf %65, %69 : vector<32x128xf32>
    %c31_i32_36 = arith.constant 31 : i32
    %71 = tpu.dynamic_rotate %47 by %c31_i32_36 dim 0 : vector<32x128xf32>, i32 -> vector<32x128xf32>
    %c1_i32_37 = arith.constant 1 : i32
    %72 = vector.broadcast %c1_i32_37 : i32 to vector<32x1xi32>
    %73 = arith.addi %2, %72 : vector<32x1xi32>
    %c0_i32_38 = arith.constant 0 : i32
    %74 = vector.broadcast %c0_i32_38 : i32 to vector<32x1xi32>
    %75 = arith.cmpi sge, %73, %74 : vector<32x1xi32>
    %c1_i32_39 = arith.constant 1 : i32
    %76 = vector.broadcast %c1_i32_39 : i32 to vector<32x1xi32>
    %77 = arith.addi %2, %76 : vector<32x1xi32>
    %c16_i32_40 = arith.constant 16 : i32
    %78 = vector.broadcast %c16_i32_40 : i32 to vector<32x1xi32>
    %79 = arith.cmpi slt, %77, %78 : vector<32x1xi32>
    %80 = arith.andi %75, %79 : vector<32x1xi1>
    %cst_41 = arith.constant 0.000000e+00 : f32
    %81 = vector.shape_cast %80 : vector<32x1xi1> to vector<32x1xi1>
    %82 = vector.broadcast %81 : vector<32x1xi1> to vector<32x128xi1>
    %83 = vector.broadcast %cst_41 : f32 to vector<32x128xf32>
    %84 = arith.select %82, %71, %83 : vector<32x128xi1>, vector<32x128xf32>
    %85 = arith.truncf %84 : vector<32x128xf32> to vector<32x128xbf16>
    %c2_42 = arith.constant 2 : index
    %c0_43 = arith.constant 0 : index
    %c0_44 = arith.constant 0 : index
    %86 = vector.load %arg5[%c2_42, %c0_43, %c0_44] : memref<3x128x128xbf16, #tpu.memory_space<vmem>>, vector<1x128x128xbf16>
    %87 = vector.shape_cast %86 : vector<1x128x128xbf16> to vector<128x128xbf16>
    %cst_45 = arith.constant dense<0.000000e+00> : vector<32x128xf32>
    %88 = tpu.matmul %85, %87, %cst_45 {dimension_numbers = #tpu.dot_dimension_numbers<[1], [0], [0], [1], [0, 0, 1, 1], [], []>} : vector<32x128xbf16>, vector<128x128xbf16>, vector<32x128xf32> -> vector<32x128xf32>
    %89 = arith.addf %70, %88 : vector<32x128xf32>
    %c0_46 = arith.constant 0 : index
    %c0_47 = arith.constant 0 : index
    %90 = vector.load %arg6[%c0_46, %c0_47] : memref<1x128xf32, #tpu.memory_space<vmem>>, vector<1x128xf32>
    %91 = vector.broadcast %90 : vector<1x128xf32> to vector<32x128xf32>
    %92 = arith.addf %89, %91 : vector<32x128xf32>
    %c2_i32 = arith.constant 2 : i32
    %93 = tpu.dynamic_rotate %92 by %c2_i32 dim 0 : vector<32x128xf32>, i32 -> vector<32x128xf32>
    %c-2_i32 = arith.constant -2 : i32
    %94 = vector.broadcast %c-2_i32 : i32 to vector<32x1xi32>
    %95 = arith.addi %2, %94 : vector<32x1xi32>
    %c0_i32_48 = arith.constant 0 : i32
    %96 = vector.broadcast %c0_i32_48 : i32 to vector<32x1xi32>
    %97 = arith.cmpi sge, %95, %96 : vector<32x1xi32>
    %c-2_i32_49 = arith.constant -2 : i32
    %98 = vector.broadcast %c-2_i32_49 : i32 to vector<32x1xi32>
    %99 = arith.addi %2, %98 : vector<32x1xi32>
    %c16_i32_50 = arith.constant 16 : i32
    %100 = vector.broadcast %c16_i32_50 : i32 to vector<32x1xi32>
    %101 = arith.cmpi slt, %99, %100 : vector<32x1xi32>
    %102 = arith.andi %97, %101 : vector<32x1xi1>
    %cst_51 = arith.constant 0.000000e+00 : f32
    %103 = vector.shape_cast %102 : vector<32x1xi1> to vector<32x1xi1>
    %104 = vector.broadcast %103 : vector<32x1xi1> to vector<32x128xi1>
    %105 = vector.broadcast %cst_51 : f32 to vector<32x128xf32>
    %106 = arith.select %104, %93, %105 : vector<32x128xi1>, vector<32x128xf32>
    %107 = arith.truncf %106 : vector<32x128xf32> to vector<32x128xbf16>
    %c0_52 = arith.constant 0 : index
    %c0_53 = arith.constant 0 : index
    %c0_54 = arith.constant 0 : index
    %108 = vector.load %arg7[%c0_52, %c0_53, %c0_54] : memref<5x128x128xbf16, #tpu.memory_space<vmem>>, vector<1x128x128xbf16>
    %109 = vector.shape_cast %108 : vector<1x128x128xbf16> to vector<128x128xbf16>
    %cst_55 = arith.constant dense<0.000000e+00> : vector<32x128xf32>
    %110 = tpu.matmul %107, %109, %cst_55 {dimension_numbers = #tpu.dot_dimension_numbers<[1], [0], [0], [1], [0, 0, 1, 1], [], []>} : vector<32x128xbf16>, vector<128x128xbf16>, vector<32x128xf32> -> vector<32x128xf32>
    %c1_i32_56 = arith.constant 1 : i32
    %111 = tpu.dynamic_rotate %92 by %c1_i32_56 dim 0 : vector<32x128xf32>, i32 -> vector<32x128xf32>
    %c-1_i32_57 = arith.constant -1 : i32
    %112 = vector.broadcast %c-1_i32_57 : i32 to vector<32x1xi32>
    %113 = arith.addi %2, %112 : vector<32x1xi32>
    %c0_i32_58 = arith.constant 0 : i32
    %114 = vector.broadcast %c0_i32_58 : i32 to vector<32x1xi32>
    %115 = arith.cmpi sge, %113, %114 : vector<32x1xi32>
    %c-1_i32_59 = arith.constant -1 : i32
    %116 = vector.broadcast %c-1_i32_59 : i32 to vector<32x1xi32>
    %117 = arith.addi %2, %116 : vector<32x1xi32>
    %c16_i32_60 = arith.constant 16 : i32
    %118 = vector.broadcast %c16_i32_60 : i32 to vector<32x1xi32>
    %119 = arith.cmpi slt, %117, %118 : vector<32x1xi32>
    %120 = arith.andi %115, %119 : vector<32x1xi1>
    %cst_61 = arith.constant 0.000000e+00 : f32
    %121 = vector.shape_cast %120 : vector<32x1xi1> to vector<32x1xi1>
    %122 = vector.broadcast %121 : vector<32x1xi1> to vector<32x128xi1>
    %123 = vector.broadcast %cst_61 : f32 to vector<32x128xf32>
    %124 = arith.select %122, %111, %123 : vector<32x128xi1>, vector<32x128xf32>
    %125 = arith.truncf %124 : vector<32x128xf32> to vector<32x128xbf16>
    %c1_62 = arith.constant 1 : index
    %c0_63 = arith.constant 0 : index
    %c0_64 = arith.constant 0 : index
    %126 = vector.load %arg7[%c1_62, %c0_63, %c0_64] : memref<5x128x128xbf16, #tpu.memory_space<vmem>>, vector<1x128x128xbf16>
    %127 = vector.shape_cast %126 : vector<1x128x128xbf16> to vector<128x128xbf16>
    %cst_65 = arith.constant dense<0.000000e+00> : vector<32x128xf32>
    %128 = tpu.matmul %125, %127, %cst_65 {dimension_numbers = #tpu.dot_dimension_numbers<[1], [0], [0], [1], [0, 0, 1, 1], [], []>} : vector<32x128xbf16>, vector<128x128xbf16>, vector<32x128xf32> -> vector<32x128xf32>
    %129 = arith.addf %110, %128 : vector<32x128xf32>
    %130 = arith.truncf %92 : vector<32x128xf32> to vector<32x128xbf16>
    %c2_66 = arith.constant 2 : index
    %c0_67 = arith.constant 0 : index
    %c0_68 = arith.constant 0 : index
    %131 = vector.load %arg7[%c2_66, %c0_67, %c0_68] : memref<5x128x128xbf16, #tpu.memory_space<vmem>>, vector<1x128x128xbf16>
    %132 = vector.shape_cast %131 : vector<1x128x128xbf16> to vector<128x128xbf16>
    %cst_69 = arith.constant dense<0.000000e+00> : vector<32x128xf32>
    %133 = tpu.matmul %130, %132, %cst_69 {dimension_numbers = #tpu.dot_dimension_numbers<[1], [0], [0], [1], [0, 0, 1, 1], [], []>} : vector<32x128xbf16>, vector<128x128xbf16>, vector<32x128xf32> -> vector<32x128xf32>
    %134 = arith.addf %129, %133 : vector<32x128xf32>
    %c31_i32_70 = arith.constant 31 : i32
    %135 = tpu.dynamic_rotate %92 by %c31_i32_70 dim 0 : vector<32x128xf32>, i32 -> vector<32x128xf32>
    %c1_i32_71 = arith.constant 1 : i32
    %136 = vector.broadcast %c1_i32_71 : i32 to vector<32x1xi32>
    %137 = arith.addi %2, %136 : vector<32x1xi32>
    %c0_i32_72 = arith.constant 0 : i32
    %138 = vector.broadcast %c0_i32_72 : i32 to vector<32x1xi32>
    %139 = arith.cmpi sge, %137, %138 : vector<32x1xi32>
    %c1_i32_73 = arith.constant 1 : i32
    %140 = vector.broadcast %c1_i32_73 : i32 to vector<32x1xi32>
    %141 = arith.addi %2, %140 : vector<32x1xi32>
    %c16_i32_74 = arith.constant 16 : i32
    %142 = vector.broadcast %c16_i32_74 : i32 to vector<32x1xi32>
    %143 = arith.cmpi slt, %141, %142 : vector<32x1xi32>
    %144 = arith.andi %139, %143 : vector<32x1xi1>
    %cst_75 = arith.constant 0.000000e+00 : f32
    %145 = vector.shape_cast %144 : vector<32x1xi1> to vector<32x1xi1>
    %146 = vector.broadcast %145 : vector<32x1xi1> to vector<32x128xi1>
    %147 = vector.broadcast %cst_75 : f32 to vector<32x128xf32>
    %148 = arith.select %146, %135, %147 : vector<32x128xi1>, vector<32x128xf32>
    %149 = arith.truncf %148 : vector<32x128xf32> to vector<32x128xbf16>
    %c3 = arith.constant 3 : index
    %c0_76 = arith.constant 0 : index
    %c0_77 = arith.constant 0 : index
    %150 = vector.load %arg7[%c3, %c0_76, %c0_77] : memref<5x128x128xbf16, #tpu.memory_space<vmem>>, vector<1x128x128xbf16>
    %151 = vector.shape_cast %150 : vector<1x128x128xbf16> to vector<128x128xbf16>
    %cst_78 = arith.constant dense<0.000000e+00> : vector<32x128xf32>
    %152 = tpu.matmul %149, %151, %cst_78 {dimension_numbers = #tpu.dot_dimension_numbers<[1], [0], [0], [1], [0, 0, 1, 1], [], []>} : vector<32x128xbf16>, vector<128x128xbf16>, vector<32x128xf32> -> vector<32x128xf32>
    %153 = arith.addf %134, %152 : vector<32x128xf32>
    %c30_i32 = arith.constant 30 : i32
    %154 = tpu.dynamic_rotate %92 by %c30_i32 dim 0 : vector<32x128xf32>, i32 -> vector<32x128xf32>
    %c2_i32_79 = arith.constant 2 : i32
    %155 = vector.broadcast %c2_i32_79 : i32 to vector<32x1xi32>
    %156 = arith.addi %2, %155 : vector<32x1xi32>
    %c0_i32_80 = arith.constant 0 : i32
    %157 = vector.broadcast %c0_i32_80 : i32 to vector<32x1xi32>
    %158 = arith.cmpi sge, %156, %157 : vector<32x1xi32>
    %c2_i32_81 = arith.constant 2 : i32
    %159 = vector.broadcast %c2_i32_81 : i32 to vector<32x1xi32>
    %160 = arith.addi %2, %159 : vector<32x1xi32>
    %c16_i32_82 = arith.constant 16 : i32
    %161 = vector.broadcast %c16_i32_82 : i32 to vector<32x1xi32>
    %162 = arith.cmpi slt, %160, %161 : vector<32x1xi32>
    %163 = arith.andi %158, %162 : vector<32x1xi1>
    %cst_83 = arith.constant 0.000000e+00 : f32
    %164 = vector.shape_cast %163 : vector<32x1xi1> to vector<32x1xi1>
    %165 = vector.broadcast %164 : vector<32x1xi1> to vector<32x128xi1>
    %166 = vector.broadcast %cst_83 : f32 to vector<32x128xf32>
    %167 = arith.select %165, %154, %166 : vector<32x128xi1>, vector<32x128xf32>
    %168 = arith.truncf %167 : vector<32x128xf32> to vector<32x128xbf16>
    %c4 = arith.constant 4 : index
    %c0_84 = arith.constant 0 : index
    %c0_85 = arith.constant 0 : index
    %169 = vector.load %arg7[%c4, %c0_84, %c0_85] : memref<5x128x128xbf16, #tpu.memory_space<vmem>>, vector<1x128x128xbf16>
    %170 = vector.shape_cast %169 : vector<1x128x128xbf16> to vector<128x128xbf16>
    %cst_86 = arith.constant dense<0.000000e+00> : vector<32x128xf32>
    %171 = tpu.matmul %168, %170, %cst_86 {dimension_numbers = #tpu.dot_dimension_numbers<[1], [0], [0], [1], [0, 0, 1, 1], [], []>} : vector<32x128xbf16>, vector<128x128xbf16>, vector<32x128xf32> -> vector<32x128xf32>
    %172 = arith.addf %153, %171 : vector<32x128xf32>
    %c2_i32_87 = arith.constant 2 : i32
    %173 = tpu.dynamic_rotate %172 by %c2_i32_87 dim 0 : vector<32x128xf32>, i32 -> vector<32x128xf32>
    %c-2_i32_88 = arith.constant -2 : i32
    %174 = vector.broadcast %c-2_i32_88 : i32 to vector<32x1xi32>
    %175 = arith.addi %2, %174 : vector<32x1xi32>
    %c0_i32_89 = arith.constant 0 : i32
    %176 = vector.broadcast %c0_i32_89 : i32 to vector<32x1xi32>
    %177 = arith.cmpi sge, %175, %176 : vector<32x1xi32>
    %c-2_i32_90 = arith.constant -2 : i32
    %178 = vector.broadcast %c-2_i32_90 : i32 to vector<32x1xi32>
    %179 = arith.addi %2, %178 : vector<32x1xi32>
    %c16_i32_91 = arith.constant 16 : i32
    %180 = vector.broadcast %c16_i32_91 : i32 to vector<32x1xi32>
    %181 = arith.cmpi slt, %179, %180 : vector<32x1xi32>
    %182 = arith.andi %177, %181 : vector<32x1xi1>
    %cst_92 = arith.constant 0.000000e+00 : f32
    %183 = vector.shape_cast %182 : vector<32x1xi1> to vector<32x1xi1>
    %184 = vector.broadcast %183 : vector<32x1xi1> to vector<32x128xi1>
    %185 = vector.broadcast %cst_92 : f32 to vector<32x128xf32>
    %186 = arith.select %184, %173, %185 : vector<32x128xi1>, vector<32x128xf32>
    %187 = arith.truncf %186 : vector<32x128xf32> to vector<32x128xbf16>
    %c0_93 = arith.constant 0 : index
    %c0_94 = arith.constant 0 : index
    %c0_95 = arith.constant 0 : index
    %188 = vector.load %arg8[%c0_93, %c0_94, %c0_95] : memref<5x128x128xbf16, #tpu.memory_space<vmem>>, vector<1x128x128xbf16>
    %189 = vector.shape_cast %188 : vector<1x128x128xbf16> to vector<128x128xbf16>
    %cst_96 = arith.constant dense<0.000000e+00> : vector<32x128xf32>
    %190 = tpu.matmul %187, %189, %cst_96 {dimension_numbers = #tpu.dot_dimension_numbers<[1], [0], [0], [1], [0, 0, 1, 1], [], []>} : vector<32x128xbf16>, vector<128x128xbf16>, vector<32x128xf32> -> vector<32x128xf32>
    %c1_i32_97 = arith.constant 1 : i32
    %191 = tpu.dynamic_rotate %172 by %c1_i32_97 dim 0 : vector<32x128xf32>, i32 -> vector<32x128xf32>
    %c-1_i32_98 = arith.constant -1 : i32
    %192 = vector.broadcast %c-1_i32_98 : i32 to vector<32x1xi32>
    %193 = arith.addi %2, %192 : vector<32x1xi32>
    %c0_i32_99 = arith.constant 0 : i32
    %194 = vector.broadcast %c0_i32_99 : i32 to vector<32x1xi32>
    %195 = arith.cmpi sge, %193, %194 : vector<32x1xi32>
    %c-1_i32_100 = arith.constant -1 : i32
    %196 = vector.broadcast %c-1_i32_100 : i32 to vector<32x1xi32>
    %197 = arith.addi %2, %196 : vector<32x1xi32>
    %c16_i32_101 = arith.constant 16 : i32
    %198 = vector.broadcast %c16_i32_101 : i32 to vector<32x1xi32>
    %199 = arith.cmpi slt, %197, %198 : vector<32x1xi32>
    %200 = arith.andi %195, %199 : vector<32x1xi1>
    %cst_102 = arith.constant 0.000000e+00 : f32
    %201 = vector.shape_cast %200 : vector<32x1xi1> to vector<32x1xi1>
    %202 = vector.broadcast %201 : vector<32x1xi1> to vector<32x128xi1>
    %203 = vector.broadcast %cst_102 : f32 to vector<32x128xf32>
    %204 = arith.select %202, %191, %203 : vector<32x128xi1>, vector<32x128xf32>
    %205 = arith.truncf %204 : vector<32x128xf32> to vector<32x128xbf16>
    %c1_103 = arith.constant 1 : index
    %c0_104 = arith.constant 0 : index
    %c0_105 = arith.constant 0 : index
    %206 = vector.load %arg8[%c1_103, %c0_104, %c0_105] : memref<5x128x128xbf16, #tpu.memory_space<vmem>>, vector<1x128x128xbf16>
    %207 = vector.shape_cast %206 : vector<1x128x128xbf16> to vector<128x128xbf16>
    %cst_106 = arith.constant dense<0.000000e+00> : vector<32x128xf32>
    %208 = tpu.matmul %205, %207, %cst_106 {dimension_numbers = #tpu.dot_dimension_numbers<[1], [0], [0], [1], [0, 0, 1, 1], [], []>} : vector<32x128xbf16>, vector<128x128xbf16>, vector<32x128xf32> -> vector<32x128xf32>
    %209 = arith.addf %190, %208 : vector<32x128xf32>
    %210 = arith.truncf %172 : vector<32x128xf32> to vector<32x128xbf16>
    %c2_107 = arith.constant 2 : index
    %c0_108 = arith.constant 0 : index
    %c0_109 = arith.constant 0 : index
    %211 = vector.load %arg8[%c2_107, %c0_108, %c0_109] : memref<5x128x128xbf16, #tpu.memory_space<vmem>>, vector<1x128x128xbf16>
    %212 = vector.shape_cast %211 : vector<1x128x128xbf16> to vector<128x128xbf16>
    %cst_110 = arith.constant dense<0.000000e+00> : vector<32x128xf32>
    %213 = tpu.matmul %210, %212, %cst_110 {dimension_numbers = #tpu.dot_dimension_numbers<[1], [0], [0], [1], [0, 0, 1, 1], [], []>} : vector<32x128xbf16>, vector<128x128xbf16>, vector<32x128xf32> -> vector<32x128xf32>
    %214 = arith.addf %209, %213 : vector<32x128xf32>
    %c31_i32_111 = arith.constant 31 : i32
    %215 = tpu.dynamic_rotate %172 by %c31_i32_111 dim 0 : vector<32x128xf32>, i32 -> vector<32x128xf32>
    %c1_i32_112 = arith.constant 1 : i32
    %216 = vector.broadcast %c1_i32_112 : i32 to vector<32x1xi32>
    %217 = arith.addi %2, %216 : vector<32x1xi32>
    %c0_i32_113 = arith.constant 0 : i32
    %218 = vector.broadcast %c0_i32_113 : i32 to vector<32x1xi32>
    %219 = arith.cmpi sge, %217, %218 : vector<32x1xi32>
    %c1_i32_114 = arith.constant 1 : i32
    %220 = vector.broadcast %c1_i32_114 : i32 to vector<32x1xi32>
    %221 = arith.addi %2, %220 : vector<32x1xi32>
    %c16_i32_115 = arith.constant 16 : i32
    %222 = vector.broadcast %c16_i32_115 : i32 to vector<32x1xi32>
    %223 = arith.cmpi slt, %221, %222 : vector<32x1xi32>
    %224 = arith.andi %219, %223 : vector<32x1xi1>
    %cst_116 = arith.constant 0.000000e+00 : f32
    %225 = vector.shape_cast %224 : vector<32x1xi1> to vector<32x1xi1>
    %226 = vector.broadcast %225 : vector<32x1xi1> to vector<32x128xi1>
    %227 = vector.broadcast %cst_116 : f32 to vector<32x128xf32>
    %228 = arith.select %226, %215, %227 : vector<32x128xi1>, vector<32x128xf32>
    %229 = arith.truncf %228 : vector<32x128xf32> to vector<32x128xbf16>
    %c3_117 = arith.constant 3 : index
    %c0_118 = arith.constant 0 : index
    %c0_119 = arith.constant 0 : index
    %230 = vector.load %arg8[%c3_117, %c0_118, %c0_119] : memref<5x128x128xbf16, #tpu.memory_space<vmem>>, vector<1x128x128xbf16>
    %231 = vector.shape_cast %230 : vector<1x128x128xbf16> to vector<128x128xbf16>
    %cst_120 = arith.constant dense<0.000000e+00> : vector<32x128xf32>
    %232 = tpu.matmul %229, %231, %cst_120 {dimension_numbers = #tpu.dot_dimension_numbers<[1], [0], [0], [1], [0, 0, 1, 1], [], []>} : vector<32x128xbf16>, vector<128x128xbf16>, vector<32x128xf32> -> vector<32x128xf32>
    %233 = arith.addf %214, %232 : vector<32x128xf32>
    %c30_i32_121 = arith.constant 30 : i32
    %234 = tpu.dynamic_rotate %172 by %c30_i32_121 dim 0 : vector<32x128xf32>, i32 -> vector<32x128xf32>
    %c2_i32_122 = arith.constant 2 : i32
    %235 = vector.broadcast %c2_i32_122 : i32 to vector<32x1xi32>
    %236 = arith.addi %2, %235 : vector<32x1xi32>
    %c0_i32_123 = arith.constant 0 : i32
    %237 = vector.broadcast %c0_i32_123 : i32 to vector<32x1xi32>
    %238 = arith.cmpi sge, %236, %237 : vector<32x1xi32>
    %c2_i32_124 = arith.constant 2 : i32
    %239 = vector.broadcast %c2_i32_124 : i32 to vector<32x1xi32>
    %240 = arith.addi %2, %239 : vector<32x1xi32>
    %c16_i32_125 = arith.constant 16 : i32
    %241 = vector.broadcast %c16_i32_125 : i32 to vector<32x1xi32>
    %242 = arith.cmpi slt, %240, %241 : vector<32x1xi32>
    %243 = arith.andi %238, %242 : vector<32x1xi1>
    %cst_126 = arith.constant 0.000000e+00 : f32
    %244 = vector.shape_cast %243 : vector<32x1xi1> to vector<32x1xi1>
    %245 = vector.broadcast %244 : vector<32x1xi1> to vector<32x128xi1>
    %246 = vector.broadcast %cst_126 : f32 to vector<32x128xf32>
    %247 = arith.select %245, %234, %246 : vector<32x128xi1>, vector<32x128xf32>
    %248 = arith.truncf %247 : vector<32x128xf32> to vector<32x128xbf16>
    %c4_127 = arith.constant 4 : index
    %c0_128 = arith.constant 0 : index
    %c0_129 = arith.constant 0 : index
    %249 = vector.load %arg8[%c4_127, %c0_128, %c0_129] : memref<5x128x128xbf16, #tpu.memory_space<vmem>>, vector<1x128x128xbf16>
    %250 = vector.shape_cast %249 : vector<1x128x128xbf16> to vector<128x128xbf16>
    %cst_130 = arith.constant dense<0.000000e+00> : vector<32x128xf32>
    %251 = tpu.matmul %248, %250, %cst_130 {dimension_numbers = #tpu.dot_dimension_numbers<[1], [0], [0], [1], [0, 0, 1, 1], [], []>} : vector<32x128xbf16>, vector<128x128xbf16>, vector<32x128xf32> -> vector<32x128xf32>
    %252 = arith.addf %233, %251 : vector<32x128xf32>
    %c2_i32_131 = arith.constant 2 : i32
    %253 = tpu.dynamic_rotate %252 by %c2_i32_131 dim 0 : vector<32x128xf32>, i32 -> vector<32x128xf32>
    %c-2_i32_132 = arith.constant -2 : i32
    %254 = vector.broadcast %c-2_i32_132 : i32 to vector<32x1xi32>
    %255 = arith.addi %2, %254 : vector<32x1xi32>
    %c0_i32_133 = arith.constant 0 : i32
    %256 = vector.broadcast %c0_i32_133 : i32 to vector<32x1xi32>
    %257 = arith.cmpi sge, %255, %256 : vector<32x1xi32>
    %c-2_i32_134 = arith.constant -2 : i32
    %258 = vector.broadcast %c-2_i32_134 : i32 to vector<32x1xi32>
    %259 = arith.addi %2, %258 : vector<32x1xi32>
    %c16_i32_135 = arith.constant 16 : i32
    %260 = vector.broadcast %c16_i32_135 : i32 to vector<32x1xi32>
    %261 = arith.cmpi slt, %259, %260 : vector<32x1xi32>
    %262 = arith.andi %257, %261 : vector<32x1xi1>
    %cst_136 = arith.constant 0.000000e+00 : f32
    %263 = vector.shape_cast %262 : vector<32x1xi1> to vector<32x1xi1>
    %264 = vector.broadcast %263 : vector<32x1xi1> to vector<32x128xi1>
    %265 = vector.broadcast %cst_136 : f32 to vector<32x128xf32>
    %266 = arith.select %264, %253, %265 : vector<32x128xi1>, vector<32x128xf32>
    %267 = arith.truncf %266 : vector<32x128xf32> to vector<32x128xbf16>
    %c0_137 = arith.constant 0 : index
    %c0_138 = arith.constant 0 : index
    %c0_139 = arith.constant 0 : index
    %268 = vector.load %arg9[%c0_137, %c0_138, %c0_139] : memref<5x128x128xbf16, #tpu.memory_space<vmem>>, vector<1x128x128xbf16>
    %269 = vector.shape_cast %268 : vector<1x128x128xbf16> to vector<128x128xbf16>
    %cst_140 = arith.constant dense<0.000000e+00> : vector<32x128xf32>
    %270 = tpu.matmul %267, %269, %cst_140 {dimension_numbers = #tpu.dot_dimension_numbers<[1], [0], [0], [1], [0, 0, 1, 1], [], []>} : vector<32x128xbf16>, vector<128x128xbf16>, vector<32x128xf32> -> vector<32x128xf32>
    %c1_i32_141 = arith.constant 1 : i32
    %271 = tpu.dynamic_rotate %252 by %c1_i32_141 dim 0 : vector<32x128xf32>, i32 -> vector<32x128xf32>
    %c-1_i32_142 = arith.constant -1 : i32
    %272 = vector.broadcast %c-1_i32_142 : i32 to vector<32x1xi32>
    %273 = arith.addi %2, %272 : vector<32x1xi32>
    %c0_i32_143 = arith.constant 0 : i32
    %274 = vector.broadcast %c0_i32_143 : i32 to vector<32x1xi32>
    %275 = arith.cmpi sge, %273, %274 : vector<32x1xi32>
    %c-1_i32_144 = arith.constant -1 : i32
    %276 = vector.broadcast %c-1_i32_144 : i32 to vector<32x1xi32>
    %277 = arith.addi %2, %276 : vector<32x1xi32>
    %c16_i32_145 = arith.constant 16 : i32
    %278 = vector.broadcast %c16_i32_145 : i32 to vector<32x1xi32>
    %279 = arith.cmpi slt, %277, %278 : vector<32x1xi32>
    %280 = arith.andi %275, %279 : vector<32x1xi1>
    %cst_146 = arith.constant 0.000000e+00 : f32
    %281 = vector.shape_cast %280 : vector<32x1xi1> to vector<32x1xi1>
    %282 = vector.broadcast %281 : vector<32x1xi1> to vector<32x128xi1>
    %283 = vector.broadcast %cst_146 : f32 to vector<32x128xf32>
    %284 = arith.select %282, %271, %283 : vector<32x128xi1>, vector<32x128xf32>
    %285 = arith.truncf %284 : vector<32x128xf32> to vector<32x128xbf16>
    %c1_147 = arith.constant 1 : index
    %c0_148 = arith.constant 0 : index
    %c0_149 = arith.constant 0 : index
    %286 = vector.load %arg9[%c1_147, %c0_148, %c0_149] : memref<5x128x128xbf16, #tpu.memory_space<vmem>>, vector<1x128x128xbf16>
    %287 = vector.shape_cast %286 : vector<1x128x128xbf16> to vector<128x128xbf16>
    %cst_150 = arith.constant dense<0.000000e+00> : vector<32x128xf32>
    %288 = tpu.matmul %285, %287, %cst_150 {dimension_numbers = #tpu.dot_dimension_numbers<[1], [0], [0], [1], [0, 0, 1, 1], [], []>} : vector<32x128xbf16>, vector<128x128xbf16>, vector<32x128xf32> -> vector<32x128xf32>
    %289 = arith.addf %270, %288 : vector<32x128xf32>
    %290 = arith.truncf %252 : vector<32x128xf32> to vector<32x128xbf16>
    %c2_151 = arith.constant 2 : index
    %c0_152 = arith.constant 0 : index
    %c0_153 = arith.constant 0 : index
    %291 = vector.load %arg9[%c2_151, %c0_152, %c0_153] : memref<5x128x128xbf16, #tpu.memory_space<vmem>>, vector<1x128x128xbf16>
    %292 = vector.shape_cast %291 : vector<1x128x128xbf16> to vector<128x128xbf16>
    %cst_154 = arith.constant dense<0.000000e+00> : vector<32x128xf32>
    %293 = tpu.matmul %290, %292, %cst_154 {dimension_numbers = #tpu.dot_dimension_numbers<[1], [0], [0], [1], [0, 0, 1, 1], [], []>} : vector<32x128xbf16>, vector<128x128xbf16>, vector<32x128xf32> -> vector<32x128xf32>
    %294 = arith.addf %289, %293 : vector<32x128xf32>
    %c31_i32_155 = arith.constant 31 : i32
    %295 = tpu.dynamic_rotate %252 by %c31_i32_155 dim 0 : vector<32x128xf32>, i32 -> vector<32x128xf32>
    %c1_i32_156 = arith.constant 1 : i32
    %296 = vector.broadcast %c1_i32_156 : i32 to vector<32x1xi32>
    %297 = arith.addi %2, %296 : vector<32x1xi32>
    %c0_i32_157 = arith.constant 0 : i32
    %298 = vector.broadcast %c0_i32_157 : i32 to vector<32x1xi32>
    %299 = arith.cmpi sge, %297, %298 : vector<32x1xi32>
    %c1_i32_158 = arith.constant 1 : i32
    %300 = vector.broadcast %c1_i32_158 : i32 to vector<32x1xi32>
    %301 = arith.addi %2, %300 : vector<32x1xi32>
    %c16_i32_159 = arith.constant 16 : i32
    %302 = vector.broadcast %c16_i32_159 : i32 to vector<32x1xi32>
    %303 = arith.cmpi slt, %301, %302 : vector<32x1xi32>
    %304 = arith.andi %299, %303 : vector<32x1xi1>
    %cst_160 = arith.constant 0.000000e+00 : f32
    %305 = vector.shape_cast %304 : vector<32x1xi1> to vector<32x1xi1>
    %306 = vector.broadcast %305 : vector<32x1xi1> to vector<32x128xi1>
    %307 = vector.broadcast %cst_160 : f32 to vector<32x128xf32>
    %308 = arith.select %306, %295, %307 : vector<32x128xi1>, vector<32x128xf32>
    %309 = arith.truncf %308 : vector<32x128xf32> to vector<32x128xbf16>
    %c3_161 = arith.constant 3 : index
    %c0_162 = arith.constant 0 : index
    %c0_163 = arith.constant 0 : index
    %310 = vector.load %arg9[%c3_161, %c0_162, %c0_163] : memref<5x128x128xbf16, #tpu.memory_space<vmem>>, vector<1x128x128xbf16>
    %311 = vector.shape_cast %310 : vector<1x128x128xbf16> to vector<128x128xbf16>
    %cst_164 = arith.constant dense<0.000000e+00> : vector<32x128xf32>
    %312 = tpu.matmul %309, %311, %cst_164 {dimension_numbers = #tpu.dot_dimension_numbers<[1], [0], [0], [1], [0, 0, 1, 1], [], []>} : vector<32x128xbf16>, vector<128x128xbf16>, vector<32x128xf32> -> vector<32x128xf32>
    %313 = arith.addf %294, %312 : vector<32x128xf32>
    %c30_i32_165 = arith.constant 30 : i32
    %314 = tpu.dynamic_rotate %252 by %c30_i32_165 dim 0 : vector<32x128xf32>, i32 -> vector<32x128xf32>
    %c2_i32_166 = arith.constant 2 : i32
    %315 = vector.broadcast %c2_i32_166 : i32 to vector<32x1xi32>
    %316 = arith.addi %2, %315 : vector<32x1xi32>
    %c0_i32_167 = arith.constant 0 : i32
    %317 = vector.broadcast %c0_i32_167 : i32 to vector<32x1xi32>
    %318 = arith.cmpi sge, %316, %317 : vector<32x1xi32>
    %c2_i32_168 = arith.constant 2 : i32
    %319 = vector.broadcast %c2_i32_168 : i32 to vector<32x1xi32>
    %320 = arith.addi %2, %319 : vector<32x1xi32>
    %c16_i32_169 = arith.constant 16 : i32
    %321 = vector.broadcast %c16_i32_169 : i32 to vector<32x1xi32>
    %322 = arith.cmpi slt, %320, %321 : vector<32x1xi32>
    %323 = arith.andi %318, %322 : vector<32x1xi1>
    %cst_170 = arith.constant 0.000000e+00 : f32
    %324 = vector.shape_cast %323 : vector<32x1xi1> to vector<32x1xi1>
    %325 = vector.broadcast %324 : vector<32x1xi1> to vector<32x128xi1>
    %326 = vector.broadcast %cst_170 : f32 to vector<32x128xf32>
    %327 = arith.select %325, %314, %326 : vector<32x128xi1>, vector<32x128xf32>
    %328 = arith.truncf %327 : vector<32x128xf32> to vector<32x128xbf16>
    %c4_171 = arith.constant 4 : index
    %c0_172 = arith.constant 0 : index
    %c0_173 = arith.constant 0 : index
    %329 = vector.load %arg9[%c4_171, %c0_172, %c0_173] : memref<5x128x128xbf16, #tpu.memory_space<vmem>>, vector<1x128x128xbf16>
    %330 = vector.shape_cast %329 : vector<1x128x128xbf16> to vector<128x128xbf16>
    %cst_174 = arith.constant dense<0.000000e+00> : vector<32x128xf32>
    %331 = tpu.matmul %328, %330, %cst_174 {dimension_numbers = #tpu.dot_dimension_numbers<[1], [0], [0], [1], [0, 0, 1, 1], [], []>} : vector<32x128xbf16>, vector<128x128xbf16>, vector<32x128xf32> -> vector<32x128xf32>
    %332 = arith.addf %313, %331 : vector<32x128xf32>
    %333 = arith.truncf %92 : vector<32x128xf32> to vector<32x128xbf16>
    %c0_175 = arith.constant 0 : index
    %c0_176 = arith.constant 0 : index
    %334 = vector.load %arg10[%c0_175, %c0_176] : memref<128x128xbf16, #tpu.memory_space<vmem>>, vector<128x128xbf16>
    %cst_177 = arith.constant dense<0.000000e+00> : vector<32x128xf32>
    %335 = tpu.matmul %333, %334, %cst_177 {dimension_numbers = #tpu.dot_dimension_numbers<[1], [0], [0], [1], [0, 0, 1, 1], [], []>} : vector<32x128xbf16>, vector<128x128xbf16>, vector<32x128xf32> -> vector<32x128xf32>
    %336 = arith.truncf %332 : vector<32x128xf32> to vector<32x128xbf16>
    %c0_178 = arith.constant 0 : index
    %c0_179 = arith.constant 0 : index
    %337 = vector.load %arg11[%c0_178, %c0_179] : memref<128x128xbf16, #tpu.memory_space<vmem>>, vector<128x128xbf16>
    %cst_180 = arith.constant dense<0.000000e+00> : vector<32x128xf32>
    %338 = tpu.matmul %336, %337, %cst_180 {dimension_numbers = #tpu.dot_dimension_numbers<[1], [0], [0], [1], [0, 0, 1, 1], [], []>} : vector<32x128xbf16>, vector<128x128xbf16>, vector<32x128xf32> -> vector<32x128xf32>
    %339 = arith.addf %335, %338 : vector<32x128xf32>
    %c0_181 = arith.constant 0 : index
    %c0_182 = arith.constant 0 : index
    %340 = vector.load %arg12[%c0_181, %c0_182] : memref<1x128xf32, #tpu.memory_space<vmem>>, vector<1x128xf32>
    %341 = vector.broadcast %340 : vector<1x128xf32> to vector<32x128xf32>
    %342 = arith.addf %339, %341 : vector<32x128xf32>
    %343 = arith.truncf %1 : vector<32x64xf32> to vector<32x64xbf16>
    %c0_183 = arith.constant 0 : index
    %c0_184 = arith.constant 0 : index
    %344 = vector.load %arg13[%c0_183, %c0_184] : memref<64x128xbf16, #tpu.memory_space<vmem>>, vector<64x128xbf16>
    %cst_185 = arith.constant dense<0.000000e+00> : vector<32x128xf32>
    %345 = tpu.matmul %343, %344, %cst_185 {dimension_numbers = #tpu.dot_dimension_numbers<[1], [0], [0], [1], [0, 0, 1, 1], [], []>} : vector<32x64xbf16>, vector<64x128xbf16>, vector<32x128xf32> -> vector<32x128xf32>
    %346 = arith.addf %342, %345 : vector<32x128xf32>
    %c31_i32_186 = arith.constant 31 : i32
    %347 = tpu.dynamic_rotate %346 by %c31_i32_186 dim 0 : vector<32x128xf32>, i32 -> vector<32x128xf32>
    %c1_i32_187 = arith.constant 1 : i32
    %348 = vector.broadcast %c1_i32_187 : i32 to vector<32x1xi32>
    %349 = arith.addi %2, %348 : vector<32x1xi32>
    %c0_i32_188 = arith.constant 0 : i32
    %350 = vector.broadcast %c0_i32_188 : i32 to vector<32x1xi32>
    %351 = arith.cmpi sge, %349, %350 : vector<32x1xi32>
    %c1_i32_189 = arith.constant 1 : i32
    %352 = vector.broadcast %c1_i32_189 : i32 to vector<32x1xi32>
    %353 = arith.addi %2, %352 : vector<32x1xi32>
    %c16_i32_190 = arith.constant 16 : i32
    %354 = vector.broadcast %c16_i32_190 : i32 to vector<32x1xi32>
    %355 = arith.cmpi slt, %353, %354 : vector<32x1xi32>
    %356 = arith.andi %351, %355 : vector<32x1xi1>
    %cst_191 = arith.constant 0.000000e+00 : f32
    %357 = vector.shape_cast %356 : vector<32x1xi1> to vector<32x1xi1>
    %358 = vector.broadcast %357 : vector<32x1xi1> to vector<32x128xi1>
    %359 = vector.broadcast %cst_191 : f32 to vector<32x128xf32>
    %360 = arith.select %358, %347, %359 : vector<32x128xi1>, vector<32x128xf32>
    %361 = arith.maximumf %346, %360 : vector<32x128xf32>
    %c0_192 = arith.constant 0 : index
    %c0_193 = arith.constant 0 : index
    %362 = vector.load %arg14[%c0_192, %c0_193] : memref<16x32xbf16, #tpu.memory_space<vmem>>, vector<16x32xbf16>
    %363 = arith.truncf %361 : vector<32x128xf32> to vector<32x128xbf16>
    %cst_194 = arith.constant dense<0.000000e+00> : vector<16x128xf32>
    %364 = tpu.matmul %362, %363, %cst_194 {dimension_numbers = #tpu.dot_dimension_numbers<[1], [0], [0], [1], [0, 0, 1, 1], [], []>} : vector<16x32xbf16>, vector<32x128xbf16>, vector<16x128xf32> -> vector<16x128xf32>
    %365 = arith.truncf %364 : vector<16x128xf32> to vector<16x128xbf16>
    %c0_195 = arith.constant 0 : index
    %c0_196 = arith.constant 0 : index
    %c0_197 = arith.constant 0 : index
    %366 = vector.load %arg15[%c0_195, %c0_196, %c0_197] : memref<2x128x64xbf16, #tpu.memory_space<vmem>>, vector<1x128x64xbf16>
    %367 = vector.shape_cast %366 : vector<1x128x64xbf16> to vector<128x64xbf16>
    %cst_198 = arith.constant dense<0.000000e+00> : vector<16x64xf32>
    %368 = tpu.matmul %365, %367, %cst_198 {dimension_numbers = #tpu.dot_dimension_numbers<[1], [0], [0], [1], [0, 0, 1, 1], [], []>} : vector<16x128xbf16>, vector<128x64xbf16>, vector<16x64xf32> -> vector<16x64xf32>
    %c1_199 = arith.constant 1 : index
    %c0_200 = arith.constant 0 : index
    %c0_201 = arith.constant 0 : index
    %369 = vector.load %arg15[%c1_199, %c0_200, %c0_201] : memref<2x128x64xbf16, #tpu.memory_space<vmem>>, vector<1x128x64xbf16>
    %370 = vector.shape_cast %369 : vector<1x128x64xbf16> to vector<128x64xbf16>
    %cst_202 = arith.constant dense<0.000000e+00> : vector<16x64xf32>
    %371 = tpu.matmul %365, %370, %cst_202 {dimension_numbers = #tpu.dot_dimension_numbers<[1], [0], [0], [1], [0, 0, 1, 1], [], []>} : vector<16x128xbf16>, vector<128x64xbf16>, vector<16x64xf32> -> vector<16x64xf32>
    %372 = arith.maximumf %368, %371 : vector<16x64xf32>
    %cst_203 = arith.constant 0.000000e+00 : f32
    %373 = vector.broadcast %cst_203 : f32 to vector<16x64xf32>
    %374 = arith.maximumf %372, %373 : vector<16x64xf32>
    %375 = vector.shape_cast %374 : vector<16x64xf32> to vector<2x8x64xf32>
    %c0_204 = arith.constant 0 : index
    %c0_205 = arith.constant 0 : index
    %c0_206 = arith.constant 0 : index
    %376 = vector.load %arg16[%c0_204, %c0_205, %c0_206] : memref<2x8x64xf32, #tpu.memory_space<vmem>>, vector<2x8x64xf32>
    tpu.vector_store %arg16[%c0_204, %c0_205, %c0_206], %375 {strides = array<i32>} : memref<2x8x64xf32, #tpu.memory_space<vmem>>, vector<2x8x64xf32>,
    return
  }
  func.func @transform_0(%arg0: i32) -> (i32, i32, i32) {
    %c0_i32 = arith.constant 0 : i32
    %c0_i32_0 = arith.constant 0 : i32
    %c0_i32_1 = arith.constant 0 : i32
    return %arg0, %c0_i32, %c0_i32_0 : i32, i32, i32
  }
  func.func @transform_1(%arg0: i32) -> (i32, i32) {
    %c0_i32 = arith.constant 0 : i32
    %c0_i32_0 = arith.constant 0 : i32
    %c0_i32_1 = arith.constant 0 : i32
    return %c0_i32, %c0_i32_0 : i32, i32
  }
  func.func @transform_2(%arg0: i32) -> (i32, i32, i32) {
    %c0_i32 = arith.constant 0 : i32
    %c0_i32_0 = arith.constant 0 : i32
    %c0_i32_1 = arith.constant 0 : i32
    %c0_i32_2 = arith.constant 0 : i32
    return %c0_i32, %c0_i32_0, %c0_i32_1 : i32, i32, i32
  }
  func.func @transform_3(%arg0: i32) -> (i32, i32) {
    %c0_i32 = arith.constant 0 : i32
    %c0_i32_0 = arith.constant 0 : i32
    %c0_i32_1 = arith.constant 0 : i32
    return %c0_i32, %c0_i32_0 : i32, i32
  }
  func.func @transform_4(%arg0: i32) -> (i32, i32, i32) {
    %c0_i32 = arith.constant 0 : i32
    %c0_i32_0 = arith.constant 0 : i32
    %c0_i32_1 = arith.constant 0 : i32
    %c0_i32_2 = arith.constant 0 : i32
    return %c0_i32, %c0_i32_0, %c0_i32_1 : i32, i32, i32
  }
  func.func @transform_5(%arg0: i32) -> (i32, i32) {
    %c0_i32 = arith.constant 0 : i32
    %c0_i32_0 = arith.constant 0 : i32
    %c0_i32_1 = arith.constant 0 : i32
    return %c0_i32, %c0_i32_0 : i32, i32
  }
  func.func @transform_6(%arg0: i32) -> (i32, i32, i32) {
    %c0_i32 = arith.constant 0 : i32
    %c0_i32_0 = arith.constant 0 : i32
    %c0_i32_1 = arith.constant 0 : i32
    %c0_i32_2 = arith.constant 0 : i32
    return %c0_i32, %c0_i32_0, %c0_i32_1 : i32, i32, i32
  }
  func.func @transform_7(%arg0: i32) -> (i32, i32, i32) {
    %c0_i32 = arith.constant 0 : i32
    %c0_i32_0 = arith.constant 0 : i32
    %c0_i32_1 = arith.constant 0 : i32
    %c0_i32_2 = arith.constant 0 : i32
    return %c0_i32, %c0_i32_0, %c0_i32_1 : i32, i32, i32
  }
  func.func @transform_8(%arg0: i32) -> (i32, i32, i32) {
    %c0_i32 = arith.constant 0 : i32
    %c0_i32_0 = arith.constant 0 : i32
    %c0_i32_1 = arith.constant 0 : i32
    %c0_i32_2 = arith.constant 0 : i32
    return %c0_i32, %c0_i32_0, %c0_i32_1 : i32, i32, i32
  }
  func.func @transform_9(%arg0: i32) -> (i32, i32) {
    %c0_i32 = arith.constant 0 : i32
    %c0_i32_0 = arith.constant 0 : i32
    %c0_i32_1 = arith.constant 0 : i32
    return %c0_i32, %c0_i32_0 : i32, i32
  }
  func.func @transform_10(%arg0: i32) -> (i32, i32) {
    %c0_i32 = arith.constant 0 : i32
    %c0_i32_0 = arith.constant 0 : i32
    %c0_i32_1 = arith.constant 0 : i32
    return %c0_i32, %c0_i32_0 : i32, i32
  }
  func.func @transform_11(%arg0: i32) -> (i32, i32) {
    %c0_i32 = arith.constant 0 : i32
    %c0_i32_0 = arith.constant 0 : i32
    %c0_i32_1 = arith.constant 0 : i32
    return %c0_i32, %c0_i32_0 : i32, i32
  }
  func.func @transform_12(%arg0: i32) -> (i32, i32) {
    %c0_i32 = arith.constant 0 : i32
    %c0_i32_0 = arith.constant 0 : i32
    %c0_i32_1 = arith.constant 0 : i32
    return %c0_i32, %c0_i32_0 : i32, i32
  }
  func.func @transform_13(%arg0: i32) -> (i32, i32) {
    %c0_i32 = arith.constant 0 : i32
    %c0_i32_0 = arith.constant 0 : i32
    %c0_i32_1 = arith.constant 0 : i32
    return %c0_i32, %c0_i32_0 : i32, i32
  }
  func.func @transform_14(%arg0: i32) -> (i32, i32, i32) {
    %c0_i32 = arith.constant 0 : i32
    %c0_i32_0 = arith.constant 0 : i32
    %c0_i32_1 = arith.constant 0 : i32
    %c0_i32_2 = arith.constant 0 : i32
    return %c0_i32, %c0_i32_0, %c0_i32_1 : i32, i32, i32
  }
  func.func @transform_15(%arg0: i32) -> (i32, i32, i32) {
    %c0_i32 = arith.constant 0 : i32
    %c0_i32_0 = arith.constant 0 : i32
    %c0_i32_1 = arith.constant 0 : i32
    return %arg0, %c0_i32, %c0_i32_0 : i32, i32, i32
  }
}

</mosaic_0001>

<llo_original>
// kernel: tpu_custom_call.1
$region0: #{tpu_custom_call.1}
  #allocation0 [shape = 'u32[]', space=smem, size = 0x4, offset = 0x4, fixed_abs, tag = 'smem constant byte address 0x4 - core index']
  #allocation1 [shape = 'u32[144,128]{1,0:T(1,128)}', space=vmem, size = 0x12000, scoped, tag = 'internal scratch']
  %s0 = inlined_call_operand.vmem [shape: f32[2,16,64], index: 0, kind: input, shape index: {}]
  %s1 = inlined_call_operand.vmem [shape: s32[32,1], index: 1, kind: input, shape index: {}]
  %s2 = inlined_call_operand.hbm [shape: bf16[3,64,128], index: 2, kind: input, shape index: {}]
  %s3 = inlined_call_operand.hbm [shape: f32[1,128], index: 3, kind: input, shape index: {}]
  %s4 = inlined_call_operand.vmem [shape: bf16[3,128,128], index: 4, kind: input, shape index: {}]
  %s5 = inlined_call_operand.hbm [shape: f32[1,128], index: 5, kind: input, shape index: {}]
  %s6 = inlined_call_operand.hbm [shape: bf16[5,128,128], index: 6, kind: input, shape index: {}]
  %s7 = inlined_call_operand.hbm [shape: bf16[5,128,128], index: 7, kind: input, shape index: {}]
  %s8 = inlined_call_operand.hbm [shape: bf16[5,128,128], index: 8, kind: input, shape index: {}]
  %s9 = inlined_call_operand.hbm [shape: bf16[128,128], index: 9, kind: input, shape index: {}]
  %s10 = inlined_call_operand.hbm [shape: bf16[128,128], index: 10, kind: input, shape index: {}]
  %s11 = inlined_call_operand.vmem [shape: f32[1,128], index: 11, kind: input, shape index: {}]
  %s12 = inlined_call_operand.hbm [shape: bf16[64,128], index: 12, kind: input, shape index: {}]
  %s13 = inlined_call_operand.vmem [shape: bf16[16,32], index: 13, kind: input, shape index: {}]
  %s14 = inlined_call_operand.vmem [shape: bf16[2,128,64], index: 14, kind: input, shape index: {}]
  %s15 = inlined_call_operand.hbm [shape: f32[2,8,64], index: 15, kind: output, shape index: {}]
  %s16 = sld [smem:[#allocation0]]
  $region106: #{tpu_custom_call.1} parent=0
    _
  %s18 = ssub.s32 1, %s16
  %s19 = scalar_select 0, %s18, %s16
  $region1: #{tpu_custom_call.1} parent=0
    #allocation2 [shape = 'u8[49152]{0}', space=vmem, size = 0xc000, scoped, tag = 'input window, operand 2, single buffered']
    #allocation3 [shape = 's32[1]{0}', space=sflag, size = 0x4, scoped, tag = 'scoped memory for tpu_custom_call.1']
    #allocation4 [shape = 's32[1]{0}', space=sflag, size = 0x4, scoped, tag = 'scoped memory for tpu_custom_call.1']
    #allocation5 [shape = 'u8[512]{0}', space=vmem, size = 0x400, scoped, tag = 'input window, operand 3, single buffered']
    #allocation6 [shape = 's32[1]{0}', space=sflag, size = 0x4, scoped, tag = 'scoped memory for tpu_custom_call.1']
    #allocation7 [shape = 'u8[512]{0}', space=vmem, size = 0x400, scoped, tag = 'input window, operand 5, single buffered']
    #allocation8 [shape = 'u8[163840]{0}', space=vmem, size = 0x28000, scoped, tag = 'input window, operand 6, single buffered']
    #allocation9 [shape = 's32[1]{0}', space=sflag, size = 0x4, scoped, tag = 'scoped memory for tpu_custom_call.1']
    #allocation10 [shape = 'u8[163840]{0}', space=vmem, size = 0x28000, scoped, tag = 'input window, operand 7, single buffered']
    #allocation11 [shape = 'u8[163840]{0}', space=vmem, size = 0x28000, scoped, tag = 'input window, operand 8, single buffered']
    #allocation12 [shape = 's32[1]{0}', space=sflag, size = 0x4, scoped, tag = 'scoped memory for tpu_custom_call.1']
    #allocation13 [shape = 'u8[32768]{0}', space=vmem, size = 0x8000, scoped, tag = 'input window, operand 9, single buffered']
    #allocation14 [shape = 'u8[32768]{0}', space=vmem, size = 0x8000, scoped, tag = 'input window, operand 10, single buffered']
    #allocation15 [shape = 's32[1]{0}', space=sflag, size = 0x4, scoped, tag = 'scoped memory for tpu_custom_call.1']
    #allocation16 [shape = 'u8[16384]{0}', space=vmem, size = 0x4000, scoped, tag = 'input window, operand 12, single buffered']
    #allocation17 [shape = 'u8[8192]{0}', space=vmem, size = 0x2000, scoped, tag = 'output window, operand 0, single buffered']
    %20 = vsyncpa [#allocation3], 0
    %21 = vsyncpa [#allocation6], 0
    %22 = vsyncpa [#allocation9], 0
    %23 = vsyncpa [#allocation12], 0
    %24 = vsyncpa [#allocation15], 0
    %25 = vsyncpa [#allocation4], 0
    // Predicated region
    $region2: #{tpu_custom_call.1} parent=1 // pred_check
      _
    $region3: #{tpu_custom_call.1} parent=1 // pred_check_branch
      %27 = sbr.rel (0) target = $region5
    $region4: #{tpu_custom_call.1} parent=1 // pred_region
      _
    $region5: #{tpu_custom_call.1} parent=1 // pred_fallthru
      _
    // Predicated region
    $region6: #{tpu_custom_call.1} parent=1 // pred_check
      _
    $region7: #{tpu_custom_call.1} parent=1 // pred_check_branch
      %29 = sbr.rel (0) target = $region9
    $region8: #{tpu_custom_call.1} parent=1 // pred_region
      _
    $region9: #{tpu_custom_call.1} parent=1 // pred_fallthru
      _
    // Predicated region
    $region10: #{tpu_custom_call.1} parent=1 // pred_check
      _
    $region11: #{tpu_custom_call.1} parent=1 // pred_check_branch
      %31 = sbr.rel (0) target = $region13
    $region12: #{tpu_custom_call.1} parent=1 // pred_region
      %s33 = ssub.s32 1536, 1536
      %34 = vsyncadd [#allocation3], %s33
      %s35 = sshll.u32 [#allocation2], 4
      %s36 = int_to_ptr.vmem [resolvable:$true] %s35
      %41 = dma.hbm_to_vmem [thread:$0]  %s2, 1536, %s36, [#allocation3], 64, 64, 4
    $region13: #{tpu_custom_call.1} parent=1 // pred_fallthru
      _
    // Predicated region
    $region14: #{tpu_custom_call.1} parent=1 // pred_check
      _
    $region15: #{tpu_custom_call.1} parent=1 // pred_check_branch
      %43 = sbr.rel (0) target = $region17
    $region16: #{tpu_custom_call.1} parent=1 // pred_region
      %s45 = ssub.s32 16, 16
      %46 = vsyncadd [#allocation6], %s45
      %s48 = sshll.u32 [#allocation5], 4
      %s49 = int_to_ptr.vmem [resolvable:$true] %s48
      %51 = dma.hbm_to_vmem [thread:$0]  %s3, 16, %s49, [#allocation6]
    $region17: #{tpu_custom_call.1} parent=1 // pred_fallthru
      _
    // Predicated region
    $region18: #{tpu_custom_call.1} parent=1 // pred_check
      _
    $region19: #{tpu_custom_call.1} parent=1 // pred_check_branch
      %53 = sbr.rel (0) target = $region21
    $region20: #{tpu_custom_call.1} parent=1 // pred_region
      _
    $region21: #{tpu_custom_call.1} parent=1 // pred_fallthru
      _
    // Predicated region
    $region22: #{tpu_custom_call.1} parent=1 // pred_check
      _
    $region23: #{tpu_custom_call.1} parent=1 // pred_check_branch
      %55 = sbr.rel (0) target = $region25
    $region24: #{tpu_custom_call.1} parent=1 // pred_region
      %s57 = ssub.s32 16, 16
      %58 = vsyncadd [#allocation6], %s57
      %s60 = sshll.u32 [#allocation7], 4
      %s61 = int_to_ptr.vmem [resolvable:$true] %s60
      %63 = dma.hbm_to_vmem [thread:$0]  %s5, 16, %s61, [#allocation6]
    $region25: #{tpu_custom_call.1} parent=1 // pred_fallthru
      _
    // Predicated region
    $region26: #{tpu_custom_call.1} parent=1 // pred_check
      _
    $region27: #{tpu_custom_call.1} parent=1 // pred_check_branch
      %65 = sbr.rel (0) target = $region29
    $region28: #{tpu_custom_call.1} parent=1 // pred_region
      %s67 = ssub.s32 5120, 5120
      %68 = vsyncadd [#allocation9], %s67
      %s69 = sshll.u32 [#allocation8], 4
      %s70 = int_to_ptr.vmem [resolvable:$true] %s69
      %75 = dma.hbm_to_vmem [thread:$0]  %s6, 5120, %s70, [#allocation9], 64, 64, 4
    $region29: #{tpu_custom_call.1} parent=1 // pred_fallthru
      _
    // Predicated region
    $region30: #{tpu_custom_call.1} parent=1 // pred_check
      _
    $region31: #{tpu_custom_call.1} parent=1 // pred_check_branch
      %77 = sbr.rel (0) target = $region33
    $region32: #{tpu_custom_call.1} parent=1 // pred_region
      %s79 = ssub.s32 5120, 5120
      %80 = vsyncadd [#allocation9], %s79
      %s81 = sshll.u32 [#allocation10], 4
      %s82 = int_to_ptr.vmem [resolvable:$true] %s81
      %87 = dma.hbm_to_vmem [thread:$0]  %s7, 5120, %s82, [#allocation9], 64, 64, 4
    $region33: #{tpu_custom_call.1} parent=1 // pred_fallthru
      _
    // Predicated region
    $region34: #{tpu_custom_call.1} parent=1 // pred_check
      _
    $region35: #{tpu_custom_call.1} parent=1 // pred_check_branch
      %89 = sbr.rel (0) target = $region37
    $region36: #{tpu_custom_call.1} parent=1 // pred_region
      %s91 = ssub.s32 5120, 5120
      %92 = vsyncadd [#allocation12], %s91
      %s93 = sshll.u32 [#allocation11], 4
      %s94 = int_to_ptr.vmem [resolvable:$true] %s93
      %99 = dma.hbm_to_vmem [thread:$0]  %s8, 5120, %s94, [#allocation12], 64, 64, 4
    $region37: #{tpu_custom_call.1} parent=1 // pred_fallthru
      _
    // Predicated region
    $region38: #{tpu_custom_call.1} parent=1 // pred_check
      _
    $region39: #{tpu_custom_call.1} parent=1 // pred_check_branch
      %101 = sbr.rel (0) target = $region41
    $region40: #{tpu_custom_call.1} parent=1 // pred_region
      %s103 = ssub.s32 1024, 1024
      %104 = vsyncadd [#allocation12], %s103
      %s105 = sshll.u32 [#allocation13], 4
      %s106 = int_to_ptr.vmem [resolvable:$true] %s105
      %111 = dma.hbm_to_vmem [thread:$0]  %s9, 1024, %s106, [#allocation12], 64, 64, 4
    $region41: #{tpu_custom_call.1} parent=1 // pred_fallthru
      _
    // Predicated region
    $region42: #{tpu_custom_call.1} parent=1 // pred_check
      _
    $region43: #{tpu_custom_call.1} parent=1 // pred_check_branch
      %113 = sbr.rel (0) target = $region45
    $region44: #{tpu_custom_call.1} parent=1 // pred_region
      %s115 = ssub.s32 1024, 1024
      %116 = vsyncadd [#allocation15], %s115
      %s117 = sshll.u32 [#allocation14], 4
      %s118 = int_to_ptr.vmem [resolvable:$true] %s117
      %123 = dma.hbm_to_vmem [thread:$0]  %s10, 1024, %s118, [#allocation15], 64, 64, 4
    $region45: #{tpu_custom_call.1} parent=1 // pred_fallthru
      _
    // Predicated region
    $region46: #{tpu_custom_call.1} parent=1 // pred_check
      _
    $region47: #{tpu_custom_call.1} parent=1 // pred_check_branch
      %125 = sbr.rel (0) target = $region49
    $region48: #{tpu_custom_call.1} parent=1 // pred_region
      _
    $region49: #{tpu_custom_call.1} parent=1 // pred_fallthru
      _
    // Predicated region
    $region50: #{tpu_custom_call.1} parent=1 // pred_check
      _
    $region51: #{tpu_custom_call.1} parent=1 // pred_check_branch
      %127 = sbr.rel (0) target = $region53
    $region52: #{tpu_custom_call.1} parent=1 // pred_region
      %s129 = ssub.s32 512, 512
      %130 = vsyncadd [#allocation15], %s129
      %s131 = sshll.u32 [#allocation16], 4
      %s132 = int_to_ptr.vmem [resolvable:$true] %s131
      %137 = dma.hbm_to_vmem [thread:$0]  %s12, 512, %s132, [#allocation15], 64, 64, 4
    $region53: #{tpu_custom_call.1} parent=1 // pred_fallthru
      _
    // Predicated region
    $region54: #{tpu_custom_call.1} parent=1 // pred_check
      _
    $region55: #{tpu_custom_call.1} parent=1 // pred_check_branch
      %139 = sbr.rel (0) target = $region57
    $region56: #{tpu_custom_call.1} parent=1 // pred_region
      _
    $region57: #{tpu_custom_call.1} parent=1 // pred_fallthru
      _
    // Predicated region
    $region58: #{tpu_custom_call.1} parent=1 // pred_check
      _
    $region59: #{tpu_custom_call.1} parent=1 // pred_check_branch
      %141 = sbr.rel (0) target = $region61
    $region60: #{tpu_custom_call.1} parent=1 // pred_region
      _
    $region61: #{tpu_custom_call.1} parent=1 // pred_fallthru
      _
    // Predicated region
    $region62: #{tpu_custom_call.1} parent=1 // pred_check
      _
    $region63: #{tpu_custom_call.1} parent=1 // pred_check_branch
      %143 = sbr.rel (0) target = $region65
    $region64: #{tpu_custom_call.1} parent=1 // pred_region
      %144 = dma.done [#allocation3], 1536
    $region65: #{tpu_custom_call.1} parent=1 // pred_fallthru
      _
    // Predicated region
    $region66: #{tpu_custom_call.1} parent=1 // pred_check
      _
    $region67: #{tpu_custom_call.1} parent=1 // pred_check_branch
      %146 = sbr.rel (0) target = $region69
    $region68: #{tpu_custom_call.1} parent=1 // pred_region
      %147 = dma.done [#allocation6], 16
    $region69: #{tpu_custom_call.1} parent=1 // pred_fallthru
      _
    // Predicated region
    $region70: #{tpu_custom_call.1} parent=1 // pred_check
      _
    $region71: #{tpu_custom_call.1} parent=1 // pred_check_branch
      %149 = sbr.rel (0) target = $region73
    $region72: #{tpu_custom_call.1} parent=1 // pred_region
      %150 = dma.done [#allocation6], 16
    $region73: #{tpu_custom_call.1} parent=1 // pred_fallthru
      _
    // Predicated region
    $region74: #{tpu_custom_call.1} parent=1 // pred_check
      _
    $region75: #{tpu_custom_call.1} parent=1 // pred_check_branch
      %152 = sbr.rel (0) target = $region77
    $region76: #{tpu_custom_call.1} parent=1 // pred_region
      %153 = dma.done [#allocation9], 5120
    $region77: #{tpu_custom_call.1} parent=1 // pred_fallthru
      _
    // Predicated region
    $region78: #{tpu_custom_call.1} parent=1 // pred_check
      _
    $region79: #{tpu_custom_call.1} parent=1 // pred_check_branch
      %155 = sbr.rel (0) target = $region81
    $region80: #{tpu_custom_call.1} parent=1 // pred_region
      %156 = dma.done [#allocation9], 5120
    $region81: #{tpu_custom_call.1} parent=1 // pred_fallthru
      _
    // Predicated region
    $region82: #{tpu_custom_call.1} parent=1 // pred_check
      _
    $region83: #{tpu_custom_call.1} parent=1 // pred_check_branch
      %158 = sbr.rel (0) target = $region85
    $region84: #{tpu_custom_call.1} parent=1 // pred_region
      %159 = dma.done [#allocation12], 5120
    $region85: #{tpu_custom_call.1} parent=1 // pred_fallthru
      _
    // Predicated region
    $region86: #{tpu_custom_call.1} parent=1 // pred_check
      _
    $region87: #{tpu_custom_call.1} parent=1 // pred_check_branch
      %161 = sbr.rel (0) target = $region89
    $region88: #{tpu_custom_call.1} parent=1 // pred_region
      %162 = dma.done [#allocation12], 1024
    $region89: #{tpu_custom_call.1} parent=1 // pred_fallthru
      _
    // Predicated region
    $region90: #{tpu_custom_call.1} parent=1 // pred_check
      _
    $region91: #{tpu_custom_call.1} parent=1 // pred_check_branch
      %164 = sbr.rel (0) target = $region93
    $region92: #{tpu_custom_call.1} parent=1 // pred_region
      %165 = dma.done [#allocation15], 1024
    $region93: #{tpu_custom_call.1} parent=1 // pred_fallthru
      _
    // Predicated region
    $region94: #{tpu_custom_call.1} parent=1 // pred_check
      _
    $region95: #{tpu_custom_call.1} parent=1 // pred_check_branch
      %167 = sbr.rel (0) target = $region97
    $region96: #{tpu_custom_call.1} parent=1 // pred_region
      %168 = dma.done [#allocation15], 512
    $region97: #{tpu_custom_call.1} parent=1 // pred_fallthru
      _
    %v170 = vld [vmem:[%s0] sm:$0xff]
    %v171 = vld [vmem:[%s0 + $0x8] sm:$0xff]
    %v172 = vld [vmem:[%s0 + $0x10] sm:$0xff]
    %v173 = vld [vmem:[%s0 + $0x18] sm:$0xff]
    %v174 = vld [vmem:[%s1] sm:$0xff]
    %v175 = vld [vmem:[%s1 + $0x8] sm:$0xff]
    %v176 = vld [vmem:[%s1 + $0x10] sm:$0xff]
    %v177 = vld [vmem:[%s1 + $0x18] sm:$0xff]
    %v178 = vrot.slane %v170, 7
    %v179 = vrot.slane %v171, 7
    %v180 = vrot.slane %v172, 7
    %v181 = vrot.slane %v173, 7
    %v182 = vlaneseq
    %v183 = vshrl.u32 %v182, 7
    %vm184 = vcmp.lt.s32.totalorder %v183, 1
    %v185 = vsel %vm184, %v180, %v181
    %v186 = vsel %vm184, %v179, %v180
    %v187 = vsel %vm184, %v178, %v179
    %v188 = vsel %vm184, %v181, %v178
    %v189 = vadd.s32 %v174, 4294967295
    %v190 = vadd.s32 %v175, 4294967295
    %v191 = vadd.s32 %v176, 4294967295
    %v192 = vadd.s32 %v177, 4294967295
    %vm193 = vcmp.ge.s32.totalorder %v189, 0
    %vm194 = vcmp.ge.s32.totalorder %v190, 0
    %vm195 = vcmp.ge.s32.totalorder %v191, 0
    %vm196 = vcmp.ge.s32.totalorder %v192, 0
    %vm197 = vcmp.lt.s32.totalorder %v189, 16
    %vm198 = vcmp.lt.s32.totalorder %v190, 16
    %vm199 = vcmp.lt.s32.totalorder %v191, 16
    %vm200 = vcmp.lt.s32.totalorder %v192, 16
    %vm201 = vmand %vm193, %vm197
    %vm202 = vmand %vm194, %vm198
    %vm203 = vmand %vm195, %vm199
    %vm204 = vmand %vm196, %vm200
    %v205 = vsel %vm201, 1, 0
    %v206 = vsel %vm202, 1, 0
    %v207 = vsel %vm203, 1, 0
    %v208 = vsel %vm204, 1, 0
    %209 = vset.pattern.permute.xlu0 0
    %210 = vperm.xlu0 %209, %v205
    %v211 = vpop.permute.xlu0 %210
    %212 = vset.pattern.permute.xlu0 0
    %213 = vperm.xlu0 %212, %v206
    %v214 = vpop.permute.xlu0 %213
    %215 = vset.pattern.permute.xlu0 0
    %216 = vperm.xlu0 %215, %v207
    %v217 = vpop.permute.xlu0 %216
    %218 = vset.pattern.permute.xlu0 0
    %219 = vperm.xlu0 %218, %v208
    %v220 = vpop.permute.xlu0 %219
    %vm221 = vcmp.eq.s32.totalorder %v211, 1
    %vm222 = vcmp.eq.s32.totalorder %v214, 1
    %vm223 = vcmp.eq.s32.totalorder %v217, 1
    %vm224 = vcmp.eq.s32.totalorder %v220, 1
    %v225 = vsel %vm221, %v188, 0.0
    %v226 = vsel %vm222, %v187, 0.0
    %v227 = vsel %vm223, %v186, 0.0
    %v228 = vsel %vm224, %v185, 0.0
    %v229 = vpack.c.bf16 %v226, %v225
    %v230 = vpack.c.bf16 %v228, %v227
    %v231 = vld [vmem:[#allocation2] sm:$0xf]
    %v232 = vld [vmem:[#allocation2 + $0x4] sm:$0xf]
    %v233 = vld [vmem:[#allocation2 + $0x8] sm:$0xf]
    %v234 = vld [vmem:[#allocation2 + $0xc] sm:$0xf]
    %v235 = vld [vmem:[#allocation2 + $0x10] sm:$0xf]
    %v236 = vld [vmem:[#allocation2 + $0x14] sm:$0xf]
    %v237 = vld [vmem:[#allocation2 + $0x18] sm:$0xf]
    %v238 = vld [vmem:[#allocation2 + $0x1c] sm:$0xf]
    %v239 = vpack.c.bf16 %v171, %v170
    %v240 = vpack.c.bf16 %v173, %v172
    %s241 = scalar_lea.vmem [#allocation2], 32
    %v242 = vld [vmem:[%s241] sm:$0xf]
    %v243 = vld [vmem:[%s241 + $0x4] sm:$0xf]
    %v244 = vld [vmem:[%s241 + $0x8] sm:$0xf]
    %v245 = vld [vmem:[%s241 + $0xc] sm:$0xf]
    %v246 = vld [vmem:[%s241 + $0x10] sm:$0xf]
    %v247 = vld [vmem:[%s241 + $0x14] sm:$0xf]
    %v248 = vld [vmem:[%s241 + $0x18] sm:$0xf]
    %v249 = vld [vmem:[%s241 + $0x1c] sm:$0xf]
    %v258 = vunpack.c.l.b16 %v242
    %v259 = vunpack.c.l.b16 %v243
    %v260 = vunpack.c.l.b16 %v244
    %v261 = vunpack.c.l.b16 %v245
    %v262 = vunpack.c.l.b16 %v246
    %v263 = vunpack.c.l.b16 %v247
    %v264 = vunpack.c.l.b16 %v248
    %v265 = vunpack.c.l.b16 %v249
    %v266 = vpack.c.b16 %v259, %v258
    %v267 = vpack.c.b16 %v261, %v260
    %v268 = vpack.c.b16 %v263, %v262
    %v269 = vpack.c.b16 %v265, %v264
    %vm274 = vcmask 523264
    %v276 = vsel %vm274, %v239, 0
    %v279 = vsel %vm274, %v240, 0
    %281 = vmatprep.subr.bf16.mxu0 0
    %282 = vmatpush1.bf16.msra.mxu0 0
    %283 = vmatprep.subr.bf16.mxu0 0
    %284 = vmatpush1.bf16.msra.mxu0 0
    %285 = vmatprep.subr.bf16.mxu0 0
    %286 = vmatpush1.bf16.msra.mxu0 0
    %287 = vmatprep.subr.bf16.mxu0 0
    %288 = vmatpush1.bf16.msra.mxu0 0
    %289 = vmatprep.subr.bf16.mxu0 0
    %290 = vmatpush1.bf16.msra.mxu0 %v269
    %291 = vmatprep.subr.bf16.mxu0 0
    %292 = vmatpush1.bf16.msra.mxu0 %v268
    %293 = vmatprep.subr.bf16.mxu0 0
    %294 = vmatpush1.bf16.msra.mxu0 %v267
    %295 = vmatprep.subr.bf16.mxu0 0
    %296 = vmatpush1.bf16.msra.mxu0 %v266
    %297 = vmatprep.subr.bf16.mxu0 0
    %298 = vmatpush2.bf16.msra.mxu0 0
    %299 = vmatprep.subr.bf16.mxu0 0
    %300 = vmatpush2.bf16.msra.mxu0 0
    %301 = vmatprep.subr.bf16.mxu0 0
    %302 = vmatpush2.bf16.msra.mxu0 0
    %303 = vmatprep.subr.bf16.mxu0 0
    %304 = vmatpush2.bf16.msra.mxu0 0
    %305 = vmatprep.subr.bf16.mxu0 0
    %306 = vmatpush2.bf16.msra.mxu0 0
    %307 = vmatprep.subr.bf16.mxu0 0
    %308 = vmatpush2.bf16.msra.mxu0 0
    %309 = vmatprep.subr.bf16.mxu0 0
    %310 = vmatpush2.bf16.msra.mxu0 0
    %311 = vmatprep.subr.bf16.mxu0 0
    %312 = vmatpush2.bf16.msra.mxu0 0
    %313 = vmatprep.mubr.bf16.mxu0 0
    %314 = vmatmul.mubr.bf16.gmra.mxu0 %v276
    %v315 = vpop.f32.mrf.mxu0
    %v316 = vadd.f32 0.0, %v315
    %v317 = vpop.f32.mrf.mxu0
    %v318 = vpop.f32.mrf.mxu0
    %v319 = vadd.f32 0.0, %v318
    %v320 = vpop.f32.mrf.mxu0
    %321 = vmatprep.mubr.bf16.mxu0 0
    %322 = vmatmul.mubr.bf16.gmra.mxu0 %v279
    %v323 = vpop.f32.mrf.mxu0
    %v324 = vadd.f32 0.0, %v323
    %v325 = vpop.f32.mrf.mxu0
    %v326 = vpop.f32.mrf.mxu0
    %v327 = vadd.f32 0.0, %v326
    %v328 = vpop.f32.mrf.mxu0
    %329 = vdwg.mxu0
    %v338 = vunpack.c.l.b16 %v231
    %v339 = vunpack.c.l.b16 %v232
    %v340 = vunpack.c.l.b16 %v233
    %v341 = vunpack.c.l.b16 %v234
    %v342 = vunpack.c.l.b16 %v235
    %v343 = vunpack.c.l.b16 %v236
    %v344 = vunpack.c.l.b16 %v237
    %v345 = vunpack.c.l.b16 %v238
    %v346 = vpack.c.b16 %v339, %v338
    %v347 = vpack.c.b16 %v341, %v340
    %v348 = vpack.c.b16 %v343, %v342
    %v349 = vpack.c.b16 %v345, %v344
    %v355 = vsel %vm274, %v229, 0
    %v358 = vsel %vm274, %v230, 0
    %360 = vmatprep.subr.bf16.mxu0 0
    %361 = vmatpush1.bf16.msra.mxu0 0
    %362 = vmatprep.subr.bf16.mxu0 0
    %363 = vmatpush1.bf16.msra.mxu0 0
    %364 = vmatprep.subr.bf16.mxu0 0
    %365 = vmatpush1.bf16.msra.mxu0 0
    %366 = vmatprep.subr.bf16.mxu0 0
    %367 = vmatpush1.bf16.msra.mxu0 0
    %368 = vmatprep.subr.bf16.mxu0 0
    %369 = vmatpush1.bf16.msra.mxu0 %v349
    %370 = vmatprep.subr.bf16.mxu0 0
    %371 = vmatpush1.bf16.msra.mxu0 %v348
    %372 = vmatprep.subr.bf16.mxu0 0
    %373 = vmatpush1.bf16.msra.mxu0 %v347
    %374 = vmatprep.subr.bf16.mxu0 0
    %375 = vmatpush1.bf16.msra.mxu0 %v346
    %376 = vmatprep.subr.bf16.mxu0 0
    %377 = vmatpush2.bf16.msra.mxu0 0
    %378 = vmatprep.subr.bf16.mxu0 0
    %379 = vmatpush2.bf16.msra.mxu0 0
    %380 = vmatprep.subr.bf16.mxu0 0
    %381 = vmatpush2.bf16.msra.mxu0 0
    %382 = vmatprep.subr.bf16.mxu0 0
    %383 = vmatpush2.bf16.msra.mxu0 0
    %384 = vmatprep.subr.bf16.mxu0 0
    %385 = vmatpush2.bf16.msra.mxu0 0
    %386 = vmatprep.subr.bf16.mxu0 0
    %387 = vmatpush2.bf16.msra.mxu0 0
    %388 = vmatprep.subr.bf16.mxu0 0
    %389 = vmatpush2.bf16.msra.mxu0 0
    %390 = vmatprep.subr.bf16.mxu0 0
    %391 = vmatpush2.bf16.msra.mxu0 0
    %392 = vmatprep.mubr.bf16.mxu0 0
    %393 = vmatmul.mubr.bf16.gmra.mxu0 %v355
    %v394 = vpop.f32.mrf.mxu0
    %v395 = vadd.f32 %v316, %v394
    %v396 = vpop.f32.mrf.mxu0
    %v397 = vpop.f32.mrf.mxu0
    %v398 = vadd.f32 %v319, %v397
    %v399 = vpop.f32.mrf.mxu0
    %400 = vmatprep.mubr.bf16.mxu0 0
    %401 = vmatmul.mubr.bf16.gmra.mxu0 %v358
    %v402 = vpop.f32.mrf.mxu0
    %v403 = vadd.f32 %v324, %v402
    %v404 = vpop.f32.mrf.mxu0
    %v405 = vpop.f32.mrf.mxu0
    %v406 = vadd.f32 %v327, %v405
    %v407 = vpop.f32.mrf.mxu0
    %408 = vdwg.mxu0
    %v409 = vrot.slane %v170, 1
    %v410 = vrot.slane %v171, 1
    %v411 = vrot.slane %v172, 1
    %v412 = vrot.slane %v173, 1
    %vm413 = vcmp.lt.s32.totalorder %v183, 7
    %v414 = vsel %vm413, %v411, %v412
    %v415 = vsel %vm413, %v410, %v411
    %v416 = vsel %vm413, %v409, %v410
    %v417 = vsel %vm413, %v412, %v409
    %v418 = vadd.s32 %v174, 1
    %v419 = vadd.s32 %v175, 1
    %v420 = vadd.s32 %v176, 1
    %v421 = vadd.s32 %v177, 1
    %vm422 = vcmp.ge.s32.totalorder %v418, 0
    %vm423 = vcmp.ge.s32.totalorder %v419, 0
    %vm424 = vcmp.ge.s32.totalorder %v420, 0
    %vm425 = vcmp.ge.s32.totalorder %v421, 0
    %vm426 = vcmp.lt.s32.totalorder %v418, 16
    %vm427 = vcmp.lt.s32.totalorder %v419, 16
    %vm428 = vcmp.lt.s32.totalorder %v420, 16
    %vm429 = vcmp.lt.s32.totalorder %v421, 16
    %vm430 = vmand %vm422, %vm426
    %vm431 = vmand %vm423, %vm427
    %vm432 = vmand %vm424, %vm428
    %vm433 = vmand %vm425, %vm429
    %v434 = vsel %vm430, 1, 0
    %v435 = vsel %vm431, 1, 0
    %v436 = vsel %vm432, 1, 0
    %v437 = vsel %vm433, 1, 0
    %438 = vset.pattern.permute.xlu0 0
    %439 = vperm.xlu0 %438, %v434
    %v440 = vpop.permute.xlu0 %439
    %441 = vset.pattern.permute.xlu0 0
    %442 = vperm.xlu0 %441, %v435
    %v443 = vpop.permute.xlu0 %442
    %444 = vset.pattern.permute.xlu0 0
    %445 = vperm.xlu0 %444, %v436
    %v446 = vpop.permute.xlu0 %445
    %447 = vset.pattern.permute.xlu0 0
    %448 = vperm.xlu0 %447, %v437
    %v449 = vpop.permute.xlu0 %448
    %vm450 = vcmp.eq.s32.totalorder %v440, 1
    %vm451 = vcmp.eq.s32.totalorder %v443, 1
    %vm452 = vcmp.eq.s32.totalorder %v446, 1
    %vm453 = vcmp.eq.s32.totalorder %v449, 1
    %v454 = vsel %vm450, %v416, 0.0
    %v455 = vsel %vm451, %v415, 0.0
    %v456 = vsel %vm452, %v414, 0.0
    %v457 = vsel %vm453, %v417, 0.0
    %v458 = vpack.c.bf16 %v455, %v454
    %v459 = vpack.c.bf16 %v457, %v456
    %s460 = scalar_lea.vmem [#allocation2], 64
    %v461 = vld [vmem:[%s460] sm:$0xf]
    %v462 = vld [vmem:[%s460 + $0x4] sm:$0xf]
    %v463 = vld [vmem:[%s460 + $0x8] sm:$0xf]
    %v464 = vld [vmem:[%s460 + $0xc] sm:$0xf]
    %v465 = vld [vmem:[%s460 + $0x10] sm:$0xf]
    %v466 = vld [vmem:[%s460 + $0x14] sm:$0xf]
    %v467 = vld [vmem:[%s460 + $0x18] sm:$0xf]
    %v468 = vld [vmem:[%s460 + $0x1c] sm:$0xf]
    %v477 = vunpack.c.l.b16 %v461
    %v478 = vunpack.c.l.b16 %v462
    %v479 = vunpack.c.l.b16 %v463
    %v480 = vunpack.c.l.b16 %v464
    %v481 = vunpack.c.l.b16 %v465
    %v482 = vunpack.c.l.b16 %v466
    %v483 = vunpack.c.l.b16 %v467
    %v484 = vunpack.c.l.b16 %v468
    %v485 = vpack.c.b16 %v478, %v477
    %v486 = vpack.c.b16 %v480, %v479
    %v487 = vpack.c.b16 %v482, %v481
    %v488 = vpack.c.b16 %v484, %v483
    %v494 = vsel %vm274, %v458, 0
    %v497 = vsel %vm274, %v459, 0
    %499 = vmatprep.subr.bf16.mxu0 0
    %500 = vmatpush1.bf16.msra.mxu0 0
    %501 = vmatprep.subr.bf16.mxu0 0
    %502 = vmatpush1.bf16.msra.mxu0 0
    %503 = vmatprep.subr.bf16.mxu0 0
    %504 = vmatpush1.bf16.msra.mxu0 0
    %505 = vmatprep.subr.bf16.mxu0 0
    %506 = vmatpush1.bf16.msra.mxu0 0
    %507 = vmatprep.subr.bf16.mxu0 0
    %508 = vmatpush1.bf16.msra.mxu0 %v488
    %509 = vmatprep.subr.bf16.mxu0 0
    %510 = vmatpush1.bf16.msra.mxu0 %v487
    %511 = vmatprep.subr.bf16.mxu0 0
    %512 = vmatpush1.bf16.msra.mxu0 %v486
    %513 = vmatprep.subr.bf16.mxu0 0
    %514 = vmatpush1.bf16.msra.mxu0 %v485
    %515 = vmatprep.subr.bf16.mxu0 0
    %516 = vmatpush2.bf16.msra.mxu0 0
    %517 = vmatprep.subr.bf16.mxu0 0
    %518 = vmatpush2.bf16.msra.mxu0 0
    %519 = vmatprep.subr.bf16.mxu0 0
    %520 = vmatpush2.bf16.msra.mxu0 0
    %521 = vmatprep.subr.bf16.mxu0 0
    %522 = vmatpush2.bf16.msra.mxu0 0
    %523 = vmatprep.subr.bf16.mxu0 0
    %524 = vmatpush2.bf16.msra.mxu0 0
    %525 = vmatprep.subr.bf16.mxu0 0
    %526 = vmatpush2.bf16.msra.mxu0 0
    %527 = vmatprep.subr.bf16.mxu0 0
    %528 = vmatpush2.bf16.msra.mxu0 0
    %529 = vmatprep.subr.bf16.mxu0 0
    %530 = vmatpush2.bf16.msra.mxu0 0
    %531 = vmatprep.mubr.bf16.mxu0 0
    %532 = vmatmul.mubr.bf16.gmra.mxu0 %v494
    %v533 = vpop.f32.mrf.mxu0
    %v534 = vadd.f32 0.0, %v533
    %v535 = vpop.f32.mrf.mxu0
    %v536 = vpop.f32.mrf.mxu0
    %v537 = vadd.f32 0.0, %v536
    %v538 = vpop.f32.mrf.mxu0
    %539 = vmatprep.mubr.bf16.mxu0 0
    %540 = vmatmul.mubr.bf16.gmra.mxu0 %v497
    %v541 = vpop.f32.mrf.mxu0
    %v542 = vadd.f32 0.0, %v541
    %v543 = vpop.f32.mrf.mxu0
    %v544 = vpop.f32.mrf.mxu0
    %v545 = vadd.f32 0.0, %v544
    %v546 = vpop.f32.mrf.mxu0
    %547 = vdwg.mxu0
    %v548 = vadd.f32 %v395, %v534
    %v549 = vadd.f32 %v398, %v537
    %v550 = vadd.f32 %v403, %v542
    %v551 = vadd.f32 %v406, %v545
    %v552 = vld [vmem:[#allocation5] sm:$0x1]
    %v554 = vlaneseq
    %v555 = vshrl.u32 %v554, 7
    %v556 = vsub.s32 0, %v555
    %v557 = vrot.slane %v552, %v556
    %v559 = vadd.f32 %v548, %v557
    %v560 = vadd.f32 %v549, %v557
    %v561 = vadd.f32 %v550, %v557
    %v562 = vadd.f32 %v551, %v557
    %v563 = vrot.slane %v559, 7
    %v564 = vrot.slane %v560, 7
    %v565 = vrot.slane %v561, 7
    %v566 = vrot.slane %v562, 7
    %v567 = vsel %vm184, %v565, %v566
    %v568 = vsel %vm184, %v564, %v565
    %v569 = vsel %vm184, %v563, %v564
    %v570 = vsel %vm184, %v566, %v563
    %v571 = vsel %vm221, %v570, 0.0
    %v572 = vsel %vm222, %v569, 0.0
    %v573 = vsel %vm223, %v568, 0.0
    %v574 = vsel %vm224, %v567, 0.0
    %v575 = vpack.c.bf16 %v572, %v571
    %v576 = vpack.c.bf16 %v574, %v573
    %v577 = vld [vmem:[%s4] sm:$0xf]
    %v578 = vld [vmem:[%s4 + $0x4] sm:$0xf]
    %v579 = vld [vmem:[%s4 + $0x8] sm:$0xf]
    %v580 = vld [vmem:[%s4 + $0xc] sm:$0xf]
    %v581 = vld [vmem:[%s4 + $0x10] sm:$0xf]
    %v582 = vld [vmem:[%s4 + $0x14] sm:$0xf]
    %v583 = vld [vmem:[%s4 + $0x18] sm:$0xf]
    %v584 = vld [vmem:[%s4 + $0x1c] sm:$0xf]
    %v585 = vld [vmem:[%s4 + $0x20] sm:$0xf]
    %v586 = vld [vmem:[%s4 + $0x24] sm:$0xf]
    %v587 = vld [vmem:[%s4 + $0x28] sm:$0xf]
    %v588 = vld [vmem:[%s4 + $0x2c] sm:$0xf]
    %v589 = vld [vmem:[%s4 + $0x30] sm:$0xf]
    %v590 = vld [vmem:[%s4 + $0x34] sm:$0xf]
    %v591 = vld [vmem:[%s4 + $0x38] sm:$0xf]
    %v592 = vld [vmem:[%s4 + $0x3c] sm:$0xf]
    %v593 = vpack.c.bf16 %v560, %v559
    %v594 = vpack.c.bf16 %v562, %v561
    %s595 = scalar_lea.vmem %s4, 64
    %v596 = vld [vmem:[%s595] sm:$0xf]
    %v597 = vld [vmem:[%s595 + $0x4] sm:$0xf]
    %v598 = vld [vmem:[%s595 + $0x8] sm:$0xf]
    %v599 = vld [vmem:[%s595 + $0xc] sm:$0xf]
    %v600 = vld [vmem:[%s595 + $0x10] sm:$0xf]
    %v601 = vld [vmem:[%s595 + $0x14] sm:$0xf]
    %v602 = vld [vmem:[%s595 + $0x18] sm:$0xf]
    %v603 = vld [vmem:[%s595 + $0x1c] sm:$0xf]
    %v604 = vld [vmem:[%s595 + $0x20] sm:$0xf]
    %v605 = vld [vmem:[%s595 + $0x24] sm:$0xf]
    %v606 = vld [vmem:[%s595 + $0x28] sm:$0xf]
    %v607 = vld [vmem:[%s595 + $0x2c] sm:$0xf]
    %v608 = vld [vmem:[%s595 + $0x30] sm:$0xf]
    %v609 = vld [vmem:[%s595 + $0x34] sm:$0xf]
    %v610 = vld [vmem:[%s595 + $0x38] sm:$0xf]
    %v611 = vld [vmem:[%s595 + $0x3c] sm:$0xf]
    %v628 = vunpack.c.l.b16 %v596
    %v629 = vunpack.c.l.b16 %v597
    %v630 = vunpack.c.l.b16 %v598
    %v631 = vunpack.c.l.b16 %v599
    %v632 = vunpack.c.l.b16 %v600
    %v633 = vunpack.c.l.b16 %v601
    %v634 = vunpack.c.l.b16 %v602
    %v635 = vunpack.c.l.b16 %v603
    %v636 = vunpack.c.l.b16 %v604
    %v637 = vunpack.c.l.b16 %v605
    %v638 = vunpack.c.l.b16 %v606
    %v639 = vunpack.c.l.b16 %v607
    %v640 = vunpack.c.l.b16 %v608
    %v641 = vunpack.c.l.b16 %v609
    %v642 = vunpack.c.l.b16 %v610
    %v643 = vunpack.c.l.b16 %v611
    %v644 = vpack.c.b16 %v629, %v628
    %v645 = vpack.c.b16 %v631, %v630
    %v646 = vpack.c.b16 %v633, %v632
    %v647 = vpack.c.b16 %v635, %v634
    %v648 = vpack.c.b16 %v637, %v636
    %v649 = vpack.c.b16 %v639, %v638
    %v650 = vpack.c.b16 %v641, %v640
    %v651 = vpack.c.b16 %v643, %v642
    %660 = vmatprep.subr.bf16.mxu0 0
    %661 = vmatpush1.bf16.msra.mxu0 %v651
    %662 = vmatprep.subr.bf16.mxu0 0
    %663 = vmatpush1.bf16.msra.mxu0 %v650
    %664 = vmatprep.subr.bf16.mxu0 0
    %665 = vmatpush1.bf16.msra.mxu0 %v649
    %666 = vmatprep.subr.bf16.mxu0 0
    %667 = vmatpush1.bf16.msra.mxu0 %v648
    %668 = vmatprep.subr.bf16.mxu0 0
    %669 = vmatpush1.bf16.msra.mxu0 %v647
    %670 = vmatprep.subr.bf16.mxu0 0
    %671 = vmatpush1.bf16.msra.mxu0 %v646
    %672 = vmatprep.subr.bf16.mxu0 0
    %673 = vmatpush1.bf16.msra.mxu0 %v645
    %674 = vmatprep.subr.bf16.mxu0 0
    %675 = vmatpush1.bf16.msra.mxu0 %v644
    %676 = vmatprep.subr.bf16.mxu0 0
    %677 = vmatpush2.bf16.msra.mxu0 0
    %678 = vmatprep.subr.bf16.mxu0 0
    %679 = vmatpush2.bf16.msra.mxu0 0
    %680 = vmatprep.subr.bf16.mxu0 0
    %681 = vmatpush2.bf16.msra.mxu0 0
    %682 = vmatprep.subr.bf16.mxu0 0
    %683 = vmatpush2.bf16.msra.mxu0 0
    %684 = vmatprep.subr.bf16.mxu0 0
    %685 = vmatpush2.bf16.msra.mxu0 0
    %686 = vmatprep.subr.bf16.mxu0 0
    %687 = vmatpush2.bf16.msra.mxu0 0
    %688 = vmatprep.subr.bf16.mxu0 0
    %689 = vmatpush2.bf16.msra.mxu0 0
    %690 = vmatprep.subr.bf16.mxu0 0
    %691 = vmatpush2.bf16.msra.mxu0 0
    %692 = vmatprep.mubr.bf16.mxu0 0
    %693 = vmatmul.mubr.bf16.gmra.mxu0 %v593
    %v694 = vpop.f32.mrf.mxu0
    %v695 = vadd.f32 0.0, %v694
    %v696 = vpop.f32.mrf.mxu0
    %v697 = vpop.f32.mrf.mxu0
    %v698 = vadd.f32 0.0, %v697
    %v699 = vpop.f32.mrf.mxu0
    %700 = vmatprep.mubr.bf16.mxu0 0
    %701 = vmatmul.mubr.bf16.gmra.mxu0 %v594
    %v702 = vpop.f32.mrf.mxu0
    %v703 = vadd.f32 0.0, %v702
    %v704 = vpop.f32.mrf.mxu0
    %v705 = vpop.f32.mrf.mxu0
    %v706 = vadd.f32 0.0, %v705
    %v707 = vpop.f32.mrf.mxu0
    %708 = vdwg.mxu0
    %v725 = vunpack.c.l.b16 %v577
    %v726 = vunpack.c.l.b16 %v578
    %v727 = vunpack.c.l.b16 %v579
    %v728 = vunpack.c.l.b16 %v580
    %v729 = vunpack.c.l.b16 %v581
    %v730 = vunpack.c.l.b16 %v582
    %v731 = vunpack.c.l.b16 %v583
    %v732 = vunpack.c.l.b16 %v584
    %v733 = vunpack.c.l.b16 %v585
    %v734 = vunpack.c.l.b16 %v586
    %v735 = vunpack.c.l.b16 %v587
    %v736 = vunpack.c.l.b16 %v588
    %v737 = vunpack.c.l.b16 %v589
    %v738 = vunpack.c.l.b16 %v590
    %v739 = vunpack.c.l.b16 %v591
    %v740 = vunpack.c.l.b16 %v592
    %v741 = vpack.c.b16 %v726, %v725
    %v742 = vpack.c.b16 %v728, %v727
    %v743 = vpack.c.b16 %v730, %v729
    %v744 = vpack.c.b16 %v732, %v731
    %v745 = vpack.c.b16 %v734, %v733
    %v746 = vpack.c.b16 %v736, %v735
    %v747 = vpack.c.b16 %v738, %v737
    %v748 = vpack.c.b16 %v740, %v739
    %757 = vmatprep.subr.bf16.mxu0 0
    %758 = vmatpush1.bf16.msra.mxu0 %v748
    %759 = vmatprep.subr.bf16.mxu0 0
    %760 = vmatpush1.bf16.msra.mxu0 %v747
    %761 = vmatprep.subr.bf16.mxu0 0
    %762 = vmatpush1.bf16.msra.mxu0 %v746
    %763 = vmatprep.subr.bf16.mxu0 0
    %764 = vmatpush1.bf16.msra.mxu0 %v745
    %765 = vmatprep.subr.bf16.mxu0 0
    %766 = vmatpush1.bf16.msra.mxu0 %v744
    %767 = vmatprep.subr.bf16.mxu0 0
    %768 = vmatpush1.bf16.msra.mxu0 %v743
    %769 = vmatprep.subr.bf16.mxu0 0
    %770 = vmatpush1.bf16.msra.mxu0 %v742
    %771 = vmatprep.subr.bf16.mxu0 0
    %772 = vmatpush1.bf16.msra.mxu0 %v741
    %773 = vmatprep.subr.bf16.mxu0 0
    %774 = vmatpush2.bf16.msra.mxu0 0
    %775 = vmatprep.subr.bf16.mxu0 0
    %776 = vmatpush2.bf16.msra.mxu0 0
    %777 = vmatprep.subr.bf16.mxu0 0
    %778 = vmatpush2.bf16.msra.mxu0 0
    %779 = vmatprep.subr.bf16.mxu0 0
    %780 = vmatpush2.bf16.msra.mxu0 0
    %781 = vmatprep.subr.bf16.mxu0 0
    %782 = vmatpush2.bf16.msra.mxu0 0
    %783 = vmatprep.subr.bf16.mxu0 0
    %784 = vmatpush2.bf16.msra.mxu0 0
    %785 = vmatprep.subr.bf16.mxu0 0
    %786 = vmatpush2.bf16.msra.mxu0 0
    %787 = vmatprep.subr.bf16.mxu0 0
    %788 = vmatpush2.bf16.msra.mxu0 0
    %789 = vmatprep.mubr.bf16.mxu0 0
    %790 = vmatmul.mubr.bf16.gmra.mxu0 %v575
    %v791 = vpop.f32.mrf.mxu0
    %v792 = vadd.f32 %v695, %v791
    %v793 = vpop.f32.mrf.mxu0
    %v794 = vpop.f32.mrf.mxu0
    %v795 = vadd.f32 %v698, %v794
    %v796 = vpop.f32.mrf.mxu0
    %797 = vmatprep.mubr.bf16.mxu0 0
    %798 = vmatmul.mubr.bf16.gmra.mxu0 %v576
    %v799 = vpop.f32.mrf.mxu0
    %v800 = vadd.f32 %v703, %v799
    %v801 = vpop.f32.mrf.mxu0
    %v802 = vpop.f32.mrf.mxu0
    %v803 = vadd.f32 %v706, %v802
    %v804 = vpop.f32.mrf.mxu0
    %805 = vdwg.mxu0
    %v806 = vrot.slane %v559, 1
    %v807 = vrot.slane %v560, 1
    %v808 = vrot.slane %v561, 1
    %v809 = vrot.slane %v562, 1
    %v810 = vsel %vm413, %v808, %v809
    %v811 = vsel %vm413, %v807, %v808
    %v812 = vsel %vm413, %v806, %v807
    %v813 = vsel %vm413, %v809, %v806
    %v814 = vsel %vm450, %v812, 0.0
    %v815 = vsel %vm451, %v811, 0.0
    %v816 = vsel %vm452, %v810, 0.0
    %v817 = vsel %vm453, %v813, 0.0
    %v818 = vpack.c.bf16 %v815, %v814
    %v819 = vpack.c.bf16 %v817, %v816
    %s820 = scalar_lea.vmem %s4, 128
    %v821 = vld [vmem:[%s820] sm:$0xf]
    %v822 = vld [vmem:[%s820 + $0x4] sm:$0xf]
    %v823 = vld [vmem:[%s820 + $0x8] sm:$0xf]
    %v824 = vld [vmem:[%s820 + $0xc] sm:$0xf]
    %v825 = vld [vmem:[%s820 + $0x10] sm:$0xf]
    %v826 = vld [vmem:[%s820 + $0x14] sm:$0xf]
    %v827 = vld [vmem:[%s820 + $0x18] sm:$0xf]
    %v828 = vld [vmem:[%s820 + $0x1c] sm:$0xf]
    %v829 = vld [vmem:[%s820 + $0x20] sm:$0xf]
    %v830 = vld [vmem:[%s820 + $0x24] sm:$0xf]
    %v831 = vld [vmem:[%s820 + $0x28] sm:$0xf]
    %v832 = vld [vmem:[%s820 + $0x2c] sm:$0xf]
    %v833 = vld [vmem:[%s820 + $0x30] sm:$0xf]
    %v834 = vld [vmem:[%s820 + $0x34] sm:$0xf]
    %v835 = vld [vmem:[%s820 + $0x38] sm:$0xf]
    %v836 = vld [vmem:[%s820 + $0x3c] sm:$0xf]
    %v853 = vunpack.c.l.b16 %v821
    %v854 = vunpack.c.l.b16 %v822
    %v855 = vunpack.c.l.b16 %v823
    %v856 = vunpack.c.l.b16 %v824
    %v857 = vunpack.c.l.b16 %v825
    %v858 = vunpack.c.l.b16 %v826
    %v859 = vunpack.c.l.b16 %v827
    %v860 = vunpack.c.l.b16 %v828
    %v861 = vunpack.c.l.b16 %v829
    %v862 = vunpack.c.l.b16 %v830
    %v863 = vunpack.c.l.b16 %v831
    %v864 = vunpack.c.l.b16 %v832
    %v865 = vunpack.c.l.b16 %v833
    %v866 = vunpack.c.l.b16 %v834
    %v867 = vunpack.c.l.b16 %v835
    %v868 = vunpack.c.l.b16 %v836
    %v869 = vpack.c.b16 %v854, %v853
    %v870 = vpack.c.b16 %v856, %v855
    %v871 = vpack.c.b16 %v858, %v857
    %v872 = vpack.c.b16 %v860, %v859
    %v873 = vpack.c.b16 %v862, %v861
    %v874 = vpack.c.b16 %v864, %v863
    %v875 = vpack.c.b16 %v866, %v865
    %v876 = vpack.c.b16 %v868, %v867
    %885 = vmatprep.subr.bf16.mxu0 0
    %886 = vmatpush1.bf16.msra.mxu0 %v876
    %887 = vmatprep.subr.bf16.mxu0 0
    %888 = vmatpush1.bf16.msra.mxu0 %v875
    %889 = vmatprep.subr.bf16.mxu0 0
    %890 = vmatpush1.bf16.msra.mxu0 %v874
    %891 = vmatprep.subr.bf16.mxu0 0
    %892 = vmatpush1.bf16.msra.mxu0 %v873
    %893 = vmatprep.subr.bf16.mxu0 0
    %894 = vmatpush1.bf16.msra.mxu0 %v872
    %895 = vmatprep.subr.bf16.mxu0 0
    %896 = vmatpush1.bf16.msra.mxu0 %v871
    %897 = vmatprep.subr.bf16.mxu0 0
    %898 = vmatpush1.bf16.msra.mxu0 %v870
    %899 = vmatprep.subr.bf16.mxu0 0
    %900 = vmatpush1.bf16.msra.mxu0 %v869
    %901 = vmatprep.subr.bf16.mxu0 0
    %902 = vmatpush2.bf16.msra.mxu0 0
    %903 = vmatprep.subr.bf16.mxu0 0
    %904 = vmatpush2.bf16.msra.mxu0 0
    %905 = vmatprep.subr.bf16.mxu0 0
    %906 = vmatpush2.bf16.msra.mxu0 0
    %907 = vmatprep.subr.bf16.mxu0 0
    %908 = vmatpush2.bf16.msra.mxu0 0
    %909 = vmatprep.subr.bf16.mxu0 0
    %910 = vmatpush2.bf16.msra.mxu0 0
    %911 = vmatprep.subr.bf16.mxu0 0
    %912 = vmatpush2.bf16.msra.mxu0 0
    %913 = vmatprep.subr.bf16.mxu0 0
    %914 = vmatpush2.bf16.msra.mxu0 0
    %915 = vmatprep.subr.bf16.mxu0 0
    %916 = vmatpush2.bf16.msra.mxu0 0
    %917 = vmatprep.mubr.bf16.mxu0 0
    %918 = vmatmul.mubr.bf16.gmra.mxu0 %v818
    %v919 = vpop.f32.mrf.mxu0
    %v920 = vadd.f32 0.0, %v919
    %v921 = vpop.f32.mrf.mxu0
    %v922 = vpop.f32.mrf.mxu0
    %v923 = vadd.f32 0.0, %v922
    %v924 = vpop.f32.mrf.mxu0
    %925 = vmatprep.mubr.bf16.mxu0 0
    %926 = vmatmul.mubr.bf16.gmra.mxu0 %v819
    %v927 = vpop.f32.mrf.mxu0
    %v928 = vadd.f32 0.0, %v927
    %v929 = vpop.f32.mrf.mxu0
    %v930 = vpop.f32.mrf.mxu0
    %v931 = vadd.f32 0.0, %v930
    %v932 = vpop.f32.mrf.mxu0
    %933 = vdwg.mxu0
    %v934 = vadd.f32 %v792, %v920
    %v935 = vadd.f32 %v795, %v923
    %v936 = vadd.f32 %v800, %v928
    %v937 = vadd.f32 %v803, %v931
    %v938 = vld [vmem:[#allocation7] sm:$0x1]
    %v940 = vlaneseq
    %v941 = vshrl.u32 %v940, 7
    %v942 = vsub.s32 0, %v941
    %v943 = vrot.slane %v938, %v942
    %v945 = vadd.f32 %v934, %v943
    %v946 = vadd.f32 %v935, %v943
    %v947 = vadd.f32 %v936, %v943
    %v948 = vadd.f32 %v937, %v943
    %v949 = vrot.slane %v945, 6
    %v950 = vrot.slane %v946, 6
    %v951 = vrot.slane %v947, 6
    %v952 = vrot.slane %v948, 6
    %vm953 = vcmp.lt.s32.totalorder %v183, 2
    %v954 = vsel %vm953, %v951, %v952
    %v955 = vsel %vm953, %v950, %v951
    %v956 = vsel %vm953, %v949, %v950
    %v957 = vsel %vm953, %v952, %v949
    %v958 = vadd.s32 %v174, 4294967294
    %v959 = vadd.s32 %v175, 4294967294
    %v960 = vadd.s32 %v176, 4294967294
    %v961 = vadd.s32 %v177, 4294967294
    %vm962 = vcmp.ge.s32.totalorder %v958, 0
    %vm963 = vcmp.ge.s32.totalorder %v959, 0
    %vm964 = vcmp.ge.s32.totalorder %v960, 0
    %vm965 = vcmp.ge.s32.totalorder %v961, 0
    %vm966 = vcmp.lt.s32.totalorder %v958, 16
    %vm967 = vcmp.lt.s32.totalorder %v959, 16
    %vm968 = vcmp.lt.s32.totalorder %v960, 16
    %vm969 = vcmp.lt.s32.totalorder %v961, 16
    %vm970 = vmand %vm962, %vm966
    %vm971 = vmand %vm963, %vm967
    %vm972 = vmand %vm964, %vm968
    %vm973 = vmand %vm965, %vm969
    %v974 = vsel %vm970, 1, 0
    %v975 = vsel %vm971, 1, 0
    %v976 = vsel %vm972, 1, 0
    %v977 = vsel %vm973, 1, 0
    %978 = vset.pattern.permute.xlu0 0
    %979 = vperm.xlu0 %978, %v974
    %v980 = vpop.permute.xlu0 %979
    %981 = vset.pattern.permute.xlu0 0
    %982 = vperm.xlu0 %981, %v975
    %v983 = vpop.permute.xlu0 %982
    %984 = vset.pattern.permute.xlu0 0
    %985 = vperm.xlu0 %984, %v976
    %v986 = vpop.permute.xlu0 %985
    %987 = vset.pattern.permute.xlu0 0
    %988 = vperm.xlu0 %987, %v977
    %v989 = vpop.permute.xlu0 %988
    %vm990 = vcmp.eq.s32.totalorder %v980, 1
    %vm991 = vcmp.eq.s32.totalorder %v983, 1
    %vm992 = vcmp.eq.s32.totalorder %v986, 1
    %vm993 = vcmp.eq.s32.totalorder %v989, 1
    %v994 = vsel %vm990, %v957, 0.0
    %v995 = vsel %vm991, %v956, 0.0
    %v996 = vsel %vm992, %v955, 0.0
    %v997 = vsel %vm993, %v954, 0.0
    %v998 = vpack.c.bf16 %v995, %v994
    %v999 = vpack.c.bf16 %v997, %v996
    %v1000 = vld [vmem:[#allocation8] sm:$0xf]
    %v1001 = vld [vmem:[#allocation8 + $0x4] sm:$0xf]
    %v1002 = vld [vmem:[#allocation8 + $0x8] sm:$0xf]
    %v1003 = vld [vmem:[#allocation8 + $0xc] sm:$0xf]
    %v1004 = vld [vmem:[#allocation8 + $0x10] sm:$0xf]
    %v1005 = vld [vmem:[#allocation8 + $0x14] sm:$0xf]
    %v1006 = vld [vmem:[#allocation8 + $0x18] sm:$0xf]
    %v1007 = vld [vmem:[#allocation8 + $0x1c] sm:$0xf]
    %v1008 = vld [vmem:[#allocation8 + $0x20] sm:$0xf]
    %v1009 = vld [vmem:[#allocation8 + $0x24] sm:$0xf]
    %v1010 = vld [vmem:[#allocation8 + $0x28] sm:$0xf]
    %v1011 = vld [vmem:[#allocation8 + $0x2c] sm:$0xf]
    %v1012 = vld [vmem:[#allocation8 + $0x30] sm:$0xf]
    %v1013 = vld [vmem:[#allocation8 + $0x34] sm:$0xf]
    %v1014 = vld [vmem:[#allocation8 + $0x38] sm:$0xf]
    %v1015 = vld [vmem:[#allocation8 + $0x3c] sm:$0xf]
    %v1016 = vrot.slane %v945, 7
    %v1017 = vrot.slane %v946, 7
    %v1018 = vrot.slane %v947, 7
    %v1019 = vrot.slane %v948, 7
    %v1020 = vsel %vm184, %v1018, %v1019
    %v1021 = vsel %vm184, %v1017, %v1018
    %v1022 = vsel %vm184, %v1016, %v1017
    %v1023 = vsel %vm184, %v1019, %v1016
    %v1024 = vsel %vm221, %v1023, 0.0
    %v1025 = vsel %vm222, %v1022, 0.0
    %v1026 = vsel %vm223, %v1021, 0.0
    %v1027 = vsel %vm224, %v1020, 0.0
    %v1028 = vpack.c.bf16 %v1025, %v1024
    %v1029 = vpack.c.bf16 %v1027, %v1026
    %s1030 = scalar_lea.vmem [#allocation8], 64
    %v1031 = vld [vmem:[%s1030] sm:$0xf]
    %v1032 = vld [vmem:[%s1030 + $0x4] sm:$0xf]
    %v1033 = vld [vmem:[%s1030 + $0x8] sm:$0xf]
    %v1034 = vld [vmem:[%s1030 + $0xc] sm:$0xf]
    %v1035 = vld [vmem:[%s1030 + $0x10] sm:$0xf]
    %v1036 = vld [vmem:[%s1030 + $0x14] sm:$0xf]
    %v1037 = vld [vmem:[%s1030 + $0x18] sm:$0xf]
    %v1038 = vld [vmem:[%s1030 + $0x1c] sm:$0xf]
    %v1039 = vld [vmem:[%s1030 + $0x20] sm:$0xf]
    %v1040 = vld [vmem:[%s1030 + $0x24] sm:$0xf]
    %v1041 = vld [vmem:[%s1030 + $0x28] sm:$0xf]
    %v1042 = vld [vmem:[%s1030 + $0x2c] sm:$0xf]
    %v1043 = vld [vmem:[%s1030 + $0x30] sm:$0xf]
    %v1044 = vld [vmem:[%s1030 + $0x34] sm:$0xf]
    %v1045 = vld [vmem:[%s1030 + $0x38] sm:$0xf]
    %v1046 = vld [vmem:[%s1030 + $0x3c] sm:$0xf]
    %v1063 = vunpack.c.l.b16 %v1031
    %v1064 = vunpack.c.l.b16 %v1032
    %v1065 = vunpack.c.l.b16 %v1033
    %v1066 = vunpack.c.l.b16 %v1034
    %v1067 = vunpack.c.l.b16 %v1035
    %v1068 = vunpack.c.l.b16 %v1036
    %v1069 = vunpack.c.l.b16 %v1037
    %v1070 = vunpack.c.l.b16 %v1038
    %v1071 = vunpack.c.l.b16 %v1039
    %v1072 = vunpack.c.l.b16 %v1040
    %v1073 = vunpack.c.l.b16 %v1041
    %v1074 = vunpack.c.l.b16 %v1042
    %v1075 = vunpack.c.l.b16 %v1043
    %v1076 = vunpack.c.l.b16 %v1044
    %v1077 = vunpack.c.l.b16 %v1045
    %v1078 = vunpack.c.l.b16 %v1046
    %v1079 = vpack.c.b16 %v1064, %v1063
    %v1080 = vpack.c.b16 %v1066, %v1065
    %v1081 = vpack.c.b16 %v1068, %v1067
    %v1082 = vpack.c.b16 %v1070, %v1069
    %v1083 = vpack.c.b16 %v1072, %v1071
    %v1084 = vpack.c.b16 %v1074, %v1073
    %v1085 = vpack.c.b16 %v1076, %v1075
    %v1086 = vpack.c.b16 %v1078, %v1077
    %1095 = vmatprep.subr.bf16.mxu0 0
    %1096 = vmatpush1.bf16.msra.mxu0 %v1086
    %1097 = vmatprep.subr.bf16.mxu0 0
    %1098 = vmatpush1.bf16.msra.mxu0 %v1085
    %1099 = vmatprep.subr.bf16.mxu0 0
    %1100 = vmatpush1.bf16.msra.mxu0 %v1084
    %1101 = vmatprep.subr.bf16.mxu0 0
    %1102 = vmatpush1.bf16.msra.mxu0 %v1083
    %1103 = vmatprep.subr.bf16.mxu0 0
    %1104 = vmatpush1.bf16.msra.mxu0 %v1082
    %1105 = vmatprep.subr.bf16.mxu0 0
    %1106 = vmatpush1.bf16.msra.mxu0 %v1081
    %1107 = vmatprep.subr.bf16.mxu0 0
    %1108 = vmatpush1.bf16.msra.mxu0 %v1080
    %1109 = vmatprep.subr.bf16.mxu0 0
    %1110 = vmatpush1.bf16.msra.mxu0 %v1079
    %1111 = vmatprep.subr.bf16.mxu0 0
    %1112 = vmatpush2.bf16.msra.mxu0 0
    %1113 = vmatprep.subr.bf16.mxu0 0
    %1114 = vmatpush2.bf16.msra.mxu0 0
    %1115 = vmatprep.subr.bf16.mxu0 0
    %1116 = vmatpush2.bf16.msra.mxu0 0
    %1117 = vmatprep.subr.bf16.mxu0 0
    %1118 = vmatpush2.bf16.msra.mxu0 0
    %1119 = vmatprep.subr.bf16.mxu0 0
    %1120 = vmatpush2.bf16.msra.mxu0 0
    %1121 = vmatprep.subr.bf16.mxu0 0
    %1122 = vmatpush2.bf16.msra.mxu0 0
    %1123 = vmatprep.subr.bf16.mxu0 0
    %1124 = vmatpush2.bf16.msra.mxu0 0
    %1125 = vmatprep.subr.bf16.mxu0 0
    %1126 = vmatpush2.bf16.msra.mxu0 0
    %1127 = vmatprep.mubr.bf16.mxu0 0
    %1128 = vmatmul.mubr.bf16.gmra.mxu0 %v1028
    %v1129 = vpop.f32.mrf.mxu0
    %v1130 = vadd.f32 0.0, %v1129
    %v1131 = vpop.f32.mrf.mxu0
    %v1132 = vpop.f32.mrf.mxu0
    %v1133 = vadd.f32 0.0, %v1132
    %v1134 = vpop.f32.mrf.mxu0
    %1135 = vmatprep.mubr.bf16.mxu0 0
    %1136 = vmatmul.mubr.bf16.gmra.mxu0 %v1029
    %v1137 = vpop.f32.mrf.mxu0
    %v1138 = vadd.f32 0.0, %v1137
    %v1139 = vpop.f32.mrf.mxu0
    %v1140 = vpop.f32.mrf.mxu0
    %v1141 = vadd.f32 0.0, %v1140
    %v1142 = vpop.f32.mrf.mxu0
    %1143 = vdwg.mxu0
    %v1160 = vunpack.c.l.b16 %v1000
    %v1161 = vunpack.c.l.b16 %v1001
    %v1162 = vunpack.c.l.b16 %v1002
    %v1163 = vunpack.c.l.b16 %v1003
    %v1164 = vunpack.c.l.b16 %v1004
    %v1165 = vunpack.c.l.b16 %v1005
    %v1166 = vunpack.c.l.b16 %v1006
    %v1167 = vunpack.c.l.b16 %v1007
    %v1168 = vunpack.c.l.b16 %v1008
    %v1169 = vunpack.c.l.b16 %v1009
    %v1170 = vunpack.c.l.b16 %v1010
    %v1171 = vunpack.c.l.b16 %v1011
    %v1172 = vunpack.c.l.b16 %v1012
    %v1173 = vunpack.c.l.b16 %v1013
    %v1174 = vunpack.c.l.b16 %v1014
    %v1175 = vunpack.c.l.b16 %v1015
    %v1176 = vpack.c.b16 %v1161, %v1160
    %v1177 = vpack.c.b16 %v1163, %v1162
    %v1178 = vpack.c.b16 %v1165, %v1164
    %v1179 = vpack.c.b16 %v1167, %v1166
    %v1180 = vpack.c.b16 %v1169, %v1168
    %v1181 = vpack.c.b16 %v1171, %v1170
    %v1182 = vpack.c.b16 %v1173, %v1172
    %v1183 = vpack.c.b16 %v1175, %v1174
    %1192 = vmatprep.subr.bf16.mxu0 0
    %1193 = vmatpush1.bf16.msra.mxu0 %v1183
    %1194 = vmatprep.subr.bf16.mxu0 0
    %1195 = vmatpush1.bf16.msra.mxu0 %v1182
    %1196 = vmatprep.subr.bf16.mxu0 0
    %1197 = vmatpush1.bf16.msra.mxu0 %v1181
    %1198 = vmatprep.subr.bf16.mxu0 0
    %1199 = vmatpush1.bf16.msra.mxu0 %v1180
    %1200 = vmatprep.subr.bf16.mxu0 0
    %1201 = vmatpush1.bf16.msra.mxu0 %v1179
    %1202 = vmatprep.subr.bf16.mxu0 0
    %1203 = vmatpush1.bf16.msra.mxu0 %v1178
    %1204 = vmatprep.subr.bf16.mxu0 0
    %1205 = vmatpush1.bf16.msra.mxu0 %v1177
    %1206 = vmatprep.subr.bf16.mxu0 0
    %1207 = vmatpush1.bf16.msra.mxu0 %v1176
    %1208 = vmatprep.subr.bf16.mxu0 0
    %1209 = vmatpush2.bf16.msra.mxu0 0
    %1210 = vmatprep.subr.bf16.mxu0 0
    %1211 = vmatpush2.bf16.msra.mxu0 0
    %1212 = vmatprep.subr.bf16.mxu0 0
    %1213 = vmatpush2.bf16.msra.mxu0 0
    %1214 = vmatprep.subr.bf16.mxu0 0
    %1215 = vmatpush2.bf16.msra.mxu0 0
    %1216 = vmatprep.subr.bf16.mxu0 0
    %1217 = vmatpush2.bf16.msra.mxu0 0
    %1218 = vmatprep.subr.bf16.mxu0 0
    %1219 = vmatpush2.bf16.msra.mxu0 0
    %1220 = vmatprep.subr.bf16.mxu0 0
    %1221 = vmatpush2.bf16.msra.mxu0 0
    %1222 = vmatprep.subr.bf16.mxu0 0
    %1223 = vmatpush2.bf16.msra.mxu0 0
    %1224 = vmatprep.mubr.bf16.mxu0 0
    %1225 = vmatmul.mubr.bf16.gmra.mxu0 %v998
    %v1226 = vpop.f32.mrf.mxu0
    %v1227 = vadd.f32 %v1130, %v1226
    %v1228 = vpop.f32.mrf.mxu0
    %v1229 = vpop.f32.mrf.mxu0
    %v1230 = vadd.f32 %v1133, %v1229
    %v1231 = vpop.f32.mrf.mxu0
    %1232 = vmatprep.mubr.bf16.mxu0 0
    %1233 = vmatmul.mubr.bf16.gmra.mxu0 %v999
    %v1234 = vpop.f32.mrf.mxu0
    %v1235 = vadd.f32 %v1138, %v1234
    %v1236 = vpop.f32.mrf.mxu0
    %v1237 = vpop.f32.mrf.mxu0
    %v1238 = vadd.f32 %v1141, %v1237
    %v1239 = vpop.f32.mrf.mxu0
    %1240 = vdwg.mxu0
    %v1241 = vpack.c.bf16 %v946, %v945
    %v1242 = vpack.c.bf16 %v948, %v947
    %s1243 = scalar_lea.vmem [#allocation8], 128
    %v1244 = vld [vmem:[%s1243] sm:$0xf]
    %v1245 = vld [vmem:[%s1243 + $0x4] sm:$0xf]
    %v1246 = vld [vmem:[%s1243 + $0x8] sm:$0xf]
    %v1247 = vld [vmem:[%s1243 + $0xc] sm:$0xf]
    %v1248 = vld [vmem:[%s1243 + $0x10] sm:$0xf]
    %v1249 = vld [vmem:[%s1243 + $0x14] sm:$0xf]
    %v1250 = vld [vmem:[%s1243 + $0x18] sm:$0xf]
    %v1251 = vld [vmem:[%s1243 + $0x1c] sm:$0xf]
    %v1252 = vld [vmem:[%s1243 + $0x20] sm:$0xf]
    %v1253 = vld [vmem:[%s1243 + $0x24] sm:$0xf]
    %v1254 = vld [vmem:[%s1243 + $0x28] sm:$0xf]
    %v1255 = vld [vmem:[%s1243 + $0x2c] sm:$0xf]
    %v1256 = vld [vmem:[%s1243 + $0x30] sm:$0xf]
    %v1257 = vld [vmem:[%s1243 + $0x34] sm:$0xf]
    %v1258 = vld [vmem:[%s1243 + $0x38] sm:$0xf]
    %v1259 = vld [vmem:[%s1243 + $0x3c] sm:$0xf]
    %v1276 = vunpack.c.l.b16 %v1244
    %v1277 = vunpack.c.l.b16 %v1245
    %v1278 = vunpack.c.l.b16 %v1246
    %v1279 = vunpack.c.l.b16 %v1247
    %v1280 = vunpack.c.l.b16 %v1248
    %v1281 = vunpack.c.l.b16 %v1249
    %v1282 = vunpack.c.l.b16 %v1250
    %v1283 = vunpack.c.l.b16 %v1251
    %v1284 = vunpack.c.l.b16 %v1252
    %v1285 = vunpack.c.l.b16 %v1253
    %v1286 = vunpack.c.l.b16 %v1254
    %v1287 = vunpack.c.l.b16 %v1255
    %v1288 = vunpack.c.l.b16 %v1256
    %v1289 = vunpack.c.l.b16 %v1257
    %v1290 = vunpack.c.l.b16 %v1258
    %v1291 = vunpack.c.l.b16 %v1259
    %v1292 = vpack.c.b16 %v1277, %v1276
    %v1293 = vpack.c.b16 %v1279, %v1278
    %v1294 = vpack.c.b16 %v1281, %v1280
    %v1295 = vpack.c.b16 %v1283, %v1282
    %v1296 = vpack.c.b16 %v1285, %v1284
    %v1297 = vpack.c.b16 %v1287, %v1286
    %v1298 = vpack.c.b16 %v1289, %v1288
    %v1299 = vpack.c.b16 %v1291, %v1290
    %1308 = vmatprep.subr.bf16.mxu0 0
    %1309 = vmatpush1.bf16.msra.mxu0 %v1299
    %1310 = vmatprep.subr.bf16.mxu0 0
    %1311 = vmatpush1.bf16.msra.mxu0 %v1298
    %1312 = vmatprep.subr.bf16.mxu0 0
    %1313 = vmatpush1.bf16.msra.mxu0 %v1297
    %1314 = vmatprep.subr.bf16.mxu0 0
    %1315 = vmatpush1.bf16.msra.mxu0 %v1296
    %1316 = vmatprep.subr.bf16.mxu0 0
    %1317 = vmatpush1.bf16.msra.mxu0 %v1295
    %1318 = vmatprep.subr.bf16.mxu0 0
    %1319 = vmatpush1.bf16.msra.mxu0 %v1294
    %1320 = vmatprep.subr.bf16.mxu0 0
    %1321 = vmatpush1.bf16.msra.mxu0 %v1293
    %1322 = vmatprep.subr.bf16.mxu0 0
    %1323 = vmatpush1.bf16.msra.mxu0 %v1292
    %1324 = vmatprep.subr.bf16.mxu0 0
    %1325 = vmatpush2.bf16.msra.mxu0 0
    %1326 = vmatprep.subr.bf16.mxu0 0
    %1327 = vmatpush2.bf16.msra.mxu0 0
    %1328 = vmatprep.subr.bf16.mxu0 0
    %1329 = vmatpush2.bf16.msra.mxu0 0
    %1330 = vmatprep.subr.bf16.mxu0 0
    %1331 = vmatpush2.bf16.msra.mxu0 0
    %1332 = vmatprep.subr.bf16.mxu0 0
    %1333 = vmatpush2.bf16.msra.mxu0 0
    %1334 = vmatprep.subr.bf16.mxu0 0
    %1335 = vmatpush2.bf16.msra.mxu0 0
    %1336 = vmatprep.subr.bf16.mxu0 0
    %1337 = vmatpush2.bf16.msra.mxu0 0
    %1338 = vmatprep.subr.bf16.mxu0 0
    %1339 = vmatpush2.bf16.msra.mxu0 0
    %1340 = vmatprep.mubr.bf16.mxu0 0
    %1341 = vmatmul.mubr.bf16.gmra.mxu0 %v1241
    %v1342 = vpop.f32.mrf.mxu0
    %v1343 = vadd.f32 0.0, %v1342
    %v1344 = vpop.f32.mrf.mxu0
    %v1345 = vpop.f32.mrf.mxu0
    %v1346 = vadd.f32 0.0, %v1345
    %v1347 = vpop.f32.mrf.mxu0
    %1348 = vmatprep.mubr.bf16.mxu0 0
    %1349 = vmatmul.mubr.bf16.gmra.mxu0 %v1242
    %v1350 = vpop.f32.mrf.mxu0
    %v1351 = vadd.f32 0.0, %v1350
    %v1352 = vpop.f32.mrf.mxu0
    %v1353 = vpop.f32.mrf.mxu0
    %v1354 = vadd.f32 0.0, %v1353
    %v1355 = vpop.f32.mrf.mxu0
    %1356 = vdwg.mxu0
    %v1357 = vadd.f32 %v1227, %v1343
    %v1358 = vadd.f32 %v1230, %v1346
    %v1359 = vadd.f32 %v1235, %v1351
    %v1360 = vadd.f32 %v1238, %v1354
    %v1361 = vrot.slane %v945, 1
    %v1362 = vrot.slane %v946, 1
    %v1363 = vrot.slane %v947, 1
    %v1364 = vrot.slane %v948, 1
    %v1365 = vsel %vm413, %v1363, %v1364
    %v1366 = vsel %vm413, %v1362, %v1363
    %v1367 = vsel %vm413, %v1361, %v1362
    %v1368 = vsel %vm413, %v1364, %v1361
    %v1369 = vsel %vm450, %v1367, 0.0
    %v1370 = vsel %vm451, %v1366, 0.0
    %v1371 = vsel %vm452, %v1365, 0.0
    %v1372 = vsel %vm453, %v1368, 0.0
    %v1373 = vpack.c.bf16 %v1370, %v1369
    %v1374 = vpack.c.bf16 %v1372, %v1371
    %s1375 = scalar_lea.vmem [#allocation8], 192
    %v1376 = vld [vmem:[%s1375] sm:$0xf]
    %v1377 = vld [vmem:[%s1375 + $0x4] sm:$0xf]
    %v1378 = vld [vmem:[%s1375 + $0x8] sm:$0xf]
    %v1379 = vld [vmem:[%s1375 + $0xc] sm:$0xf]
    %v1380 = vld [vmem:[%s1375 + $0x10] sm:$0xf]
    %v1381 = vld [vmem:[%s1375 + $0x14] sm:$0xf]
    %v1382 = vld [vmem:[%s1375 + $0x18] sm:$0xf]
    %v1383 = vld [vmem:[%s1375 + $0x1c] sm:$0xf]
    %v1384 = vld [vmem:[%s1375 + $0x20] sm:$0xf]
    %v1385 = vld [vmem:[%s1375 + $0x24] sm:$0xf]
    %v1386 = vld [vmem:[%s1375 + $0x28] sm:$0xf]
    %v1387 = vld [vmem:[%s1375 + $0x2c] sm:$0xf]
    %v1388 = vld [vmem:[%s1375 + $0x30] sm:$0xf]
    %v1389 = vld [vmem:[%s1375 + $0x34] sm:$0xf]
    %v1390 = vld [vmem:[%s1375 + $0x38] sm:$0xf]
    %v1391 = vld [vmem:[%s1375 + $0x3c] sm:$0xf]
    %v1408 = vunpack.c.l.b16 %v1376
    %v1409 = vunpack.c.l.b16 %v1377
    %v1410 = vunpack.c.l.b16 %v1378
    %v1411 = vunpack.c.l.b16 %v1379
    %v1412 = vunpack.c.l.b16 %v1380
    %v1413 = vunpack.c.l.b16 %v1381
    %v1414 = vunpack.c.l.b16 %v1382
    %v1415 = vunpack.c.l.b16 %v1383
    %v1416 = vunpack.c.l.b16 %v1384
    %v1417 = vunpack.c.l.b16 %v1385
    %v1418 = vunpack.c.l.b16 %v1386
    %v1419 = vunpack.c.l.b16 %v1387
    %v1420 = vunpack.c.l.b16 %v1388
    %v1421 = vunpack.c.l.b16 %v1389
    %v1422 = vunpack.c.l.b16 %v1390
    %v1423 = vunpack.c.l.b16 %v1391
    %v1424 = vpack.c.b16 %v1409, %v1408
    %v1425 = vpack.c.b16 %v1411, %v1410
    %v1426 = vpack.c.b16 %v1413, %v1412
    %v1427 = vpack.c.b16 %v1415, %v1414
    %v1428 = vpack.c.b16 %v1417, %v1416
    %v1429 = vpack.c.b16 %v1419, %v1418
    %v1430 = vpack.c.b16 %v1421, %v1420
    %v1431 = vpack.c.b16 %v1423, %v1422
    %1440 = vmatprep.subr.bf16.mxu0 0
    %1441 = vmatpush1.bf16.msra.mxu0 %v1431
    %1442 = vmatprep.subr.bf16.mxu0 0
    %1443 = vmatpush1.bf16.msra.mxu0 %v1430
    %1444 = vmatprep.subr.bf16.mxu0 0
    %1445 = vmatpush1.bf16.msra.mxu0 %v1429
    %1446 = vmatprep.subr.bf16.mxu0 0
    %1447 = vmatpush1.bf16.msra.mxu0 %v1428
    %1448 = vmatprep.subr.bf16.mxu0 0
    %1449 = vmatpush1.bf16.msra.mxu0 %v1427
    %1450 = vmatprep.subr.bf16.mxu0 0
    %1451 = vmatpush1.bf16.msra.mxu0 %v1426
    %1452 = vmatprep.subr.bf16.mxu0 0
    %1453 = vmatpush1.bf16.msra.mxu0 %v1425
    %1454 = vmatprep.subr.bf16.mxu0 0
    %1455 = vmatpush1.bf16.msra.mxu0 %v1424
    %1456 = vmatprep.subr.bf16.mxu0 0
    %1457 = vmatpush2.bf16.msra.mxu0 0
    %1458 = vmatprep.subr.bf16.mxu0 0
    %1459 = vmatpush2.bf16.msra.mxu0 0
    %1460 = vmatprep.subr.bf16.mxu0 0
    %1461 = vmatpush2.bf16.msra.mxu0 0
    %1462 = vmatprep.subr.bf16.mxu0 0
    %1463 = vmatpush2.bf16.msra.mxu0 0
    %1464 = vmatprep.subr.bf16.mxu0 0
    %1465 = vmatpush2.bf16.msra.mxu0 0
    %1466 = vmatprep.subr.bf16.mxu0 0
    %1467 = vmatpush2.bf16.msra.mxu0 0
    %1468 = vmatprep.subr.bf16.mxu0 0
    %1469 = vmatpush2.bf16.msra.mxu0 0
    %1470 = vmatprep.subr.bf16.mxu0 0
    %1471 = vmatpush2.bf16.msra.mxu0 0
    %1472 = vmatprep.mubr.bf16.mxu0 0
    %1473 = vmatmul.mubr.bf16.gmra.mxu0 %v1373
    %v1474 = vpop.f32.mrf.mxu0
    %v1475 = vadd.f32 0.0, %v1474
    %v1476 = vpop.f32.mrf.mxu0
    %v1477 = vpop.f32.mrf.mxu0
    %v1478 = vadd.f32 0.0, %v1477
    %v1479 = vpop.f32.mrf.mxu0
    %1480 = vmatprep.mubr.bf16.mxu0 0
    %1481 = vmatmul.mubr.bf16.gmra.mxu0 %v1374
    %v1482 = vpop.f32.mrf.mxu0
    %v1483 = vadd.f32 0.0, %v1482
    %v1484 = vpop.f32.mrf.mxu0
    %v1485 = vpop.f32.mrf.mxu0
    %v1486 = vadd.f32 0.0, %v1485
    %v1487 = vpop.f32.mrf.mxu0
    %1488 = vdwg.mxu0
    %v1489 = vadd.f32 %v1357, %v1475
    %v1490 = vadd.f32 %v1358, %v1478
    %v1491 = vadd.f32 %v1359, %v1483
    %v1492 = vadd.f32 %v1360, %v1486
    %v1493 = vrot.slane %v945, 2
    %v1494 = vrot.slane %v946, 2
    %v1495 = vrot.slane %v947, 2
    %v1496 = vrot.slane %v948, 2
    %vm1497 = vcmp.lt.s32.totalorder %v183, 6
    %v1498 = vsel %vm1497, %v1495, %v1496
    %v1499 = vsel %vm1497, %v1494, %v1495
    %v1500 = vsel %vm1497, %v1493, %v1494
    %v1501 = vsel %vm1497, %v1496, %v1493
    %v1502 = vadd.s32 %v174, 2
    %v1503 = vadd.s32 %v175, 2
    %v1504 = vadd.s32 %v176, 2
    %v1505 = vadd.s32 %v177, 2
    %vm1506 = vcmp.ge.s32.totalorder %v1502, 0
    %vm1507 = vcmp.ge.s32.totalorder %v1503, 0
    %vm1508 = vcmp.ge.s32.totalorder %v1504, 0
    %vm1509 = vcmp.ge.s32.totalorder %v1505, 0
    %vm1510 = vcmp.lt.s32.totalorder %v1502, 16
    %vm1511 = vcmp.lt.s32.totalorder %v1503, 16
    %vm1512 = vcmp.lt.s32.totalorder %v1504, 16
    %vm1513 = vcmp.lt.s32.totalorder %v1505, 16
    %vm1514 = vmand %vm1506, %vm1510
    %vm1515 = vmand %vm1507, %vm1511
    %vm1516 = vmand %vm1508, %vm1512
    %vm1517 = vmand %vm1509, %vm1513
    %v1518 = vsel %vm1514, 1, 0
    %v1519 = vsel %vm1515, 1, 0
    %v1520 = vsel %vm1516, 1, 0
    %v1521 = vsel %vm1517, 1, 0
    %1522 = vset.pattern.permute.xlu0 0
    %1523 = vperm.xlu0 %1522, %v1518
    %v1524 = vpop.permute.xlu0 %1523
    %1525 = vset.pattern.permute.xlu0 0
    %1526 = vperm.xlu0 %1525, %v1519
    %v1527 = vpop.permute.xlu0 %1526
    %1528 = vset.pattern.permute.xlu0 0
    %1529 = vperm.xlu0 %1528, %v1520
    %v1530 = vpop.permute.xlu0 %1529
    %1531 = vset.pattern.permute.xlu0 0
    %1532 = vperm.xlu0 %1531, %v1521
    %v1533 = vpop.permute.xlu0 %1532
    %vm1534 = vcmp.eq.s32.totalorder %v1524, 1
    %vm1535 = vcmp.eq.s32.totalorder %v1527, 1
    %vm1536 = vcmp.eq.s32.totalorder %v1530, 1
    %vm1537 = vcmp.eq.s32.totalorder %v1533, 1
    %v1538 = vsel %vm1534, %v1500, 0.0
    %v1539 = vsel %vm1535, %v1499, 0.0
    %v1540 = vsel %vm1536, %v1498, 0.0
    %v1541 = vsel %vm1537, %v1501, 0.0
    %v1542 = vpack.c.bf16 %v1539, %v1538
    %v1543 = vpack.c.bf16 %v1541, %v1540
    %s1544 = scalar_lea.vmem [#allocation8], 256
    %v1545 = vld [vmem:[%s1544] sm:$0xf]
    %v1546 = vld [vmem:[%s1544 + $0x4] sm:$0xf]
    %v1547 = vld [vmem:[%s1544 + $0x8] sm:$0xf]
    %v1548 = vld [vmem:[%s1544 + $0xc] sm:$0xf]
    %v1549 = vld [vmem:[%s1544 + $0x10] sm:$0xf]
    %v1550 = vld [vmem:[%s1544 + $0x14] sm:$0xf]
    %v1551 = vld [vmem:[%s1544 + $0x18] sm:$0xf]
    %v1552 = vld [vmem:[%s1544 + $0x1c] sm:$0xf]
    %v1553 = vld [vmem:[%s1544 + $0x20] sm:$0xf]
    %v1554 = vld [vmem:[%s1544 + $0x24] sm:$0xf]
    %v1555 = vld [vmem:[%s1544 + $0x28] sm:$0xf]
    %v1556 = vld [vmem:[%s1544 + $0x2c] sm:$0xf]
    %v1557 = vld [vmem:[%s1544 + $0x30] sm:$0xf]
    %v1558 = vld [vmem:[%s1544 + $0x34] sm:$0xf]
    %v1559 = vld [vmem:[%s1544 + $0x38] sm:$0xf]
    %v1560 = vld [vmem:[%s1544 + $0x3c] sm:$0xf]
    %v1577 = vunpack.c.l.b16 %v1545
    %v1578 = vunpack.c.l.b16 %v1546
    %v1579 = vunpack.c.l.b16 %v1547
    %v1580 = vunpack.c.l.b16 %v1548
    %v1581 = vunpack.c.l.b16 %v1549
    %v1582 = vunpack.c.l.b16 %v1550
    %v1583 = vunpack.c.l.b16 %v1551
    %v1584 = vunpack.c.l.b16 %v1552
    %v1585 = vunpack.c.l.b16 %v1553
    %v1586 = vunpack.c.l.b16 %v1554
    %v1587 = vunpack.c.l.b16 %v1555
    %v1588 = vunpack.c.l.b16 %v1556
    %v1589 = vunpack.c.l.b16 %v1557
    %v1590 = vunpack.c.l.b16 %v1558
    %v1591 = vunpack.c.l.b16 %v1559
    %v1592 = vunpack.c.l.b16 %v1560
    %v1593 = vpack.c.b16 %v1578, %v1577
    %v1594 = vpack.c.b16 %v1580, %v1579
    %v1595 = vpack.c.b16 %v1582, %v1581
    %v1596 = vpack.c.b16 %v1584, %v1583
    %v1597 = vpack.c.b16 %v1586, %v1585
    %v1598 = vpack.c.b16 %v1588, %v1587
    %v1599 = vpack.c.b16 %v1590, %v1589
    %v1600 = vpack.c.b16 %v1592, %v1591
    %1609 = vmatprep.subr.bf16.mxu0 0
    %1610 = vmatpush1.bf16.msra.mxu0 %v1600
    %1611 = vmatprep.subr.bf16.mxu0 0
    %1612 = vmatpush1.bf16.msra.mxu0 %v1599
    %1613 = vmatprep.subr.bf16.mxu0 0
    %1614 = vmatpush1.bf16.msra.mxu0 %v1598
    %1615 = vmatprep.subr.bf16.mxu0 0
    %1616 = vmatpush1.bf16.msra.mxu0 %v1597
    %1617 = vmatprep.subr.bf16.mxu0 0
    %1618 = vmatpush1.bf16.msra.mxu0 %v1596
    %1619 = vmatprep.subr.bf16.mxu0 0
    %1620 = vmatpush1.bf16.msra.mxu0 %v1595
    %1621 = vmatprep.subr.bf16.mxu0 0
    %1622 = vmatpush1.bf16.msra.mxu0 %v1594
    %1623 = vmatprep.subr.bf16.mxu0 0
    %1624 = vmatpush1.bf16.msra.mxu0 %v1593
    %1625 = vmatprep.subr.bf16.mxu0 0
    %1626 = vmatpush2.bf16.msra.mxu0 0
    %1627 = vmatprep.subr.bf16.mxu0 0
    %1628 = vmatpush2.bf16.msra.mxu0 0
    %1629 = vmatprep.subr.bf16.mxu0 0
    %1630 = vmatpush2.bf16.msra.mxu0 0
    %1631 = vmatprep.subr.bf16.mxu0 0
    %1632 = vmatpush2.bf16.msra.mxu0 0
    %1633 = vmatprep.subr.bf16.mxu0 0
    %1634 = vmatpush2.bf16.msra.mxu0 0
    %1635 = vmatprep.subr.bf16.mxu0 0
    %1636 = vmatpush2.bf16.msra.mxu0 0
    %1637 = vmatprep.subr.bf16.mxu0 0
    %1638 = vmatpush2.bf16.msra.mxu0 0
    %1639 = vmatprep.subr.bf16.mxu0 0
    %1640 = vmatpush2.bf16.msra.mxu0 0
    %1641 = vmatprep.mubr.bf16.mxu0 0
    %1642 = vmatmul.mubr.bf16.gmra.mxu0 %v1542
    %v1643 = vpop.f32.mrf.mxu0
    %v1644 = vadd.f32 0.0, %v1643
    %v1645 = vpop.f32.mrf.mxu0
    %v1646 = vpop.f32.mrf.mxu0
    %v1647 = vadd.f32 0.0, %v1646
    %v1648 = vpop.f32.mrf.mxu0
    %1649 = vmatprep.mubr.bf16.mxu0 0
    %1650 = vmatmul.mubr.bf16.gmra.mxu0 %v1543
    %v1651 = vpop.f32.mrf.mxu0
    %v1652 = vadd.f32 0.0, %v1651
    %v1653 = vpop.f32.mrf.mxu0
    %v1654 = vpop.f32.mrf.mxu0
    %v1655 = vadd.f32 0.0, %v1654
    %v1656 = vpop.f32.mrf.mxu0
    %1657 = vdwg.mxu0
    %v1658 = vadd.f32 %v1489, %v1644
    %v1659 = vadd.f32 %v1490, %v1647
    %v1660 = vadd.f32 %v1491, %v1652
    %v1661 = vadd.f32 %v1492, %v1655
    %v1662 = vrot.slane %v1658, 6
    %v1663 = vrot.slane %v1659, 6
    %v1664 = vrot.slane %v1660, 6
    %v1665 = vrot.slane %v1661, 6
    %v1666 = vsel %vm953, %v1664, %v1665
    %v1667 = vsel %vm953, %v1663, %v1664
    %v1668 = vsel %vm953, %v1662, %v1663
    %v1669 = vsel %vm953, %v1665, %v1662
    %v1670 = vsel %vm990, %v1669, 0.0
    %v1671 = vsel %vm991, %v1668, 0.0
    %v1672 = vsel %vm992, %v1667, 0.0
    %v1673 = vsel %vm993, %v1666, 0.0
    %v1674 = vpack.c.bf16 %v1671, %v1670
    %v1675 = vpack.c.bf16 %v1673, %v1672
    %v1676 = vld [vmem:[#allocation10] sm:$0xf]
    %v1677 = vld [vmem:[#allocation10 + $0x4] sm:$0xf]
    %v1678 = vld [vmem:[#allocation10 + $0x8] sm:$0xf]
    %v1679 = vld [vmem:[#allocation10 + $0xc] sm:$0xf]
    %v1680 = vld [vmem:[#allocation10 + $0x10] sm:$0xf]
    %v1681 = vld [vmem:[#allocation10 + $0x14] sm:$0xf]
    %v1682 = vld [vmem:[#allocation10 + $0x18] sm:$0xf]
    %v1683 = vld [vmem:[#allocation10 + $0x1c] sm:$0xf]
    %v1684 = vld [vmem:[#allocation10 + $0x20] sm:$0xf]
    %v1685 = vld [vmem:[#allocation10 + $0x24] sm:$0xf]
    %v1686 = vld [vmem:[#allocation10 + $0x28] sm:$0xf]
    %v1687 = vld [vmem:[#allocation10 + $0x2c] sm:$0xf]
    %v1688 = vld [vmem:[#allocation10 + $0x30] sm:$0xf]
    %v1689 = vld [vmem:[#allocation10 + $0x34] sm:$0xf]
    %v1690 = vld [vmem:[#allocation10 + $0x38] sm:$0xf]
    %v1691 = vld [vmem:[#allocation10 + $0x3c] sm:$0xf]
    %v1692 = vrot.slane %v1658, 7
    %v1693 = vrot.slane %v1659, 7
    %v1694 = vrot.slane %v1660, 7
    %v1695 = vrot.slane %v1661, 7
    %v1696 = vsel %vm184, %v1694, %v1695
    %v1697 = vsel %vm184, %v1693, %v1694
    %v1698 = vsel %vm184, %v1692, %v1693
    %v1699 = vsel %vm184, %v1695, %v1692
    %v1700 = vsel %vm221, %v1699, 0.0
    %v1701 = vsel %vm222, %v1698, 0.0
    %v1702 = vsel %vm223, %v1697, 0.0
    %v1703 = vsel %vm224, %v1696, 0.0
    %v1704 = vpack.c.bf16 %v1701, %v1700
    %v1705 = vpack.c.bf16 %v1703, %v1702
    %s1706 = scalar_lea.vmem [#allocation10], 64
    %v1707 = vld [vmem:[%s1706] sm:$0xf]
    %v1708 = vld [vmem:[%s1706 + $0x4] sm:$0xf]
    %v1709 = vld [vmem:[%s1706 + $0x8] sm:$0xf]
    %v1710 = vld [vmem:[%s1706 + $0xc] sm:$0xf]
    %v1711 = vld [vmem:[%s1706 + $0x10] sm:$0xf]
    %v1712 = vld [vmem:[%s1706 + $0x14] sm:$0xf]
    %v1713 = vld [vmem:[%s1706 + $0x18] sm:$0xf]
    %v1714 = vld [vmem:[%s1706 + $0x1c] sm:$0xf]
    %v1715 = vld [vmem:[%s1706 + $0x20] sm:$0xf]
    %v1716 = vld [vmem:[%s1706 + $0x24] sm:$0xf]
    %v1717 = vld [vmem:[%s1706 + $0x28] sm:$0xf]
    %v1718 = vld [vmem:[%s1706 + $0x2c] sm:$0xf]
    %v1719 = vld [vmem:[%s1706 + $0x30] sm:$0xf]
    %v1720 = vld [vmem:[%s1706 + $0x34] sm:$0xf]
    %v1721 = vld [vmem:[%s1706 + $0x38] sm:$0xf]
    %v1722 = vld [vmem:[%s1706 + $0x3c] sm:$0xf]
    %v1739 = vunpack.c.l.b16 %v1707
    %v1740 = vunpack.c.l.b16 %v1708
    %v1741 = vunpack.c.l.b16 %v1709
    %v1742 = vunpack.c.l.b16 %v1710
    %v1743 = vunpack.c.l.b16 %v1711
    %v1744 = vunpack.c.l.b16 %v1712
    %v1745 = vunpack.c.l.b16 %v1713
    %v1746 = vunpack.c.l.b16 %v1714
    %v1747 = vunpack.c.l.b16 %v1715
    %v1748 = vunpack.c.l.b16 %v1716
    %v1749 = vunpack.c.l.b16 %v1717
    %v1750 = vunpack.c.l.b16 %v1718
    %v1751 = vunpack.c.l.b16 %v1719
    %v1752 = vunpack.c.l.b16 %v1720
    %v1753 = vunpack.c.l.b16 %v1721
    %v1754 = vunpack.c.l.b16 %v1722
    %v1755 = vpack.c.b16 %v1740, %v1739
    %v1756 = vpack.c.b16 %v1742, %v1741
    %v1757 = vpack.c.b16 %v1744, %v1743
    %v1758 = vpack.c.b16 %v1746, %v1745
    %v1759 = vpack.c.b16 %v1748, %v1747
    %v1760 = vpack.c.b16 %v1750, %v1749
    %v1761 = vpack.c.b16 %v1752, %v1751
    %v1762 = vpack.c.b16 %v1754, %v1753
    %1771 = vmatprep.subr.bf16.mxu0 0
    %1772 = vmatpush1.bf16.msra.mxu0 %v1762
    %1773 = vmatprep.subr.bf16.mxu0 0
    %1774 = vmatpush1.bf16.msra.mxu0 %v1761
    %1775 = vmatprep.subr.bf16.mxu0 0
    %1776 = vmatpush1.bf16.msra.mxu0 %v1760
    %1777 = vmatprep.subr.bf16.mxu0 0
    %1778 = vmatpush1.bf16.msra.mxu0 %v1759
    %1779 = vmatprep.subr.bf16.mxu0 0
    %1780 = vmatpush1.bf16.msra.mxu0 %v1758
    %1781 = vmatprep.subr.bf16.mxu0 0
    %1782 = vmatpush1.bf16.msra.mxu0 %v1757
    %1783 = vmatprep.subr.bf16.mxu0 0
    %1784 = vmatpush1.bf16.msra.mxu0 %v1756
    %1785 = vmatprep.subr.bf16.mxu0 0
    %1786 = vmatpush1.bf16.msra.mxu0 %v1755
    %1787 = vmatprep.subr.bf16.mxu0 0
    %1788 = vmatpush2.bf16.msra.mxu0 0
    %1789 = vmatprep.subr.bf16.mxu0 0
    %1790 = vmatpush2.bf16.msra.mxu0 0
    %1791 = vmatprep.subr.bf16.mxu0 0
    %1792 = vmatpush2.bf16.msra.mxu0 0
    %1793 = vmatprep.subr.bf16.mxu0 0
    %1794 = vmatpush2.bf16.msra.mxu0 0
    %1795 = vmatprep.subr.bf16.mxu0 0
    %1796 = vmatpush2.bf16.msra.mxu0 0
    %1797 = vmatprep.subr.bf16.mxu0 0
    %1798 = vmatpush2.bf16.msra.mxu0 0
    %1799 = vmatprep.subr.bf16.mxu0 0
    %1800 = vmatpush2.bf16.msra.mxu0 0
    %1801 = vmatprep.subr.bf16.mxu0 0
    %1802 = vmatpush2.bf16.msra.mxu0 0
    %1803 = vmatprep.mubr.bf16.mxu0 0
    %1804 = vmatmul.mubr.bf16.gmra.mxu0 %v1704
    %v1805 = vpop.f32.mrf.mxu0
    %v1806 = vadd.f32 0.0, %v1805
    %v1807 = vpop.f32.mrf.mxu0
    %v1808 = vpop.f32.mrf.mxu0
    %v1809 = vadd.f32 0.0, %v1808
    %v1810 = vpop.f32.mrf.mxu0
    %1811 = vmatprep.mubr.bf16.mxu0 0
    %1812 = vmatmul.mubr.bf16.gmra.mxu0 %v1705
    %v1813 = vpop.f32.mrf.mxu0
    %v1814 = vadd.f32 0.0, %v1813
    %v1815 = vpop.f32.mrf.mxu0
    %v1816 = vpop.f32.mrf.mxu0
    %v1817 = vadd.f32 0.0, %v1816
    %v1818 = vpop.f32.mrf.mxu0
    %1819 = vdwg.mxu0
    %v1836 = vunpack.c.l.b16 %v1676
    %v1837 = vunpack.c.l.b16 %v1677
    %v1838 = vunpack.c.l.b16 %v1678
    %v1839 = vunpack.c.l.b16 %v1679
    %v1840 = vunpack.c.l.b16 %v1680
    %v1841 = vunpack.c.l.b16 %v1681
    %v1842 = vunpack.c.l.b16 %v1682
    %v1843 = vunpack.c.l.b16 %v1683
    %v1844 = vunpack.c.l.b16 %v1684
    %v1845 = vunpack.c.l.b16 %v1685
    %v1846 = vunpack.c.l.b16 %v1686
    %v1847 = vunpack.c.l.b16 %v1687
    %v1848 = vunpack.c.l.b16 %v1688
    %v1849 = vunpack.c.l.b16 %v1689
    %v1850 = vunpack.c.l.b16 %v1690
    %v1851 = vunpack.c.l.b16 %v1691
    %v1852 = vpack.c.b16 %v1837, %v1836
    %v1853 = vpack.c.b16 %v1839, %v1838
    %v1854 = vpack.c.b16 %v1841, %v1840
    %v1855 = vpack.c.b16 %v1843, %v1842
    %v1856 = vpack.c.b16 %v1845, %v1844
    %v1857 = vpack.c.b16 %v1847, %v1846
    %v1858 = vpack.c.b16 %v1849, %v1848
    %v1859 = vpack.c.b16 %v1851, %v1850
    %1868 = vmatprep.subr.bf16.mxu0 0
    %1869 = vmatpush1.bf16.msra.mxu0 %v1859
    %1870 = vmatprep.subr.bf16.mxu0 0
    %1871 = vmatpush1.bf16.msra.mxu0 %v1858
    %1872 = vmatprep.subr.bf16.mxu0 0
    %1873 = vmatpush1.bf16.msra.mxu0 %v1857
    %1874 = vmatprep.subr.bf16.mxu0 0
    %1875 = vmatpush1.bf16.msra.mxu0 %v1856
    %1876 = vmatprep.subr.bf16.mxu0 0
    %1877 = vmatpush1.bf16.msra.mxu0 %v1855
    %1878 = vmatprep.subr.bf16.mxu0 0
    %1879 = vmatpush1.bf16.msra.mxu0 %v1854
    %1880 = vmatprep.subr.bf16.mxu0 0
    %1881 = vmatpush1.bf16.msra.mxu0 %v1853
    %1882 = vmatprep.subr.bf16.mxu0 0
    %1883 = vmatpush1.bf16.msra.mxu0 %v1852
    %1884 = vmatprep.subr.bf16.mxu0 0
    %1885 = vmatpush2.bf16.msra.mxu0 0
    %1886 = vmatprep.subr.bf16.mxu0 0
    %1887 = vmatpush2.bf16.msra.mxu0 0
    %1888 = vmatprep.subr.bf16.mxu0 0
    %1889 = vmatpush2.bf16.msra.mxu0 0
    %1890 = vmatprep.subr.bf16.mxu0 0
    %1891 = vmatpush2.bf16.msra.mxu0 0
    %1892 = vmatprep.subr.bf16.mxu0 0
    %1893 = vmatpush2.bf16.msra.mxu0 0
    %1894 = vmatprep.subr.bf16.mxu0 0
    %1895 = vmatpush2.bf16.msra.mxu0 0
    %1896 = vmatprep.subr.bf16.mxu0 0
    %1897 = vmatpush2.bf16.msra.mxu0 0
    %1898 = vmatprep.subr.bf16.mxu0 0
    %1899 = vmatpush2.bf16.msra.mxu0 0
    %1900 = vmatprep.mubr.bf16.mxu0 0
    %1901 = vmatmul.mubr.bf16.gmra.mxu0 %v1674
    %v1902 = vpop.f32.mrf.mxu0
    %v1903 = vadd.f32 %v1806, %v1902
    %v1904 = vpop.f32.mrf.mxu0
    %v1905 = vpop.f32.mrf.mxu0
    %v1906 = vadd.f32 %v1809, %v1905
    %v1907 = vpop.f32.mrf.mxu0
    %1908 = vmatprep.mubr.bf16.mxu0 0
    %1909 = vmatmul.mubr.bf16.gmra.mxu0 %v1675
    %v1910 = vpop.f32.mrf.mxu0
    %v1911 = vadd.f32 %v1814, %v1910
    %v1912 = vpop.f32.mrf.mxu0
    %v1913 = vpop.f32.mrf.mxu0
    %v1914 = vadd.f32 %v1817, %v1913
    %v1915 = vpop.f32.mrf.mxu0
    %1916 = vdwg.mxu0
    %v1917 = vpack.c.bf16 %v1659, %v1658
    %v1918 = vpack.c.bf16 %v1661, %v1660
    %s1919 = scalar_lea.vmem [#allocation10], 128
    %v1920 = vld [vmem:[%s1919] sm:$0xf]
    %v1921 = vld [vmem:[%s1919 + $0x4] sm:$0xf]
    %v1922 = vld [vmem:[%s1919 + $0x8] sm:$0xf]
    %v1923 = vld [vmem:[%s1919 + $0xc] sm:$0xf]
    %v1924 = vld [vmem:[%s1919 + $0x10] sm:$0xf]
    %v1925 = vld [vmem:[%s1919 + $0x14] sm:$0xf]
    %v1926 = vld [vmem:[%s1919 + $0x18] sm:$0xf]
    %v1927 = vld [vmem:[%s1919 + $0x1c] sm:$0xf]
    %v1928 = vld [vmem:[%s1919 + $0x20] sm:$0xf]
    %v1929 = vld [vmem:[%s1919 + $0x24] sm:$0xf]
    %v1930 = vld [vmem:[%s1919 + $0x28] sm:$0xf]
    %v1931 = vld [vmem:[%s1919 + $0x2c] sm:$0xf]
    %v1932 = vld [vmem:[%s1919 + $0x30] sm:$0xf]
    %v1933 = vld [vmem:[%s1919 + $0x34] sm:$0xf]
    %v1934 = vld [vmem:[%s1919 + $0x38] sm:$0xf]
    %v1935 = vld [vmem:[%s1919 + $0x3c] sm:$0xf]
    %v1952 = vunpack.c.l.b16 %v1920
    %v1953 = vunpack.c.l.b16 %v1921
    %v1954 = vunpack.c.l.b16 %v1922
    %v1955 = vunpack.c.l.b16 %v1923
    %v1956 = vunpack.c.l.b16 %v1924
    %v1957 = vunpack.c.l.b16 %v1925
    %v1958 = vunpack.c.l.b16 %v1926
    %v1959 = vunpack.c.l.b16 %v1927
    %v1960 = vunpack.c.l.b16 %v1928
    %v1961 = vunpack.c.l.b16 %v1929
    %v1962 = vunpack.c.l.b16 %v1930
    %v1963 = vunpack.c.l.b16 %v1931
    %v1964 = vunpack.c.l.b16 %v1932
    %v1965 = vunpack.c.l.b16 %v1933
    %v1966 = vunpack.c.l.b16 %v1934
    %v1967 = vunpack.c.l.b16 %v1935
    %v1968 = vpack.c.b16 %v1953, %v1952
    %v1969 = vpack.c.b16 %v1955, %v1954
    %v1970 = vpack.c.b16 %v1957, %v1956
    %v1971 = vpack.c.b16 %v1959, %v1958
    %v1972 = vpack.c.b16 %v1961, %v1960
    %v1973 = vpack.c.b16 %v1963, %v1962
    %v1974 = vpack.c.b16 %v1965, %v1964
    %v1975 = vpack.c.b16 %v1967, %v1966
    %1984 = vmatprep.subr.bf16.mxu0 0
    %1985 = vmatpush1.bf16.msra.mxu0 %v1975
    %1986 = vmatprep.subr.bf16.mxu0 0
    %1987 = vmatpush1.bf16.msra.mxu0 %v1974
    %1988 = vmatprep.subr.bf16.mxu0 0
    %1989 = vmatpush1.bf16.msra.mxu0 %v1973
    %1990 = vmatprep.subr.bf16.mxu0 0
    %1991 = vmatpush1.bf16.msra.mxu0 %v1972
    %1992 = vmatprep.subr.bf16.mxu0 0
    %1993 = vmatpush1.bf16.msra.mxu0 %v1971
    %1994 = vmatprep.subr.bf16.mxu0 0
    %1995 = vmatpush1.bf16.msra.mxu0 %v1970
    %1996 = vmatprep.subr.bf16.mxu0 0
    %1997 = vmatpush1.bf16.msra.mxu0 %v1969
    %1998 = vmatprep.subr.bf16.mxu0 0
    %1999 = vmatpush1.bf16.msra.mxu0 %v1968
    %2000 = vmatprep.subr.bf16.mxu0 0
    %2001 = vmatpush2.bf16.msra.mxu0 0
    %2002 = vmatprep.subr.bf16.mxu0 0
    %2003 = vmatpush2.bf16.msra.mxu0 0
    %2004 = vmatprep.subr.bf16.mxu0 0
    %2005 = vmatpush2.bf16.msra.mxu0 0
    %2006 = vmatprep.subr.bf16.mxu0 0
    %2007 = vmatpush2.bf16.msra.mxu0 0
    %2008 = vmatprep.subr.bf16.mxu0 0
    %2009 = vmatpush2.bf16.msra.mxu0 0
    %2010 = vmatprep.subr.bf16.mxu0 0
    %2011 = vmatpush2.bf16.msra.mxu0 0
    %2012 = vmatprep.subr.bf16.mxu0 0
    %2013 = vmatpush2.bf16.msra.mxu0 0
    %2014 = vmatprep.subr.bf16.mxu0 0
    %2015 = vmatpush2.bf16.msra.mxu0 0
    %2016 = vmatprep.mubr.bf16.mxu0 0
    %2017 = vmatmul.mubr.bf16.gmra.mxu0 %v1917
    %v2018 = vpop.f32.mrf.mxu0
    %v2019 = vadd.f32 0.0, %v2018
    %v2020 = vpop.f32.mrf.mxu0
    %v2021 = vpop.f32.mrf.mxu0
    %v2022 = vadd.f32 0.0, %v2021
    %v2023 = vpop.f32.mrf.mxu0
    %2024 = vmatprep.mubr.bf16.mxu0 0
    %2025 = vmatmul.mubr.bf16.gmra.mxu0 %v1918
    %v2026 = vpop.f32.mrf.mxu0
    %v2027 = vadd.f32 0.0, %v2026
    %v2028 = vpop.f32.mrf.mxu0
    %v2029 = vpop.f32.mrf.mxu0
    %v2030 = vadd.f32 0.0, %v2029
    %v2031 = vpop.f32.mrf.mxu0
    %2032 = vdwg.mxu0
    %v2033 = vadd.f32 %v1903, %v2019
    %v2034 = vadd.f32 %v1906, %v2022
    %v2035 = vadd.f32 %v1911, %v2027
    %v2036 = vadd.f32 %v1914, %v2030
    %v2037 = vrot.slane %v1658, 1
    %v2038 = vrot.slane %v1659, 1
    %v2039 = vrot.slane %v1660, 1
    %v2040 = vrot.slane %v1661, 1
    %v2041 = vsel %vm413, %v2039, %v2040
    %v2042 = vsel %vm413, %v2038, %v2039
    %v2043 = vsel %vm413, %v2037, %v2038
    %v2044 = vsel %vm413, %v2040, %v2037
    %v2045 = vsel %vm450, %v2043, 0.0
    %v2046 = vsel %vm451, %v2042, 0.0
    %v2047 = vsel %vm452, %v2041, 0.0
    %v2048 = vsel %vm453, %v2044, 0.0
    %v2049 = vpack.c.bf16 %v2046, %v2045
    %v2050 = vpack.c.bf16 %v2048, %v2047
    %s2051 = scalar_lea.vmem [#allocation10], 192
    %v2052 = vld [vmem:[%s2051] sm:$0xf]
    %v2053 = vld [vmem:[%s2051 + $0x4] sm:$0xf]
    %v2054 = vld [vmem:[%s2051 + $0x8] sm:$0xf]
    %v2055 = vld [vmem:[%s2051 + $0xc] sm:$0xf]
    %v2056 = vld [vmem:[%s2051 + $0x10] sm:$0xf]
    %v2057 = vld [vmem:[%s2051 + $0x14] sm:$0xf]
    %v2058 = vld [vmem:[%s2051 + $0x18] sm:$0xf]
    %v2059 = vld [vmem:[%s2051 + $0x1c] sm:$0xf]
    %v2060 = vld [vmem:[%s2051 + $0x20] sm:$0xf]
    %v2061 = vld [vmem:[%s2051 + $0x24] sm:$0xf]
    %v2062 = vld [vmem:[%s2051 + $0x28] sm:$0xf]
    %v2063 = vld [vmem:[%s2051 + $0x2c] sm:$0xf]
    %v2064 = vld [vmem:[%s2051 + $0x30] sm:$0xf]
    %v2065 = vld [vmem:[%s2051 + $0x34] sm:$0xf]
    %v2066 = vld [vmem:[%s2051 + $0x38] sm:$0xf]
    %v2067 = vld [vmem:[%s2051 + $0x3c] sm:$0xf]
    %v2084 = vunpack.c.l.b16 %v2052
    %v2085 = vunpack.c.l.b16 %v2053
    %v2086 = vunpack.c.l.b16 %v2054
    %v2087 = vunpack.c.l.b16 %v2055
    %v2088 = vunpack.c.l.b16 %v2056
    %v2089 = vunpack.c.l.b16 %v2057
    %v2090 = vunpack.c.l.b16 %v2058
    %v2091 = vunpack.c.l.b16 %v2059
    %v2092 = vunpack.c.l.b16 %v2060
    %v2093 = vunpack.c.l.b16 %v2061
    %v2094 = vunpack.c.l.b16 %v2062
    %v2095 = vunpack.c.l.b16 %v2063
    %v2096 = vunpack.c.l.b16 %v2064
    %v2097 = vunpack.c.l.b16 %v2065
    %v2098 = vunpack.c.l.b16 %v2066
    %v2099 = vunpack.c.l.b16 %v2067
    %v2100 = vpack.c.b16 %v2085, %v2084
    %v2101 = vpack.c.b16 %v2087, %v2086
    %v2102 = vpack.c.b16 %v2089, %v2088
    %v2103 = vpack.c.b16 %v2091, %v2090
    %v2104 = vpack.c.b16 %v2093, %v2092
    %v2105 = vpack.c.b16 %v2095, %v2094
    %v2106 = vpack.c.b16 %v2097, %v2096
    %v2107 = vpack.c.b16 %v2099, %v2098
    %2116 = vmatprep.subr.bf16.mxu0 0
    %2117 = vmatpush1.bf16.msra.mxu0 %v2107
    %2118 = vmatprep.subr.bf16.mxu0 0
    %2119 = vmatpush1.bf16.msra.mxu0 %v2106
    %2120 = vmatprep.subr.bf16.mxu0 0
    %2121 = vmatpush1.bf16.msra.mxu0 %v2105
    %2122 = vmatprep.subr.bf16.mxu0 0
    %2123 = vmatpush1.bf16.msra.mxu0 %v2104
    %2124 = vmatprep.subr.bf16.mxu0 0
    %2125 = vmatpush1.bf16.msra.mxu0 %v2103
    %2126 = vmatprep.subr.bf16.mxu0 0
    %2127 = vmatpush1.bf16.msra.mxu0 %v2102
    %2128 = vmatprep.subr.bf16.mxu0 0
    %2129 = vmatpush1.bf16.msra.mxu0 %v2101
    %2130 = vmatprep.subr.bf16.mxu0 0
    %2131 = vmatpush1.bf16.msra.mxu0 %v2100
    %2132 = vmatprep.subr.bf16.mxu0 0
    %2133 = vmatpush2.bf16.msra.mxu0 0
    %2134 = vmatprep.subr.bf16.mxu0 0
    %2135 = vmatpush2.bf16.msra.mxu0 0
    %2136 = vmatprep.subr.bf16.mxu0 0
    %2137 = vmatpush2.bf16.msra.mxu0 0
    %2138 = vmatprep.subr.bf16.mxu0 0
    %2139 = vmatpush2.bf16.msra.mxu0 0
    %2140 = vmatprep.subr.bf16.mxu0 0
    %2141 = vmatpush2.bf16.msra.mxu0 0
    %2142 = vmatprep.subr.bf16.mxu0 0
    %2143 = vmatpush2.bf16.msra.mxu0 0
    %2144 = vmatprep.subr.bf16.mxu0 0
    %2145 = vmatpush2.bf16.msra.mxu0 0
    %2146 = vmatprep.subr.bf16.mxu0 0
    %2147 = vmatpush2.bf16.msra.mxu0 0
    %2148 = vmatprep.mubr.bf16.mxu0 0
    %2149 = vmatmul.mubr.bf16.gmra.mxu0 %v2049
    %v2150 = vpop.f32.mrf.mxu0
    %v2151 = vadd.f32 0.0, %v2150
    %v2152 = vpop.f32.mrf.mxu0
    %v2153 = vpop.f32.mrf.mxu0
    %v2154 = vadd.f32 0.0, %v2153
    %v2155 = vpop.f32.mrf.mxu0
    %2156 = vmatprep.mubr.bf16.mxu0 0
    %2157 = vmatmul.mubr.bf16.gmra.mxu0 %v2050
    %v2158 = vpop.f32.mrf.mxu0
    %v2159 = vadd.f32 0.0, %v2158
    %v2160 = vpop.f32.mrf.mxu0
    %v2161 = vpop.f32.mrf.mxu0
    %v2162 = vadd.f32 0.0, %v2161
    %v2163 = vpop.f32.mrf.mxu0
    %2164 = vdwg.mxu0
    %v2165 = vadd.f32 %v2033, %v2151
    %v2166 = vadd.f32 %v2034, %v2154
    %v2167 = vadd.f32 %v2035, %v2159
    %v2168 = vadd.f32 %v2036, %v2162
    %v2169 = vrot.slane %v1658, 2
    %v2170 = vrot.slane %v1659, 2
    %v2171 = vrot.slane %v1660, 2
    %v2172 = vrot.slane %v1661, 2
    %v2173 = vsel %vm1497, %v2171, %v2172
    %v2174 = vsel %vm1497, %v2170, %v2171
    %v2175 = vsel %vm1497, %v2169, %v2170
    %v2176 = vsel %vm1497, %v2172, %v2169
    %v2177 = vsel %vm1534, %v2175, 0.0
    %v2178 = vsel %vm1535, %v2174, 0.0
    %v2179 = vsel %vm1536, %v2173, 0.0
    %v2180 = vsel %vm1537, %v2176, 0.0
    %v2181 = vpack.c.bf16 %v2178, %v2177
    %v2182 = vpack.c.bf16 %v2180, %v2179
    %s2183 = scalar_lea.vmem [#allocation10], 256
    %v2184 = vld [vmem:[%s2183] sm:$0xf]
    %v2185 = vld [vmem:[%s2183 + $0x4] sm:$0xf]
    %v2186 = vld [vmem:[%s2183 + $0x8] sm:$0xf]
    %v2187 = vld [vmem:[%s2183 + $0xc] sm:$0xf]
    %v2188 = vld [vmem:[%s2183 + $0x10] sm:$0xf]
    %v2189 = vld [vmem:[%s2183 + $0x14] sm:$0xf]
    %v2190 = vld [vmem:[%s2183 + $0x18] sm:$0xf]
    %v2191 = vld [vmem:[%s2183 + $0x1c] sm:$0xf]
    %v2192 = vld [vmem:[%s2183 + $0x20] sm:$0xf]
    %v2193 = vld [vmem:[%s2183 + $0x24] sm:$0xf]
    %v2194 = vld [vmem:[%s2183 + $0x28] sm:$0xf]
    %v2195 = vld [vmem:[%s2183 + $0x2c] sm:$0xf]
    %v2196 = vld [vmem:[%s2183 + $0x30] sm:$0xf]
    %v2197 = vld [vmem:[%s2183 + $0x34] sm:$0xf]
    %v2198 = vld [vmem:[%s2183 + $0x38] sm:$0xf]
    %v2199 = vld [vmem:[%s2183 + $0x3c] sm:$0xf]
    %v2216 = vunpack.c.l.b16 %v2184
    %v2217 = vunpack.c.l.b16 %v2185
    %v2218 = vunpack.c.l.b16 %v2186
    %v2219 = vunpack.c.l.b16 %v2187
    %v2220 = vunpack.c.l.b16 %v2188
    %v2221 = vunpack.c.l.b16 %v2189
    %v2222 = vunpack.c.l.b16 %v2190
    %v2223 = vunpack.c.l.b16 %v2191
    %v2224 = vunpack.c.l.b16 %v2192
    %v2225 = vunpack.c.l.b16 %v2193
    %v2226 = vunpack.c.l.b16 %v2194
    %v2227 = vunpack.c.l.b16 %v2195
    %v2228 = vunpack.c.l.b16 %v2196
    %v2229 = vunpack.c.l.b16 %v2197
    %v2230 = vunpack.c.l.b16 %v2198
    %v2231 = vunpack.c.l.b16 %v2199
    %v2232 = vpack.c.b16 %v2217, %v2216
    %v2233 = vpack.c.b16 %v2219, %v2218
    %v2234 = vpack.c.b16 %v2221, %v2220
    %v2235 = vpack.c.b16 %v2223, %v2222
    %v2236 = vpack.c.b16 %v2225, %v2224
    %v2237 = vpack.c.b16 %v2227, %v2226
    %v2238 = vpack.c.b16 %v2229, %v2228
    %v2239 = vpack.c.b16 %v2231, %v2230
    %2248 = vmatprep.subr.bf16.mxu0 0
    %2249 = vmatpush1.bf16.msra.mxu0 %v2239
    %2250 = vmatprep.subr.bf16.mxu0 0
    %2251 = vmatpush1.bf16.msra.mxu0 %v2238
    %2252 = vmatprep.subr.bf16.mxu0 0
    %2253 = vmatpush1.bf16.msra.mxu0 %v2237
    %2254 = vmatprep.subr.bf16.mxu0 0
    %2255 = vmatpush1.bf16.msra.mxu0 %v2236
    %2256 = vmatprep.subr.bf16.mxu0 0
    %2257 = vmatpush1.bf16.msra.mxu0 %v2235
    %2258 = vmatprep.subr.bf16.mxu0 0
    %2259 = vmatpush1.bf16.msra.mxu0 %v2234
    %2260 = vmatprep.subr.bf16.mxu0 0
    %2261 = vmatpush1.bf16.msra.mxu0 %v2233
    %2262 = vmatprep.subr.bf16.mxu0 0
    %2263 = vmatpush1.bf16.msra.mxu0 %v2232
    %2264 = vmatprep.subr.bf16.mxu0 0
    %2265 = vmatpush2.bf16.msra.mxu0 0
    %2266 = vmatprep.subr.bf16.mxu0 0
    %2267 = vmatpush2.bf16.msra.mxu0 0
    %2268 = vmatprep.subr.bf16.mxu0 0
    %2269 = vmatpush2.bf16.msra.mxu0 0
    %2270 = vmatprep.subr.bf16.mxu0 0
    %2271 = vmatpush2.bf16.msra.mxu0 0
    %2272 = vmatprep.subr.bf16.mxu0 0
    %2273 = vmatpush2.bf16.msra.mxu0 0
    %2274 = vmatprep.subr.bf16.mxu0 0
    %2275 = vmatpush2.bf16.msra.mxu0 0
    %2276 = vmatprep.subr.bf16.mxu0 0
    %2277 = vmatpush2.bf16.msra.mxu0 0
    %2278 = vmatprep.subr.bf16.mxu0 0
    %2279 = vmatpush2.bf16.msra.mxu0 0
    %2280 = vmatprep.mubr.bf16.mxu0 0
    %2281 = vmatmul.mubr.bf16.gmra.mxu0 %v2181
    %v2282 = vpop.f32.mrf.mxu0
    %v2283 = vadd.f32 0.0, %v2282
    %v2284 = vpop.f32.mrf.mxu0
    %v2285 = vpop.f32.mrf.mxu0
    %v2286 = vadd.f32 0.0, %v2285
    %v2287 = vpop.f32.mrf.mxu0
    %2288 = vmatprep.mubr.bf16.mxu0 0
    %2289 = vmatmul.mubr.bf16.gmra.mxu0 %v2182
    %v2290 = vpop.f32.mrf.mxu0
    %v2291 = vadd.f32 0.0, %v2290
    %v2292 = vpop.f32.mrf.mxu0
    %v2293 = vpop.f32.mrf.mxu0
    %v2294 = vadd.f32 0.0, %v2293
    %v2295 = vpop.f32.mrf.mxu0
    %2296 = vdwg.mxu0
    %v2297 = vadd.f32 %v2165, %v2283
    %v2298 = vadd.f32 %v2166, %v2286
    %v2299 = vadd.f32 %v2167, %v2291
    %v2300 = vadd.f32 %v2168, %v2294
    %v2301 = vrot.slane %v2297, 6
    %v2302 = vrot.slane %v2298, 6
    %v2303 = vrot.slane %v2299, 6
    %v2304 = vrot.slane %v2300, 6
    %v2305 = vsel %vm953, %v2303, %v2304
    %v2306 = vsel %vm953, %v2302, %v2303
    %v2307 = vsel %vm953, %v2301, %v2302
    %v2308 = vsel %vm953, %v2304, %v2301
    %v2309 = vsel %vm990, %v2308, 0.0
    %v2310 = vsel %vm991, %v2307, 0.0
    %v2311 = vsel %vm992, %v2306, 0.0
    %v2312 = vsel %vm993, %v2305, 0.0
    %v2313 = vpack.c.bf16 %v2310, %v2309
    %v2314 = vpack.c.bf16 %v2312, %v2311
    %v2315 = vld [vmem:[#allocation11] sm:$0xf]
    %v2316 = vld [vmem:[#allocation11 + $0x4] sm:$0xf]
    %v2317 = vld [vmem:[#allocation11 + $0x8] sm:$0xf]
    %v2318 = vld [vmem:[#allocation11 + $0xc] sm:$0xf]
    %v2319 = vld [vmem:[#allocation11 + $0x10] sm:$0xf]
    %v2320 = vld [vmem:[#allocation11 + $0x14] sm:$0xf]
    %v2321 = vld [vmem:[#allocation11 + $0x18] sm:$0xf]
    %v2322 = vld [vmem:[#allocation11 + $0x1c] sm:$0xf]
    %v2323 = vld [vmem:[#allocation11 + $0x20] sm:$0xf]
    %v2324 = vld [vmem:[#allocation11 + $0x24] sm:$0xf]
    %v2325 = vld [vmem:[#allocation11 + $0x28] sm:$0xf]
    %v2326 = vld [vmem:[#allocation11 + $0x2c] sm:$0xf]
    %v2327 = vld [vmem:[#allocation11 + $0x30] sm:$0xf]
    %v2328 = vld [vmem:[#allocation11 + $0x34] sm:$0xf]
    %v2329 = vld [vmem:[#allocation11 + $0x38] sm:$0xf]
    %v2330 = vld [vmem:[#allocation11 + $0x3c] sm:$0xf]
    %v2331 = vrot.slane %v2297, 7
    %v2332 = vrot.slane %v2298, 7
    %v2333 = vrot.slane %v2299, 7
    %v2334 = vrot.slane %v2300, 7
    %v2335 = vsel %vm184, %v2333, %v2334
    %v2336 = vsel %vm184, %v2332, %v2333
    %v2337 = vsel %vm184, %v2331, %v2332
    %v2338 = vsel %vm184, %v2334, %v2331
    %v2339 = vsel %vm221, %v2338, 0.0
    %v2340 = vsel %vm222, %v2337, 0.0
    %v2341 = vsel %vm223, %v2336, 0.0
    %v2342 = vsel %vm224, %v2335, 0.0
    %v2343 = vpack.c.bf16 %v2340, %v2339
    %v2344 = vpack.c.bf16 %v2342, %v2341
    %s2345 = scalar_lea.vmem [#allocation11], 64
    %v2346 = vld [vmem:[%s2345] sm:$0xf]
    %v2347 = vld [vmem:[%s2345 + $0x4] sm:$0xf]
    %v2348 = vld [vmem:[%s2345 + $0x8] sm:$0xf]
    %v2349 = vld [vmem:[%s2345 + $0xc] sm:$0xf]
    %v2350 = vld [vmem:[%s2345 + $0x10] sm:$0xf]
    %v2351 = vld [vmem:[%s2345 + $0x14] sm:$0xf]
    %v2352 = vld [vmem:[%s2345 + $0x18] sm:$0xf]
    %v2353 = vld [vmem:[%s2345 + $0x1c] sm:$0xf]
    %v2354 = vld [vmem:[%s2345 + $0x20] sm:$0xf]
    %v2355 = vld [vmem:[%s2345 + $0x24] sm:$0xf]
    %v2356 = vld [vmem:[%s2345 + $0x28] sm:$0xf]
    %v2357 = vld [vmem:[%s2345 + $0x2c] sm:$0xf]
    %v2358 = vld [vmem:[%s2345 + $0x30] sm:$0xf]
    %v2359 = vld [vmem:[%s2345 + $0x34] sm:$0xf]
    %v2360 = vld [vmem:[%s2345 + $0x38] sm:$0xf]
    %v2361 = vld [vmem:[%s2345 + $0x3c] sm:$0xf]
    %v2378 = vunpack.c.l.b16 %v2346
    %v2379 = vunpack.c.l.b16 %v2347
    %v2380 = vunpack.c.l.b16 %v2348
    %v2381 = vunpack.c.l.b16 %v2349
    %v2382 = vunpack.c.l.b16 %v2350
    %v2383 = vunpack.c.l.b16 %v2351
    %v2384 = vunpack.c.l.b16 %v2352
    %v2385 = vunpack.c.l.b16 %v2353
    %v2386 = vunpack.c.l.b16 %v2354
    %v2387 = vunpack.c.l.b16 %v2355
    %v2388 = vunpack.c.l.b16 %v2356
    %v2389 = vunpack.c.l.b16 %v2357
    %v2390 = vunpack.c.l.b16 %v2358
    %v2391 = vunpack.c.l.b16 %v2359
    %v2392 = vunpack.c.l.b16 %v2360
    %v2393 = vunpack.c.l.b16 %v2361
    %v2394 = vpack.c.b16 %v2379, %v2378
    %v2395 = vpack.c.b16 %v2381, %v2380
    %v2396 = vpack.c.b16 %v2383, %v2382
    %v2397 = vpack.c.b16 %v2385, %v2384
    %v2398 = vpack.c.b16 %v2387, %v2386
    %v2399 = vpack.c.b16 %v2389, %v2388
    %v2400 = vpack.c.b16 %v2391, %v2390
    %v2401 = vpack.c.b16 %v2393, %v2392
    %2410 = vmatprep.subr.bf16.mxu0 0
    %2411 = vmatpush1.bf16.msra.mxu0 %v2401
    %2412 = vmatprep.subr.bf16.mxu0 0
    %2413 = vmatpush1.bf16.msra.mxu0 %v2400
    %2414 = vmatprep.subr.bf16.mxu0 0
    %2415 = vmatpush1.bf16.msra.mxu0 %v2399
    %2416 = vmatprep.subr.bf16.mxu0 0
    %2417 = vmatpush1.bf16.msra.mxu0 %v2398
    %2418 = vmatprep.subr.bf16.mxu0 0
    %2419 = vmatpush1.bf16.msra.mxu0 %v2397
    %2420 = vmatprep.subr.bf16.mxu0 0
    %2421 = vmatpush1.bf16.msra.mxu0 %v2396
    %2422 = vmatprep.subr.bf16.mxu0 0
    %2423 = vmatpush1.bf16.msra.mxu0 %v2395
    %2424 = vmatprep.subr.bf16.mxu0 0
    %2425 = vmatpush1.bf16.msra.mxu0 %v2394
    %2426 = vmatprep.subr.bf16.mxu0 0
    %2427 = vmatpush2.bf16.msra.mxu0 0
    %2428 = vmatprep.subr.bf16.mxu0 0
    %2429 = vmatpush2.bf16.msra.mxu0 0
    %2430 = vmatprep.subr.bf16.mxu0 0
    %2431 = vmatpush2.bf16.msra.mxu0 0
    %2432 = vmatprep.subr.bf16.mxu0 0
    %2433 = vmatpush2.bf16.msra.mxu0 0
    %2434 = vmatprep.subr.bf16.mxu0 0
    %2435 = vmatpush2.bf16.msra.mxu0 0
    %2436 = vmatprep.subr.bf16.mxu0 0
    %2437 = vmatpush2.bf16.msra.mxu0 0
    %2438 = vmatprep.subr.bf16.mxu0 0
    %2439 = vmatpush2.bf16.msra.mxu0 0
    %2440 = vmatprep.subr.bf16.mxu0 0
    %2441 = vmatpush2.bf16.msra.mxu0 0
    %2442 = vmatprep.mubr.bf16.mxu0 0
    %2443 = vmatmul.mubr.bf16.gmra.mxu0 %v2343
    %v2444 = vpop.f32.mrf.mxu0
    %v2445 = vadd.f32 0.0, %v2444
    %v2446 = vpop.f32.mrf.mxu0
    %v2447 = vpop.f32.mrf.mxu0
    %v2448 = vadd.f32 0.0, %v2447
    %v2449 = vpop.f32.mrf.mxu0
    %2450 = vmatprep.mubr.bf16.mxu0 0
    %2451 = vmatmul.mubr.bf16.gmra.mxu0 %v2344
    %v2452 = vpop.f32.mrf.mxu0
    %v2453 = vadd.f32 0.0, %v2452
    %v2454 = vpop.f32.mrf.mxu0
    %v2455 = vpop.f32.mrf.mxu0
    %v2456 = vadd.f32 0.0, %v2455
    %v2457 = vpop.f32.mrf.mxu0
    %2458 = vdwg.mxu0
    %v2475 = vunpack.c.l.b16 %v2315
    %v2476 = vunpack.c.l.b16 %v2316
    %v2477 = vunpack.c.l.b16 %v2317
    %v2478 = vunpack.c.l.b16 %v2318
    %v2479 = vunpack.c.l.b16 %v2319
    %v2480 = vunpack.c.l.b16 %v2320
    %v2481 = vunpack.c.l.b16 %v2321
    %v2482 = vunpack.c.l.b16 %v2322
    %v2483 = vunpack.c.l.b16 %v2323
    %v2484 = vunpack.c.l.b16 %v2324
    %v2485 = vunpack.c.l.b16 %v2325
    %v2486 = vunpack.c.l.b16 %v2326
    %v2487 = vunpack.c.l.b16 %v2327
    %v2488 = vunpack.c.l.b16 %v2328
    %v2489 = vunpack.c.l.b16 %v2329
    %v2490 = vunpack.c.l.b16 %v2330
    %v2491 = vpack.c.b16 %v2476, %v2475
    %v2492 = vpack.c.b16 %v2478, %v2477
    %v2493 = vpack.c.b16 %v2480, %v2479
    %v2494 = vpack.c.b16 %v2482, %v2481
    %v2495 = vpack.c.b16 %v2484, %v2483
    %v2496 = vpack.c.b16 %v2486, %v2485
    %v2497 = vpack.c.b16 %v2488, %v2487
    %v2498 = vpack.c.b16 %v2490, %v2489
    %2507 = vmatprep.subr.bf16.mxu0 0
    %2508 = vmatpush1.bf16.msra.mxu0 %v2498
    %2509 = vmatprep.subr.bf16.mxu0 0
    %2510 = vmatpush1.bf16.msra.mxu0 %v2497
    %2511 = vmatprep.subr.bf16.mxu0 0
    %2512 = vmatpush1.bf16.msra.mxu0 %v2496
    %2513 = vmatprep.subr.bf16.mxu0 0
    %2514 = vmatpush1.bf16.msra.mxu0 %v2495
    %2515 = vmatprep.subr.bf16.mxu0 0
    %2516 = vmatpush1.bf16.msra.mxu0 %v2494
    %2517 = vmatprep.subr.bf16.mxu0 0
    %2518 = vmatpush1.bf16.msra.mxu0 %v2493
    %2519 = vmatprep.subr.bf16.mxu0 0
    %2520 = vmatpush1.bf16.msra.mxu0 %v2492
    %2521 = vmatprep.subr.bf16.mxu0 0
    %2522 = vmatpush1.bf16.msra.mxu0 %v2491
    %2523 = vmatprep.subr.bf16.mxu0 0
    %2524 = vmatpush2.bf16.msra.mxu0 0
    %2525 = vmatprep.subr.bf16.mxu0 0
    %2526 = vmatpush2.bf16.msra.mxu0 0
    %2527 = vmatprep.subr.bf16.mxu0 0
    %2528 = vmatpush2.bf16.msra.mxu0 0
    %2529 = vmatprep.subr.bf16.mxu0 0
    %2530 = vmatpush2.bf16.msra.mxu0 0
    %2531 = vmatprep.subr.bf16.mxu0 0
    %2532 = vmatpush2.bf16.msra.mxu0 0
    %2533 = vmatprep.subr.bf16.mxu0 0
    %2534 = vmatpush2.bf16.msra.mxu0 0
    %2535 = vmatprep.subr.bf16.mxu0 0
    %2536 = vmatpush2.bf16.msra.mxu0 0
    %2537 = vmatprep.subr.bf16.mxu0 0
    %2538 = vmatpush2.bf16.msra.mxu0 0
    %2539 = vmatprep.mubr.bf16.mxu0 0
    %2540 = vmatmul.mubr.bf16.gmra.mxu0 %v2313
    %v2541 = vpop.f32.mrf.mxu0
    %v2542 = vadd.f32 %v2445, %v2541
    %v2543 = vpop.f32.mrf.mxu0
    %v2544 = vpop.f32.mrf.mxu0
    %v2545 = vadd.f32 %v2448, %v2544
    %v2546 = vpop.f32.mrf.mxu0
    %2547 = vmatprep.mubr.bf16.mxu0 0
    %2548 = vmatmul.mubr.bf16.gmra.mxu0 %v2314
    %v2549 = vpop.f32.mrf.mxu0
    %v2550 = vadd.f32 %v2453, %v2549
    %v2551 = vpop.f32.mrf.mxu0
    %v2552 = vpop.f32.mrf.mxu0
    %v2553 = vadd.f32 %v2456, %v2552
    %v2554 = vpop.f32.mrf.mxu0
    %2555 = vdwg.mxu0
    %v2556 = vpack.c.bf16 %v2298, %v2297
    %v2557 = vpack.c.bf16 %v2300, %v2299
    %s2558 = scalar_lea.vmem [#allocation11], 128
    %v2559 = vld [vmem:[%s2558] sm:$0xf]
    %v2560 = vld [vmem:[%s2558 + $0x4] sm:$0xf]
    %v2561 = vld [vmem:[%s2558 + $0x8] sm:$0xf]
    %v2562 = vld [vmem:[%s2558 + $0xc] sm:$0xf]
    %v2563 = vld [vmem:[%s2558 + $0x10] sm:$0xf]
    %v2564 = vld [vmem:[%s2558 + $0x14] sm:$0xf]
    %v2565 = vld [vmem:[%s2558 + $0x18] sm:$0xf]
    %v2566 = vld [vmem:[%s2558 + $0x1c] sm:$0xf]
    %v2567 = vld [vmem:[%s2558 + $0x20] sm:$0xf]
    %v2568 = vld [vmem:[%s2558 + $0x24] sm:$0xf]
    %v2569 = vld [vmem:[%s2558 + $0x28] sm:$0xf]
    %v2570 = vld [vmem:[%s2558 + $0x2c] sm:$0xf]
    %v2571 = vld [vmem:[%s2558 + $0x30] sm:$0xf]
    %v2572 = vld [vmem:[%s2558 + $0x34] sm:$0xf]
    %v2573 = vld [vmem:[%s2558 + $0x38] sm:$0xf]
    %v2574 = vld [vmem:[%s2558 + $0x3c] sm:$0xf]
    %v2591 = vunpack.c.l.b16 %v2559
    %v2592 = vunpack.c.l.b16 %v2560
    %v2593 = vunpack.c.l.b16 %v2561
    %v2594 = vunpack.c.l.b16 %v2562
    %v2595 = vunpack.c.l.b16 %v2563
    %v2596 = vunpack.c.l.b16 %v2564
    %v2597 = vunpack.c.l.b16 %v2565
    %v2598 = vunpack.c.l.b16 %v2566
    %v2599 = vunpack.c.l.b16 %v2567
    %v2600 = vunpack.c.l.b16 %v2568
    %v2601 = vunpack.c.l.b16 %v2569
    %v2602 = vunpack.c.l.b16 %v2570
    %v2603 = vunpack.c.l.b16 %v2571
    %v2604 = vunpack.c.l.b16 %v2572
    %v2605 = vunpack.c.l.b16 %v2573
    %v2606 = vunpack.c.l.b16 %v2574
    %v2607 = vpack.c.b16 %v2592, %v2591
    %v2608 = vpack.c.b16 %v2594, %v2593
    %v2609 = vpack.c.b16 %v2596, %v2595
    %v2610 = vpack.c.b16 %v2598, %v2597
    %v2611 = vpack.c.b16 %v2600, %v2599
    %v2612 = vpack.c.b16 %v2602, %v2601
    %v2613 = vpack.c.b16 %v2604, %v2603
    %v2614 = vpack.c.b16 %v2606, %v2605
    %2623 = vmatprep.subr.bf16.mxu0 0
    %2624 = vmatpush1.bf16.msra.mxu0 %v2614
    %2625 = vmatprep.subr.bf16.mxu0 0
    %2626 = vmatpush1.bf16.msra.mxu0 %v2613
    %2627 = vmatprep.subr.bf16.mxu0 0
    %2628 = vmatpush1.bf16.msra.mxu0 %v2612
    %2629 = vmatprep.subr.bf16.mxu0 0
    %2630 = vmatpush1.bf16.msra.mxu0 %v2611
    %2631 = vmatprep.subr.bf16.mxu0 0
    %2632 = vmatpush1.bf16.msra.mxu0 %v2610
    %2633 = vmatprep.subr.bf16.mxu0 0
    %2634 = vmatpush1.bf16.msra.mxu0 %v2609
    %2635 = vmatprep.subr.bf16.mxu0 0
    %2636 = vmatpush1.bf16.msra.mxu0 %v2608
    %2637 = vmatprep.subr.bf16.mxu0 0
    %2638 = vmatpush1.bf16.msra.mxu0 %v2607
    %2639 = vmatprep.subr.bf16.mxu0 0
    %2640 = vmatpush2.bf16.msra.mxu0 0
    %2641 = vmatprep.subr.bf16.mxu0 0
    %2642 = vmatpush2.bf16.msra.mxu0 0
    %2643 = vmatprep.subr.bf16.mxu0 0
    %2644 = vmatpush2.bf16.msra.mxu0 0
    %2645 = vmatprep.subr.bf16.mxu0 0
    %2646 = vmatpush2.bf16.msra.mxu0 0
    %2647 = vmatprep.subr.bf16.mxu0 0
    %2648 = vmatpush2.bf16.msra.mxu0 0
    %2649 = vmatprep.subr.bf16.mxu0 0
    %2650 = vmatpush2.bf16.msra.mxu0 0
    %2651 = vmatprep.subr.bf16.mxu0 0
    %2652 = vmatpush2.bf16.msra.mxu0 0
    %2653 = vmatprep.subr.bf16.mxu0 0
    %2654 = vmatpush2.bf16.msra.mxu0 0
    %2655 = vmatprep.mubr.bf16.mxu0 0
    %2656 = vmatmul.mubr.bf16.gmra.mxu0 %v2556
    %v2657 = vpop.f32.mrf.mxu0
    %v2658 = vadd.f32 0.0, %v2657
    %v2659 = vpop.f32.mrf.mxu0
    %v2660 = vpop.f32.mrf.mxu0
    %v2661 = vadd.f32 0.0, %v2660
    %v2662 = vpop.f32.mrf.mxu0
    %2663 = vmatprep.mubr.bf16.mxu0 0
    %2664 = vmatmul.mubr.bf16.gmra.mxu0 %v2557
    %v2665 = vpop.f32.mrf.mxu0
    %v2666 = vadd.f32 0.0, %v2665
    %v2667 = vpop.f32.mrf.mxu0
    %v2668 = vpop.f32.mrf.mxu0
    %v2669 = vadd.f32 0.0, %v2668
    %v2670 = vpop.f32.mrf.mxu0
    %2671 = vdwg.mxu0
    %v2672 = vadd.f32 %v2542, %v2658
    %v2673 = vadd.f32 %v2545, %v2661
    %v2674 = vadd.f32 %v2550, %v2666
    %v2675 = vadd.f32 %v2553, %v2669
    %v2676 = vrot.slane %v2297, 1
    %v2677 = vrot.slane %v2298, 1
    %v2678 = vrot.slane %v2299, 1
    %v2679 = vrot.slane %v2300, 1
    %v2680 = vsel %vm413, %v2678, %v2679
    %v2681 = vsel %vm413, %v2677, %v2678
    %v2682 = vsel %vm413, %v2676, %v2677
    %v2683 = vsel %vm413, %v2679, %v2676
    %v2684 = vsel %vm450, %v2682, 0.0
    %v2685 = vsel %vm451, %v2681, 0.0
    %v2686 = vsel %vm452, %v2680, 0.0
    %v2687 = vsel %vm453, %v2683, 0.0
    %v2688 = vpack.c.bf16 %v2685, %v2684
    %v2689 = vpack.c.bf16 %v2687, %v2686
    %s2690 = scalar_lea.vmem [#allocation11], 192
    %v2691 = vld [vmem:[%s2690] sm:$0xf]
    %v2692 = vld [vmem:[%s2690 + $0x4] sm:$0xf]
    %v2693 = vld [vmem:[%s2690 + $0x8] sm:$0xf]
    %v2694 = vld [vmem:[%s2690 + $0xc] sm:$0xf]
    %v2695 = vld [vmem:[%s2690 + $0x10] sm:$0xf]
    %v2696 = vld [vmem:[%s2690 + $0x14] sm:$0xf]
    %v2697 = vld [vmem:[%s2690 + $0x18] sm:$0xf]
    %v2698 = vld [vmem:[%s2690 + $0x1c] sm:$0xf]
    %v2699 = vld [vmem:[%s2690 + $0x20] sm:$0xf]
    %v2700 = vld [vmem:[%s2690 + $0x24] sm:$0xf]
    %v2701 = vld [vmem:[%s2690 + $0x28] sm:$0xf]
    %v2702 = vld [vmem:[%s2690 + $0x2c] sm:$0xf]
    %v2703 = vld [vmem:[%s2690 + $0x30] sm:$0xf]
    %v2704 = vld [vmem:[%s2690 + $0x34] sm:$0xf]
    %v2705 = vld [vmem:[%s2690 + $0x38] sm:$0xf]
    %v2706 = vld [vmem:[%s2690 + $0x3c] sm:$0xf]
    %v2723 = vunpack.c.l.b16 %v2691
    %v2724 = vunpack.c.l.b16 %v2692
    %v2725 = vunpack.c.l.b16 %v2693
    %v2726 = vunpack.c.l.b16 %v2694
    %v2727 = vunpack.c.l.b16 %v2695
    %v2728 = vunpack.c.l.b16 %v2696
    %v2729 = vunpack.c.l.b16 %v2697
    %v2730 = vunpack.c.l.b16 %v2698
    %v2731 = vunpack.c.l.b16 %v2699
    %v2732 = vunpack.c.l.b16 %v2700
    %v2733 = vunpack.c.l.b16 %v2701
    %v2734 = vunpack.c.l.b16 %v2702
    %v2735 = vunpack.c.l.b16 %v2703
    %v2736 = vunpack.c.l.b16 %v2704
    %v2737 = vunpack.c.l.b16 %v2705
    %v2738 = vunpack.c.l.b16 %v2706
    %v2739 = vpack.c.b16 %v2724, %v2723
    %v2740 = vpack.c.b16 %v2726, %v2725
    %v2741 = vpack.c.b16 %v2728, %v2727
    %v2742 = vpack.c.b16 %v2730, %v2729
    %v2743 = vpack.c.b16 %v2732, %v2731
    %v2744 = vpack.c.b16 %v2734, %v2733
    %v2745 = vpack.c.b16 %v2736, %v2735
    %v2746 = vpack.c.b16 %v2738, %v2737
    %2755 = vmatprep.subr.bf16.mxu0 0
    %2756 = vmatpush1.bf16.msra.mxu0 %v2746
    %2757 = vmatprep.subr.bf16.mxu0 0
    %2758 = vmatpush1.bf16.msra.mxu0 %v2745
    %2759 = vmatprep.subr.bf16.mxu0 0
    %2760 = vmatpush1.bf16.msra.mxu0 %v2744
    %2761 = vmatprep.subr.bf16.mxu0 0
    %2762 = vmatpush1.bf16.msra.mxu0 %v2743
    %2763 = vmatprep.subr.bf16.mxu0 0
    %2764 = vmatpush1.bf16.msra.mxu0 %v2742
    %2765 = vmatprep.subr.bf16.mxu0 0
    %2766 = vmatpush1.bf16.msra.mxu0 %v2741
    %2767 = vmatprep.subr.bf16.mxu0 0
    %2768 = vmatpush1.bf16.msra.mxu0 %v2740
    %2769 = vmatprep.subr.bf16.mxu0 0
    %2770 = vmatpush1.bf16.msra.mxu0 %v2739
    %2771 = vmatprep.subr.bf16.mxu0 0
    %2772 = vmatpush2.bf16.msra.mxu0 0
    %2773 = vmatprep.subr.bf16.mxu0 0
    %2774 = vmatpush2.bf16.msra.mxu0 0
    %2775 = vmatprep.subr.bf16.mxu0 0
    %2776 = vmatpush2.bf16.msra.mxu0 0
    %2777 = vmatprep.subr.bf16.mxu0 0
    %2778 = vmatpush2.bf16.msra.mxu0 0
    %2779 = vmatprep.subr.bf16.mxu0 0
    %2780 = vmatpush2.bf16.msra.mxu0 0
    %2781 = vmatprep.subr.bf16.mxu0 0
    %2782 = vmatpush2.bf16.msra.mxu0 0
    %2783 = vmatprep.subr.bf16.mxu0 0
    %2784 = vmatpush2.bf16.msra.mxu0 0
    %2785 = vmatprep.subr.bf16.mxu0 0
    %2786 = vmatpush2.bf16.msra.mxu0 0
    %2787 = vmatprep.mubr.bf16.mxu0 0
    %2788 = vmatmul.mubr.bf16.gmra.mxu0 %v2688
    %v2789 = vpop.f32.mrf.mxu0
    %v2790 = vadd.f32 0.0, %v2789
    %v2791 = vpop.f32.mrf.mxu0
    %v2792 = vpop.f32.mrf.mxu0
    %v2793 = vadd.f32 0.0, %v2792
    %v2794 = vpop.f32.mrf.mxu0
    %2795 = vmatprep.mubr.bf16.mxu0 0
    %2796 = vmatmul.mubr.bf16.gmra.mxu0 %v2689
    %v2797 = vpop.f32.mrf.mxu0
    %v2798 = vadd.f32 0.0, %v2797
    %v2799 = vpop.f32.mrf.mxu0
    %v2800 = vpop.f32.mrf.mxu0
    %v2801 = vadd.f32 0.0, %v2800
    %v2802 = vpop.f32.mrf.mxu0
    %2803 = vdwg.mxu0
    %v2804 = vadd.f32 %v2672, %v2790
    %v2805 = vadd.f32 %v2673, %v2793
    %v2806 = vadd.f32 %v2674, %v2798
    %v2807 = vadd.f32 %v2675, %v2801
    %v2808 = vrot.slane %v2297, 2
    %v2809 = vrot.slane %v2298, 2
    %v2810 = vrot.slane %v2299, 2
    %v2811 = vrot.slane %v2300, 2
    %v2812 = vsel %vm1497, %v2810, %v2811
    %v2813 = vsel %vm1497, %v2809, %v2810
    %v2814 = vsel %vm1497, %v2808, %v2809
    %v2815 = vsel %vm1497, %v2811, %v2808
    %v2816 = vsel %vm1534, %v2814, 0.0
    %v2817 = vsel %vm1535, %v2813, 0.0
    %v2818 = vsel %vm1536, %v2812, 0.0
    %v2819 = vsel %vm1537, %v2815, 0.0
    %v2820 = vpack.c.bf16 %v2817, %v2816
    %v2821 = vpack.c.bf16 %v2819, %v2818
    %s2822 = scalar_lea.vmem [#allocation11], 256
    %v2823 = vld [vmem:[%s2822] sm:$0xf]
    %v2824 = vld [vmem:[%s2822 + $0x4] sm:$0xf]
    %v2825 = vld [vmem:[%s2822 + $0x8] sm:$0xf]
    %v2826 = vld [vmem:[%s2822 + $0xc] sm:$0xf]
    %v2827 = vld [vmem:[%s2822 + $0x10] sm:$0xf]
    %v2828 = vld [vmem:[%s2822 + $0x14] sm:$0xf]
    %v2829 = vld [vmem:[%s2822 + $0x18] sm:$0xf]
    %v2830 = vld [vmem:[%s2822 + $0x1c] sm:$0xf]
    %v2831 = vld [vmem:[%s2822 + $0x20] sm:$0xf]
    %v2832 = vld [vmem:[%s2822 + $0x24] sm:$0xf]
    %v2833 = vld [vmem:[%s2822 + $0x28] sm:$0xf]
    %v2834 = vld [vmem:[%s2822 + $0x2c] sm:$0xf]
    %v2835 = vld [vmem:[%s2822 + $0x30] sm:$0xf]
    %v2836 = vld [vmem:[%s2822 + $0x34] sm:$0xf]
    %v2837 = vld [vmem:[%s2822 + $0x38] sm:$0xf]
    %v2838 = vld [vmem:[%s2822 + $0x3c] sm:$0xf]
    %v2855 = vunpack.c.l.b16 %v2823
    %v2856 = vunpack.c.l.b16 %v2824
    %v2857 = vunpack.c.l.b16 %v2825
    %v2858 = vunpack.c.l.b16 %v2826
    %v2859 = vunpack.c.l.b16 %v2827
    %v2860 = vunpack.c.l.b16 %v2828
    %v2861 = vunpack.c.l.b16 %v2829
    %v2862 = vunpack.c.l.b16 %v2830
    %v2863 = vunpack.c.l.b16 %v2831
    %v2864 = vunpack.c.l.b16 %v2832
    %v2865 = vunpack.c.l.b16 %v2833
    %v2866 = vunpack.c.l.b16 %v2834
    %v2867 = vunpack.c.l.b16 %v2835
    %v2868 = vunpack.c.l.b16 %v2836
    %v2869 = vunpack.c.l.b16 %v2837
    %v2870 = vunpack.c.l.b16 %v2838
    %v2871 = vpack.c.b16 %v2856, %v2855
    %v2872 = vpack.c.b16 %v2858, %v2857
    %v2873 = vpack.c.b16 %v2860, %v2859
    %v2874 = vpack.c.b16 %v2862, %v2861
    %v2875 = vpack.c.b16 %v2864, %v2863
    %v2876 = vpack.c.b16 %v2866, %v2865
    %v2877 = vpack.c.b16 %v2868, %v2867
    %v2878 = vpack.c.b16 %v2870, %v2869
    %2887 = vmatprep.subr.bf16.mxu0 0
    %2888 = vmatpush1.bf16.msra.mxu0 %v2878
    %2889 = vmatprep.subr.bf16.mxu0 0
    %2890 = vmatpush1.bf16.msra.mxu0 %v2877
    %2891 = vmatprep.subr.bf16.mxu0 0
    %2892 = vmatpush1.bf16.msra.mxu0 %v2876
    %2893 = vmatprep.subr.bf16.mxu0 0
    %2894 = vmatpush1.bf16.msra.mxu0 %v2875
    %2895 = vmatprep.subr.bf16.mxu0 0
    %2896 = vmatpush1.bf16.msra.mxu0 %v2874
    %2897 = vmatprep.subr.bf16.mxu0 0
    %2898 = vmatpush1.bf16.msra.mxu0 %v2873
    %2899 = vmatprep.subr.bf16.mxu0 0
    %2900 = vmatpush1.bf16.msra.mxu0 %v2872
    %2901 = vmatprep.subr.bf16.mxu0 0
    %2902 = vmatpush1.bf16.msra.mxu0 %v2871
    %2903 = vmatprep.subr.bf16.mxu0 0
    %2904 = vmatpush2.bf16.msra.mxu0 0
    %2905 = vmatprep.subr.bf16.mxu0 0
    %2906 = vmatpush2.bf16.msra.mxu0 0
    %2907 = vmatprep.subr.bf16.mxu0 0
    %2908 = vmatpush2.bf16.msra.mxu0 0
    %2909 = vmatprep.subr.bf16.mxu0 0
    %2910 = vmatpush2.bf16.msra.mxu0 0
    %2911 = vmatprep.subr.bf16.mxu0 0
    %2912 = vmatpush2.bf16.msra.mxu0 0
    %2913 = vmatprep.subr.bf16.mxu0 0
    %2914 = vmatpush2.bf16.msra.mxu0 0
    %2915 = vmatprep.subr.bf16.mxu0 0
    %2916 = vmatpush2.bf16.msra.mxu0 0
    %2917 = vmatprep.subr.bf16.mxu0 0
    %2918 = vmatpush2.bf16.msra.mxu0 0
    %2919 = vmatprep.mubr.bf16.mxu0 0
    %2920 = vmatmul.mubr.bf16.gmra.mxu0 %v2820
    %v2921 = vpop.f32.mrf.mxu0
    %v2922 = vadd.f32 0.0, %v2921
    %v2923 = vpop.f32.mrf.mxu0
    %v2924 = vpop.f32.mrf.mxu0
    %v2925 = vadd.f32 0.0, %v2924
    %v2926 = vpop.f32.mrf.mxu0
    %2927 = vmatprep.mubr.bf16.mxu0 0
    %2928 = vmatmul.mubr.bf16.gmra.mxu0 %v2821
    %v2929 = vpop.f32.mrf.mxu0
    %v2930 = vadd.f32 0.0, %v2929
    %v2931 = vpop.f32.mrf.mxu0
    %v2932 = vpop.f32.mrf.mxu0
    %v2933 = vadd.f32 0.0, %v2932
    %v2934 = vpop.f32.mrf.mxu0
    %2935 = vdwg.mxu0
    %v2936 = vadd.f32 %v2804, %v2922
    %v2937 = vadd.f32 %v2805, %v2925
    %v2938 = vadd.f32 %v2806, %v2930
    %v2939 = vadd.f32 %v2807, %v2933
    %v2940 = vld [vmem:[#allocation13] sm:$0xf]
    %v2941 = vld [vmem:[#allocation13 + $0x4] sm:$0xf]
    %v2942 = vld [vmem:[#allocation13 + $0x8] sm:$0xf]
    %v2943 = vld [vmem:[#allocation13 + $0xc] sm:$0xf]
    %v2944 = vld [vmem:[#allocation13 + $0x10] sm:$0xf]
    %v2945 = vld [vmem:[#allocation13 + $0x14] sm:$0xf]
    %v2946 = vld [vmem:[#allocation13 + $0x18] sm:$0xf]
    %v2947 = vld [vmem:[#allocation13 + $0x1c] sm:$0xf]
    %v2948 = vld [vmem:[#allocation13 + $0x20] sm:$0xf]
    %v2949 = vld [vmem:[#allocation13 + $0x24] sm:$0xf]
    %v2950 = vld [vmem:[#allocation13 + $0x28] sm:$0xf]
    %v2951 = vld [vmem:[#allocation13 + $0x2c] sm:$0xf]
    %v2952 = vld [vmem:[#allocation13 + $0x30] sm:$0xf]
    %v2953 = vld [vmem:[#allocation13 + $0x34] sm:$0xf]
    %v2954 = vld [vmem:[#allocation13 + $0x38] sm:$0xf]
    %v2955 = vld [vmem:[#allocation13 + $0x3c] sm:$0xf]
    %v2956 = vpack.c.bf16 %v2937, %v2936
    %v2957 = vpack.c.bf16 %v2939, %v2938
    %v2958 = vld [vmem:[#allocation14] sm:$0xf]
    %v2959 = vld [vmem:[#allocation14 + $0x4] sm:$0xf]
    %v2960 = vld [vmem:[#allocation14 + $0x8] sm:$0xf]
    %v2961 = vld [vmem:[#allocation14 + $0xc] sm:$0xf]
    %v2962 = vld [vmem:[#allocation14 + $0x10] sm:$0xf]
    %v2963 = vld [vmem:[#allocation14 + $0x14] sm:$0xf]
    %v2964 = vld [vmem:[#allocation14 + $0x18] sm:$0xf]
    %v2965 = vld [vmem:[#allocation14 + $0x1c] sm:$0xf]
    %v2966 = vld [vmem:[#allocation14 + $0x20] sm:$0xf]
    %v2967 = vld [vmem:[#allocation14 + $0x24] sm:$0xf]
    %v2968 = vld [vmem:[#allocation14 + $0x28] sm:$0xf]
    %v2969 = vld [vmem:[#allocation14 + $0x2c] sm:$0xf]
    %v2970 = vld [vmem:[#allocation14 + $0x30] sm:$0xf]
    %v2971 = vld [vmem:[#allocation14 + $0x34] sm:$0xf]
    %v2972 = vld [vmem:[#allocation14 + $0x38] sm:$0xf]
    %v2973 = vld [vmem:[#allocation14 + $0x3c] sm:$0xf]
    %v2990 = vunpack.c.l.b16 %v2958
    %v2991 = vunpack.c.l.b16 %v2959
    %v2992 = vunpack.c.l.b16 %v2960
    %v2993 = vunpack.c.l.b16 %v2961
    %v2994 = vunpack.c.l.b16 %v2962
    %v2995 = vunpack.c.l.b16 %v2963
    %v2996 = vunpack.c.l.b16 %v2964
    %v2997 = vunpack.c.l.b16 %v2965
    %v2998 = vunpack.c.l.b16 %v2966
    %v2999 = vunpack.c.l.b16 %v2967
    %v3000 = vunpack.c.l.b16 %v2968
    %v3001 = vunpack.c.l.b16 %v2969
    %v3002 = vunpack.c.l.b16 %v2970
    %v3003 = vunpack.c.l.b16 %v2971
    %v3004 = vunpack.c.l.b16 %v2972
    %v3005 = vunpack.c.l.b16 %v2973
    %v3006 = vpack.c.b16 %v2991, %v2990
    %v3007 = vpack.c.b16 %v2993, %v2992
    %v3008 = vpack.c.b16 %v2995, %v2994
    %v3009 = vpack.c.b16 %v2997, %v2996
    %v3010 = vpack.c.b16 %v2999, %v2998
    %v3011 = vpack.c.b16 %v3001, %v3000
    %v3012 = vpack.c.b16 %v3003, %v3002
    %v3013 = vpack.c.b16 %v3005, %v3004
    %3022 = vmatprep.subr.bf16.mxu0 0
    %3023 = vmatpush1.bf16.msra.mxu0 %v3013
    %3024 = vmatprep.subr.bf16.mxu0 0
    %3025 = vmatpush1.bf16.msra.mxu0 %v3012
    %3026 = vmatprep.subr.bf16.mxu0 0
    %3027 = vmatpush1.bf16.msra.mxu0 %v3011
    %3028 = vmatprep.subr.bf16.mxu0 0
    %3029 = vmatpush1.bf16.msra.mxu0 %v3010
    %3030 = vmatprep.subr.bf16.mxu0 0
    %3031 = vmatpush1.bf16.msra.mxu0 %v3009
    %3032 = vmatprep.subr.bf16.mxu0 0
    %3033 = vmatpush1.bf16.msra.mxu0 %v3008
    %3034 = vmatprep.subr.bf16.mxu0 0
    %3035 = vmatpush1.bf16.msra.mxu0 %v3007
    %3036 = vmatprep.subr.bf16.mxu0 0
    %3037 = vmatpush1.bf16.msra.mxu0 %v3006
    %3038 = vmatprep.subr.bf16.mxu0 0
    %3039 = vmatpush2.bf16.msra.mxu0 0
    %3040 = vmatprep.subr.bf16.mxu0 0
    %3041 = vmatpush2.bf16.msra.mxu0 0
    %3042 = vmatprep.subr.bf16.mxu0 0
    %3043 = vmatpush2.bf16.msra.mxu0 0
    %3044 = vmatprep.subr.bf16.mxu0 0
    %3045 = vmatpush2.bf16.msra.mxu0 0
    %3046 = vmatprep.subr.bf16.mxu0 0
    %3047 = vmatpush2.bf16.msra.mxu0 0
    %3048 = vmatprep.subr.bf16.mxu0 0
    %3049 = vmatpush2.bf16.msra.mxu0 0
    %3050 = vmatprep.subr.bf16.mxu0 0
    %3051 = vmatpush2.bf16.msra.mxu0 0
    %3052 = vmatprep.subr.bf16.mxu0 0
    %3053 = vmatpush2.bf16.msra.mxu0 0
    %3054 = vmatprep.mubr.bf16.mxu0 0
    %3055 = vmatmul.mubr.bf16.gmra.mxu0 %v2956
    %v3056 = vpop.f32.mrf.mxu0
    %v3057 = vadd.f32 0.0, %v3056
    %v3058 = vpop.f32.mrf.mxu0
    %v3059 = vpop.f32.mrf.mxu0
    %v3060 = vadd.f32 0.0, %v3059
    %v3061 = vpop.f32.mrf.mxu0
    %3062 = vmatprep.mubr.bf16.mxu0 0
    %3063 = vmatmul.mubr.bf16.gmra.mxu0 %v2957
    %v3064 = vpop.f32.mrf.mxu0
    %v3065 = vadd.f32 0.0, %v3064
    %v3066 = vpop.f32.mrf.mxu0
    %v3067 = vpop.f32.mrf.mxu0
    %v3068 = vadd.f32 0.0, %v3067
    %v3069 = vpop.f32.mrf.mxu0
    %3070 = vdwg.mxu0
    %v3087 = vunpack.c.l.b16 %v2940
    %v3088 = vunpack.c.l.b16 %v2941
    %v3089 = vunpack.c.l.b16 %v2942
    %v3090 = vunpack.c.l.b16 %v2943
    %v3091 = vunpack.c.l.b16 %v2944
    %v3092 = vunpack.c.l.b16 %v2945
    %v3093 = vunpack.c.l.b16 %v2946
    %v3094 = vunpack.c.l.b16 %v2947
    %v3095 = vunpack.c.l.b16 %v2948
    %v3096 = vunpack.c.l.b16 %v2949
    %v3097 = vunpack.c.l.b16 %v2950
    %v3098 = vunpack.c.l.b16 %v2951
    %v3099 = vunpack.c.l.b16 %v2952
    %v3100 = vunpack.c.l.b16 %v2953
    %v3101 = vunpack.c.l.b16 %v2954
    %v3102 = vunpack.c.l.b16 %v2955
    %v3103 = vpack.c.b16 %v3088, %v3087
    %v3104 = vpack.c.b16 %v3090, %v3089
    %v3105 = vpack.c.b16 %v3092, %v3091
    %v3106 = vpack.c.b16 %v3094, %v3093
    %v3107 = vpack.c.b16 %v3096, %v3095
    %v3108 = vpack.c.b16 %v3098, %v3097
    %v3109 = vpack.c.b16 %v3100, %v3099
    %v3110 = vpack.c.b16 %v3102, %v3101
    %3119 = vmatprep.subr.bf16.mxu0 0
    %3120 = vmatpush1.bf16.msra.mxu0 %v3110
    %3121 = vmatprep.subr.bf16.mxu0 0
    %3122 = vmatpush1.bf16.msra.mxu0 %v3109
    %3123 = vmatprep.subr.bf16.mxu0 0
    %3124 = vmatpush1.bf16.msra.mxu0 %v3108
    %3125 = vmatprep.subr.bf16.mxu0 0
    %3126 = vmatpush1.bf16.msra.mxu0 %v3107
    %3127 = vmatprep.subr.bf16.mxu0 0
    %3128 = vmatpush1.bf16.msra.mxu0 %v3106
    %3129 = vmatprep.subr.bf16.mxu0 0
    %3130 = vmatpush1.bf16.msra.mxu0 %v3105
    %3131 = vmatprep.subr.bf16.mxu0 0
    %3132 = vmatpush1.bf16.msra.mxu0 %v3104
    %3133 = vmatprep.subr.bf16.mxu0 0
    %3134 = vmatpush1.bf16.msra.mxu0 %v3103
    %3135 = vmatprep.subr.bf16.mxu0 0
    %3136 = vmatpush2.bf16.msra.mxu0 0
    %3137 = vmatprep.subr.bf16.mxu0 0
    %3138 = vmatpush2.bf16.msra.mxu0 0
    %3139 = vmatprep.subr.bf16.mxu0 0
    %3140 = vmatpush2.bf16.msra.mxu0 0
    %3141 = vmatprep.subr.bf16.mxu0 0
    %3142 = vmatpush2.bf16.msra.mxu0 0
    %3143 = vmatprep.subr.bf16.mxu0 0
    %3144 = vmatpush2.bf16.msra.mxu0 0
    %3145 = vmatprep.subr.bf16.mxu0 0
    %3146 = vmatpush2.bf16.msra.mxu0 0
    %3147 = vmatprep.subr.bf16.mxu0 0
    %3148 = vmatpush2.bf16.msra.mxu0 0
    %3149 = vmatprep.subr.bf16.mxu0 0
    %3150 = vmatpush2.bf16.msra.mxu0 0
    %3151 = vmatprep.mubr.bf16.mxu0 0
    %3152 = vmatmul.mubr.bf16.gmra.mxu0 %v1241
    %v3153 = vpop.f32.mrf.mxu0
    %v3154 = vadd.f32 %v3057, %v3153
    %v3155 = vpop.f32.mrf.mxu0
    %v3156 = vpop.f32.mrf.mxu0
    %v3157 = vadd.f32 %v3060, %v3156
    %v3158 = vpop.f32.mrf.mxu0
    %3159 = vmatprep.mubr.bf16.mxu0 0
    %3160 = vmatmul.mubr.bf16.gmra.mxu0 %v1242
    %v3161 = vpop.f32.mrf.mxu0
    %v3162 = vadd.f32 %v3065, %v3161
    %v3163 = vpop.f32.mrf.mxu0
    %v3164 = vpop.f32.mrf.mxu0
    %v3165 = vadd.f32 %v3068, %v3164
    %v3166 = vpop.f32.mrf.mxu0
    %3167 = vdwg.mxu0
    %v3168 = vld [vmem:[%s11] sm:$0x1]
    %v3170 = vlaneseq
    %v3171 = vshrl.u32 %v3170, 7
    %v3172 = vsub.s32 0, %v3171
    %v3173 = vrot.slane %v3168, %v3172
    %v3175 = vadd.f32 %v3154, %v3173
    %v3176 = vadd.f32 %v3157, %v3173
    %v3177 = vadd.f32 %v3162, %v3173
    %v3178 = vadd.f32 %v3165, %v3173
    %v3179 = vld [vmem:[#allocation16] sm:$0xf]
    %v3180 = vld [vmem:[#allocation16 + $0x4] sm:$0xf]
    %v3181 = vld [vmem:[#allocation16 + $0x8] sm:$0xf]
    %v3182 = vld [vmem:[#allocation16 + $0xc] sm:$0xf]
    %v3183 = vld [vmem:[#allocation16 + $0x10] sm:$0xf]
    %v3184 = vld [vmem:[#allocation16 + $0x14] sm:$0xf]
    %v3185 = vld [vmem:[#allocation16 + $0x18] sm:$0xf]
    %v3186 = vld [vmem:[#allocation16 + $0x1c] sm:$0xf]
    %v3195 = vunpack.c.l.b16 %v3179
    %v3196 = vunpack.c.l.b16 %v3180
    %v3197 = vunpack.c.l.b16 %v3181
    %v3198 = vunpack.c.l.b16 %v3182
    %v3199 = vunpack.c.l.b16 %v3183
    %v3200 = vunpack.c.l.b16 %v3184
    %v3201 = vunpack.c.l.b16 %v3185
    %v3202 = vunpack.c.l.b16 %v3186
    %v3203 = vpack.c.b16 %v3196, %v3195
    %v3204 = vpack.c.b16 %v3198, %v3197
    %v3205 = vpack.c.b16 %v3200, %v3199
    %v3206 = vpack.c.b16 %v3202, %v3201
    %3211 = vmatprep.subr.bf16.mxu0 0
    %3212 = vmatpush1.bf16.msra.mxu0 0
    %3213 = vmatprep.subr.bf16.mxu0 0
    %3214 = vmatpush1.bf16.msra.mxu0 0
    %3215 = vmatprep.subr.bf16.mxu0 0
    %3216 = vmatpush1.bf16.msra.mxu0 0
    %3217 = vmatprep.subr.bf16.mxu0 0
    %3218 = vmatpush1.bf16.msra.mxu0 0
    %3219 = vmatprep.subr.bf16.mxu0 0
    %3220 = vmatpush1.bf16.msra.mxu0 %v3206
    %3221 = vmatprep.subr.bf16.mxu0 0
    %3222 = vmatpush1.bf16.msra.mxu0 %v3205
    %3223 = vmatprep.subr.bf16.mxu0 0
    %3224 = vmatpush1.bf16.msra.mxu0 %v3204
    %3225 = vmatprep.subr.bf16.mxu0 0
    %3226 = vmatpush1.bf16.msra.mxu0 %v3203
    %3227 = vmatprep.subr.bf16.mxu0 0
    %3228 = vmatpush2.bf16.msra.mxu0 0
    %3229 = vmatprep.subr.bf16.mxu0 0
    %3230 = vmatpush2.bf16.msra.mxu0 0
    %3231 = vmatprep.subr.bf16.mxu0 0
    %3232 = vmatpush2.bf16.msra.mxu0 0
    %3233 = vmatprep.subr.bf16.mxu0 0
    %3234 = vmatpush2.bf16.msra.mxu0 0
    %3235 = vmatprep.subr.bf16.mxu0 0
    %3236 = vmatpush2.bf16.msra.mxu0 0
    %3237 = vmatprep.subr.bf16.mxu0 0
    %3238 = vmatpush2.bf16.msra.mxu0 0
    %3239 = vmatprep.subr.bf16.mxu0 0
    %3240 = vmatpush2.bf16.msra.mxu0 0
    %3241 = vmatprep.subr.bf16.mxu0 0
    %3242 = vmatpush2.bf16.msra.mxu0 0
    %3243 = vmatprep.mubr.bf16.mxu0 0
    %3244 = vmatmul.mubr.bf16.gmra.mxu0 %v276
    %v3245 = vpop.f32.mrf.mxu0
    %v3246 = vadd.f32 0.0, %v3245
    %v3247 = vpop.f32.mrf.mxu0
    %v3248 = vpop.f32.mrf.mxu0
    %v3249 = vadd.f32 0.0, %v3248
    %v3250 = vpop.f32.mrf.mxu0
    %3251 = vmatprep.mubr.bf16.mxu0 0
    %3252 = vmatmul.mubr.bf16.gmra.mxu0 %v279
    %v3253 = vpop.f32.mrf.mxu0
    %v3254 = vadd.f32 0.0, %v3253
    %v3255 = vpop.f32.mrf.mxu0
    %v3256 = vpop.f32.mrf.mxu0
    %v3257 = vadd.f32 0.0, %v3256
    %v3258 = vpop.f32.mrf.mxu0
    %3259 = vdwg.mxu0
    %v3260 = vadd.f32 %v3175, %v3246
    %v3261 = vadd.f32 %v3176, %v3249
    %v3262 = vadd.f32 %v3177, %v3254
    %v3263 = vadd.f32 %v3178, %v3257
    %v3264 = vrot.slane %v3260, 1
    %v3265 = vrot.slane %v3261, 1
    %v3266 = vrot.slane %v3262, 1
    %v3267 = vrot.slane %v3263, 1
    %v3268 = vsel %vm413, %v3266, %v3267
    %v3269 = vsel %vm413, %v3265, %v3266
    %v3270 = vsel %vm413, %v3264, %v3265
    %v3271 = vsel %vm413, %v3267, %v3264
    %v3272 = vsel %vm450, %v3270, 0.0
    %v3273 = vsel %vm451, %v3269, 0.0
    %v3274 = vsel %vm452, %v3268, 0.0
    %v3275 = vsel %vm453, %v3271, 0.0
    %v3276 = vmax.f32 %v3260, %v3272
    %v3277 = vmax.f32 %v3261, %v3273
    %v3278 = vmax.f32 %v3262, %v3274
    %v3279 = vmax.f32 %v3263, %v3275
    %v3280 = vld [vmem:[%s13] sm:$0xf]
    %v3281 = vld [vmem:[%s13 + $0x4] sm:$0xf]
    %v3282 = vpack.c.bf16 %v3277, %v3276
    %v3283 = vpack.c.bf16 %v3279, %v3278
    %v3286 = vunpack.c.l.b16 %v3280
    %v3287 = vunpack.c.l.b16 %v3281
    %v3288 = vpack.c.b16 %v3287, %v3286
    %vm3289 = vcmask 261120
    %v3291 = vsel %vm3289, %v3288, 0
    %3293 = vmatprep.subr.bf16.mxu0 0
    %3294 = vmatpush1.bf16.msra.mxu0 0
    %3295 = vmatprep.subr.bf16.mxu0 0
    %3296 = vmatpush1.bf16.msra.mxu0 0
    %3297 = vmatprep.subr.bf16.mxu0 0
    %3298 = vmatpush1.bf16.msra.mxu0 0
    %3299 = vmatprep.subr.bf16.mxu0 0
    %3300 = vmatpush1.bf16.msra.mxu0 0
    %3301 = vmatprep.subr.bf16.mxu0 0
    %3302 = vmatpush1.bf16.msra.mxu0 0
    %3303 = vmatprep.subr.bf16.mxu0 0
    %3304 = vmatpush1.bf16.msra.mxu0 0
    %3305 = vmatprep.subr.bf16.mxu0 0
    %3306 = vmatpush1.bf16.msra.mxu0 %v3283
    %3307 = vmatprep.subr.bf16.mxu0 0
    %3308 = vmatpush1.bf16.msra.mxu0 %v3282
    %3309 = vmatprep.subr.bf16.mxu0 0
    %3310 = vmatpush2.bf16.msra.mxu0 0
    %3311 = vmatprep.subr.bf16.mxu0 0
    %3312 = vmatpush2.bf16.msra.mxu0 0
    %3313 = vmatprep.subr.bf16.mxu0 0
    %3314 = vmatpush2.bf16.msra.mxu0 0
    %3315 = vmatprep.subr.bf16.mxu0 0
    %3316 = vmatpush2.bf16.msra.mxu0 0
    %3317 = vmatprep.subr.bf16.mxu0 0
    %3318 = vmatpush2.bf16.msra.mxu0 0
    %3319 = vmatprep.subr.bf16.mxu0 0
    %3320 = vmatpush2.bf16.msra.mxu0 0
    %3321 = vmatprep.subr.bf16.mxu0 0
    %3322 = vmatpush2.bf16.msra.mxu0 0
    %3323 = vmatprep.subr.bf16.mxu0 0
    %3324 = vmatpush2.bf16.msra.mxu0 0
    %3325 = vmatprep.mubr.bf16.mxu0 0
    %3326 = vmatmul.mubr.bf16.gmra.mxu0 %v3291
    %v3327 = vpop.f32.mrf.mxu0
    %v3328 = vadd.f32 0.0, %v3327
    %v3329 = vpop.f32.mrf.mxu0
    %v3330 = vpop.f32.mrf.mxu0
    %v3331 = vadd.f32 0.0, %v3330
    %v3332 = vpop.f32.mrf.mxu0
    %3333 = vdwg.mxu0
    %v3334 = vpack.c.bf16 %v3331, %v3328
    %v3335 = vld [vmem:[%s14] sm:$0xf]
    %v3336 = vld [vmem:[%s14 + $0x4] sm:$0xf]
    %v3337 = vld [vmem:[%s14 + $0x8] sm:$0xf]
    %v3338 = vld [vmem:[%s14 + $0xc] sm:$0xf]
    %v3339 = vld [vmem:[%s14 + $0x10] sm:$0xf]
    %v3340 = vld [vmem:[%s14 + $0x14] sm:$0xf]
    %v3341 = vld [vmem:[%s14 + $0x18] sm:$0xf]
    %v3342 = vld [vmem:[%s14 + $0x1c] sm:$0xf]
    %v3343 = vld [vmem:[%s14 + $0x20] sm:$0xf]
    %v3344 = vld [vmem:[%s14 + $0x24] sm:$0xf]
    %v3345 = vld [vmem:[%s14 + $0x28] sm:$0xf]
    %v3346 = vld [vmem:[%s14 + $0x2c] sm:$0xf]
    %v3347 = vld [vmem:[%s14 + $0x30] sm:$0xf]
    %v3348 = vld [vmem:[%s14 + $0x34] sm:$0xf]
    %v3349 = vld [vmem:[%s14 + $0x38] sm:$0xf]
    %v3350 = vld [vmem:[%s14 + $0x3c] sm:$0xf]
    %v3367 = vunpack.c.l.b16 %v3335
    %v3368 = vunpack.c.l.b16 %v3336
    %v3369 = vunpack.c.l.b16 %v3337
    %v3370 = vunpack.c.l.b16 %v3338
    %v3371 = vunpack.c.l.b16 %v3339
    %v3372 = vunpack.c.l.b16 %v3340
    %v3373 = vunpack.c.l.b16 %v3341
    %v3374 = vunpack.c.l.b16 %v3342
    %v3375 = vunpack.c.l.b16 %v3343
    %v3376 = vunpack.c.l.b16 %v3344
    %v3377 = vunpack.c.l.b16 %v3345
    %v3378 = vunpack.c.l.b16 %v3346
    %v3379 = vunpack.c.l.b16 %v3347
    %v3380 = vunpack.c.l.b16 %v3348
    %v3381 = vunpack.c.l.b16 %v3349
    %v3382 = vunpack.c.l.b16 %v3350
    %v3383 = vpack.c.b16 %v3368, %v3367
    %v3384 = vpack.c.b16 %v3370, %v3369
    %v3385 = vpack.c.b16 %v3372, %v3371
    %v3386 = vpack.c.b16 %v3374, %v3373
    %v3387 = vpack.c.b16 %v3376, %v3375
    %v3388 = vpack.c.b16 %v3378, %v3377
    %v3389 = vpack.c.b16 %v3380, %v3379
    %v3390 = vpack.c.b16 %v3382, %v3381
    %3399 = vmatprep.subr.bf16.mxu0 0
    %3400 = vmatpush1.bf16.msra.mxu0 %v3390
    %3401 = vmatprep.subr.bf16.mxu0 0
    %3402 = vmatpush1.bf16.msra.mxu0 %v3389
    %3403 = vmatprep.subr.bf16.mxu0 0
    %3404 = vmatpush1.bf16.msra.mxu0 %v3388
    %3405 = vmatprep.subr.bf16.mxu0 0
    %3406 = vmatpush1.bf16.msra.mxu0 %v3387
    %3407 = vmatprep.subr.bf16.mxu0 0
    %3408 = vmatpush1.bf16.msra.mxu0 %v3386
    %3409 = vmatprep.subr.bf16.mxu0 0
    %3410 = vmatpush1.bf16.msra.mxu0 %v3385
    %3411 = vmatprep.subr.bf16.mxu0 0
    %3412 = vmatpush1.bf16.msra.mxu0 %v3384
    %3413 = vmatprep.subr.bf16.mxu0 0
    %3414 = vmatpush1.bf16.msra.mxu0 %v3383
    %3415 = vmatprep.subr.bf16.mxu0 0
    %3416 = vmatpush2.bf16.msra.mxu0 0
    %3417 = vmatprep.subr.bf16.mxu0 0
    %3418 = vmatpush2.bf16.msra.mxu0 0
    %3419 = vmatprep.subr.bf16.mxu0 0
    %3420 = vmatpush2.bf16.msra.mxu0 0
    %3421 = vmatprep.subr.bf16.mxu0 0
    %3422 = vmatpush2.bf16.msra.mxu0 0
    %3423 = vmatprep.subr.bf16.mxu0 0
    %3424 = vmatpush2.bf16.msra.mxu0 0
    %3425 = vmatprep.subr.bf16.mxu0 0
    %3426 = vmatpush2.bf16.msra.mxu0 0
    %3427 = vmatprep.subr.bf16.mxu0 0
    %3428 = vmatpush2.bf16.msra.mxu0 0
    %3429 = vmatprep.subr.bf16.mxu0 0
    %3430 = vmatpush2.bf16.msra.mxu0 0
    %3431 = vmatprep.mubr.bf16.mxu0 0
    %3432 = vmatmul.mubr.bf16.gmra.mxu0 %v3334
    %v3433 = vpop.f32.mrf.mxu0
    %v3434 = vadd.f32 0.0, %v3433
    %v3435 = vpop.f32.mrf.mxu0
    %v3436 = vpop.f32.mrf.mxu0
    %v3437 = vadd.f32 0.0, %v3436
    %v3438 = vpop.f32.mrf.mxu0
    %3439 = vdwg.mxu0
    %s3440 = scalar_lea.vmem %s14, 64
    %v3441 = vld [vmem:[%s3440] sm:$0xf]
    %v3442 = vld [vmem:[%s3440 + $0x4] sm:$0xf]
    %v3443 = vld [vmem:[%s3440 + $0x8] sm:$0xf]
    %v3444 = vld [vmem:[%s3440 + $0xc] sm:$0xf]
    %v3445 = vld [vmem:[%s3440 + $0x10] sm:$0xf]
    %v3446 = vld [vmem:[%s3440 + $0x14] sm:$0xf]
    %v3447 = vld [vmem:[%s3440 + $0x18] sm:$0xf]
    %v3448 = vld [vmem:[%s3440 + $0x1c] sm:$0xf]
    %v3449 = vld [vmem:[%s3440 + $0x20] sm:$0xf]
    %v3450 = vld [vmem:[%s3440 + $0x24] sm:$0xf]
    %v3451 = vld [vmem:[%s3440 + $0x28] sm:$0xf]
    %v3452 = vld [vmem:[%s3440 + $0x2c] sm:$0xf]
    %v3453 = vld [vmem:[%s3440 + $0x30] sm:$0xf]
    %v3454 = vld [vmem:[%s3440 + $0x34] sm:$0xf]
    %v3455 = vld [vmem:[%s3440 + $0x38] sm:$0xf]
    %v3456 = vld [vmem:[%s3440 + $0x3c] sm:$0xf]
    %v3473 = vunpack.c.l.b16 %v3441
    %v3474 = vunpack.c.l.b16 %v3442
    %v3475 = vunpack.c.l.b16 %v3443
    %v3476 = vunpack.c.l.b16 %v3444
    %v3477 = vunpack.c.l.b16 %v3445
    %v3478 = vunpack.c.l.b16 %v3446
    %v3479 = vunpack.c.l.b16 %v3447
    %v3480 = vunpack.c.l.b16 %v3448
    %v3481 = vunpack.c.l.b16 %v3449
    %v3482 = vunpack.c.l.b16 %v3450
    %v3483 = vunpack.c.l.b16 %v3451
    %v3484 = vunpack.c.l.b16 %v3452
    %v3485 = vunpack.c.l.b16 %v3453
    %v3486 = vunpack.c.l.b16 %v3454
    %v3487 = vunpack.c.l.b16 %v3455
    %v3488 = vunpack.c.l.b16 %v3456
    %v3489 = vpack.c.b16 %v3474, %v3473
    %v3490 = vpack.c.b16 %v3476, %v3475
    %v3491 = vpack.c.b16 %v3478, %v3477
    %v3492 = vpack.c.b16 %v3480, %v3479
    %v3493 = vpack.c.b16 %v3482, %v3481
    %v3494 = vpack.c.b16 %v3484, %v3483
    %v3495 = vpack.c.b16 %v3486, %v3485
    %v3496 = vpack.c.b16 %v3488, %v3487
    %3505 = vmatprep.subr.bf16.mxu0 0
    %3506 = vmatpush1.bf16.msra.mxu0 %v3496
    %3507 = vmatprep.subr.bf16.mxu0 0
    %3508 = vmatpush1.bf16.msra.mxu0 %v3495
    %3509 = vmatprep.subr.bf16.mxu0 0
    %3510 = vmatpush1.bf16.msra.mxu0 %v3494
    %3511 = vmatprep.subr.bf16.mxu0 0
    %3512 = vmatpush1.bf16.msra.mxu0 %v3493
    %3513 = vmatprep.subr.bf16.mxu0 0
    %3514 = vmatpush1.bf16.msra.mxu0 %v3492
    %3515 = vmatprep.subr.bf16.mxu0 0
    %3516 = vmatpush1.bf16.msra.mxu0 %v3491
    %3517 = vmatprep.subr.bf16.mxu0 0
    %3518 = vmatpush1.bf16.msra.mxu0 %v3490
    %3519 = vmatprep.subr.bf16.mxu0 0
    %3520 = vmatpush1.bf16.msra.mxu0 %v3489
    %3521 = vmatprep.subr.bf16.mxu0 0
    %3522 = vmatpush2.bf16.msra.mxu0 0
    %3523 = vmatprep.subr.bf16.mxu0 0
    %3524 = vmatpush2.bf16.msra.mxu0 0
    %3525 = vmatprep.subr.bf16.mxu0 0
    %3526 = vmatpush2.bf16.msra.mxu0 0
    %3527 = vmatprep.subr.bf16.mxu0 0
    %3528 = vmatpush2.bf16.msra.mxu0 0
    %3529 = vmatprep.subr.bf16.mxu0 0
    %3530 = vmatpush2.bf16.msra.mxu0 0
    %3531 = vmatprep.subr.bf16.mxu0 0
    %3532 = vmatpush2.bf16.msra.mxu0 0
    %3533 = vmatprep.subr.bf16.mxu0 0
    %3534 = vmatpush2.bf16.msra.mxu0 0
    %3535 = vmatprep.subr.bf16.mxu0 0
    %3536 = vmatpush2.bf16.msra.mxu0 0
    %3537 = vmatprep.mubr.bf16.mxu0 0
    %3538 = vmatmul.mubr.bf16.gmra.mxu0 %v3334
    %v3539 = vpop.f32.mrf.mxu0
    %v3540 = vadd.f32 0.0, %v3539
    %v3541 = vpop.f32.mrf.mxu0
    %v3542 = vpop.f32.mrf.mxu0
    %v3543 = vadd.f32 0.0, %v3542
    %v3544 = vpop.f32.mrf.mxu0
    %3545 = vdwg.mxu0
    %v3546 = vmax.f32 %v3434, %v3540
    %v3547 = vmax.f32 %v3437, %v3543
    %v3548 = vmax.f32 %v3546, 0.0
    %v3549 = vmax.f32 %v3547, 0.0
    %3550 = vst.msk [vmem:[#allocation17] sm:$0xff] %vm274, %v3548
    %3551 = vst.msk [vmem:[#allocation17 + $0x8] sm:$0xff] %vm274, %v3549
    // Predicated region
    $region98: #{tpu_custom_call.1} parent=1 // pred_check
      _
    $region99: #{tpu_custom_call.1} parent=1 // pred_check_branch
      %3553 = sbr.rel (0) target = $region101
    $region100: #{tpu_custom_call.1} parent=1 // pred_region
      %s3555 = ssub.s32 256, 256
      %3556 = vsyncadd [#allocation4], %s3555
      %s3557 = sshll.u32 [#allocation17], 4
      %s3558 = int_to_ptr.vmem [resolvable:$true] %s3557
      %3563 = dma.vmem_to_hbm [thread:$0]  %s3558, 256, %s15, [#allocation4], 128, 128, 8
    $region101: #{tpu_custom_call.1} parent=1 // pred_fallthru
      _
    // Predicated region
    $region102: #{tpu_custom_call.1} parent=1 // pred_check
      _
    $region103: #{tpu_custom_call.1} parent=1 // pred_check_branch
      %3565 = sbr.rel (0) target = $region105
    $region104: #{tpu_custom_call.1} parent=1 // pred_region
      %3566 = dma.done [#allocation4], 256
    $region105: #{tpu_custom_call.1} parent=1 // pred_fallthru
      _
    %3567 = vsyncpa [#allocation3], 1
    %3568 = vsyncpa [#allocation6], 1
    %3569 = vsyncpa [#allocation9], 1
    %3570 = vsyncpa [#allocation12], 1
    %3571 = vsyncpa [#allocation15], 1
    %3572 = vsyncpa [#allocation4], 1

</llo_original>
